<compile_context>
chip_gen: v7x
topology: tpu7x:2x2x1
jax: 0.10.0
libtpu: 0.0.40
codegen_flags: <defaults>
</compile_context>

<pallas_src>
import jax
import jax.numpy as jnp
from jax import lax
from jax.experimental import pallas as pl
from jax.experimental.pallas import tpu as pltpu

_BN_EPS = 1e-5


# ----------------------------------------------------------------------------
# Fused kernel: down_conv + n_blocks * (1x1 -> 3x3 -> 1x1 + residual + temb)
# ----------------------------------------------------------------------------
def _fused_downblock_kernel_factory(N, Ho, Wo, Cout, Cmid, n_blocks):
    M = N * Ho * Wo

    def kernel(*refs):
        # ref layout:
        #   inputs : xcol, w_down, b_down,
        #            then per block: w1f, sh1f, w2f, sh2f, w3f, sh3f, temb_rows
        #   outputs: out
        #   scratch: pad_ref (zero-padded activation), col_ref (im2col matrix)
        n_in = 3 + 7 * n_blocks
        xcol_ref, wdown_ref, bdown_ref = refs[0], refs[1], refs[2]
        blk = refs[3:n_in]
        out_ref = refs[n_in]
        pad_ref = refs[n_in + 1]
        col_ref = refs[n_in + 2]

        # ---- down_conv: Conv2d(inc, outc, 3, stride=2, padding=1), no BN/ReLU
        #      (stride + padding already handled by wrapper-side im2col) ------
        h = jnp.dot(xcol_ref[...], wdown_ref[...],
                    preferred_element_type=jnp.float32) + bdown_ref[...]   # (M, Cout)

        # Zero the padded scratch once; only the interior is rewritten per block,
        # the 1-pixel border stays zero (the conv padding).
        pad_ref[...] = jnp.zeros_like(pad_ref)

        for b in range(n_blocks):
            (w1_ref, sh1_ref, w2_ref, sh2_ref,
             w3_ref, sh3_ref, temb_ref) = blk[7 * b: 7 * b + 7]

            r = h                                          # residual = Identity (inc == outc)

            # 1x1 conv + folded BN + ReLU
            y = jnp.dot(h, w1_ref[...], preferred_element_type=jnp.float32)
            y = jnp.maximum(y + sh1_ref[...], 0.0)         # (M, Cmid)
            # Dropout2d(p): inference-mode identity.
            # TODO(synk): training-mode dropout not modeled.

            # 3x3 conv (padding=1): build im2col matrix in VMEM, one MXU dot.
            pad_ref[:, 1:Ho + 1, 1:Wo + 1, :] = y.reshape(N, Ho, Wo, Cmid)
            for kh in range(3):
                for kw in range(3):
                    k = kh * 3 + kw
                    patch = pad_ref[:, kh:kh + Ho, kw:kw + Wo, :]
                    col_ref[:, k * Cmid:(k + 1) * Cmid] = patch.reshape(M, Cmid)
            y = jnp.dot(col_ref[...], w2_ref[...],
                        preferred_element_type=jnp.float32)
            y = jnp.maximum(y + sh2_ref[...], 0.0)         # (M, Cmid)

            # 1x1 conv + folded BN + ReLU, then residual + time-embedding add
            y = jnp.dot(y, w3_ref[...], preferred_element_type=jnp.float32)
            y = jnp.maximum(y + sh3_ref[...], 0.0)
            h = y + r + temb_ref[...]                      # (M, Cout)

        out_ref[...] = h

    return kernel


# ----------------------------------------------------------------------------
# Wrapper: layout glue (im2col of the strided down-conv input, BN folding,
# time-embedding broadcast) + single pallas_call.
# ----------------------------------------------------------------------------
def downblock_forward(x_nchw, t_idx, params):
    # NCHW in / NCHW out (PyTorch convention); flat (M, C) inside the kernel.
    x = jnp.transpose(x_nchw, (0, 2, 3, 1)).astype(jnp.float32)       # NHWC
    N, H, W, Cin = x.shape
    w_down = params["down"]["w"]
    KH, KW, _, Cout = w_down.shape
    n_blocks = len(params["blocks"])
    Cmid = params["blocks"][0]["w2"].shape[2] if n_blocks else Cout // 4
    s, pad = 2, 1
    Ho = (H + 2 * pad - KH) // s + 1
    Wo = (W + 2 * pad - KW) // s + 1
    M = N * Ho * Wo

    # --- wrapper-side glue: im2col of the padded, strided down-conv input ---
    xp = jnp.pad(x, ((0, 0), (pad, pad), (pad, pad), (0, 0)))
    taps = []
    for kh in range(KH):
        for kw in range(KW):
            taps.append(xp[:, kh: kh + s * (Ho - 1) + 1: s,
                           kw: kw + s * (Wo - 1) + 1: s, :])
    xcol = jnp.concatenate(taps, axis=-1).reshape(M, KH * KW * Cin)   # (M, 9*Cin)

    wdown = w_down.reshape(KH * KW * Cin, Cout)
    bdown = params["down"]["b"].reshape(1, Cout)

    # --- fold BatchNorm (inference) into weights / shift -------------------
    def fold(bn, w_flat, b):
        g, beta, mean, var = bn
        scale = g / jnp.sqrt(var + _BN_EPS)
        return w_flat * scale[None, :], (b * scale + beta - mean * scale).reshape(1, -1)

    blk_args = []
    for rp in params["blocks"]:
        w1f, sh1f = fold(rp["bn1"], rp["w1"].reshape(Cout, Cmid), rp["b1"])
        w2f, sh2f = fold(rp["bn2"], rp["w2"].reshape(9 * Cmid, Cmid), rp["b2"])
        w3f, sh3f = fold(rp["bn3"], rp["w3"].reshape(Cmid, Cout), rp["b3"])
        # TODO(synk): TimeEmbedding2d is not defined in the source; assumed to be
        # an embedding lookup (t, outc) -> (N, outc) followed by the 1x1 conv,
        # i.e. a tiny (N, outc) matmul, broadcast over spatial positions here.
        temb = rp["emb_table"][t_idx] @ rp["wt"] + rp["bt"]            # (N, Cout)
        temb_rows = jnp.repeat(temb, Ho * Wo, axis=0)                  # (M, Cout)
        blk_args += [w1f, sh1f, w2f, sh2f, w3f, sh3f, temb_rows]
        # cond_emb: cond_config=None -> make_cond_block returns None -> skipped.

    n_in = 3 + 7 * n_blocks
    kern = _fused_downblock_kernel_factory(N, Ho, Wo, Cout, Cmid, n_blocks)

    # TODO(synk): at realistic H/W/C, add spatial row-tiling (grid over Ho tiles
    # marked "parallel" for v7x's 2 TCs) and cast activations/weights to bf16
    # for the MXU; at this toy size a single un-gridded invocation is fastest.
    out_flat = pl.pallas_call(
        kern,
        out_shape=jax.ShapeDtypeStruct((M, Cout), jnp.float32),
        in_specs=[pl.BlockSpec(memory_space=pltpu.MemorySpace.VMEM)] * n_in,
        out_specs=pl.BlockSpec(memory_space=pltpu.MemorySpace.VMEM),
        scratch_shapes=[
            pltpu.VMEM((N, Ho + 2, Wo + 2, Cmid), jnp.float32),   # padded activation
            pltpu.VMEM((M, 9 * Cmid), jnp.float32),               # im2col columns
        ],
    )(xcol, wdown, bdown, *blk_args)

    out = out_flat.reshape(N, Ho, Wo, Cout)
    return jnp.transpose(out, (0, 3, 1, 2))


# ----------------------------------------------------------------------------
# Parameters (deterministic, synthetic)
# ----------------------------------------------------------------------------
def make_params(key, inc, outc, n_blocks, t_steps):
    midc = outc // 4
    ks = iter(jax.random.split(key, 8 + 32 * n_blocks))
    nrm = lambda shape, s=0.1: s * jax.random.normal(next(ks), shape, jnp.float32)
    bn = lambda c: (1.0 + nrm((c,)),               # gamma
                    nrm((c,)),                     # beta
                    nrm((c,)),                     # running_mean
                    1.0 + 0.1 * jnp.abs(jax.random.normal(next(ks), (c,))))  # running_var

    params = {"down": {"w": nrm((3, 3, inc, outc)), "b": nrm((outc,))},
              "blocks": []}
    for _ in range(n_blocks):
        params["blocks"].append({
            "w1": nrm((1, 1, outc, midc)), "b1": nrm((midc,)), "bn1": bn(midc),
            "w2": nrm((3, 3, midc, midc)), "b2": nrm((midc,)), "bn2": bn(midc),
            "w3": nrm((1, 1, midc, outc)), "b3": nrm((outc,)), "bn3": bn(outc),
            "emb_table": nrm((t_steps, outc)),
            "wt": nrm((outc, outc)), "bt": nrm((outc,)),
        })
    return params


# ----------------------------------------------------------------------------
# Pure-JAX reference (for correctness check only)
# ----------------------------------------------------------------------------
def _ref_conv(x, w, b, stride, padding):
    y = lax.conv_general_dilated(x, w, (stride, stride),
                                 [(padding, padding), (padding, padding)],
                                 dimension_numbers=("NHWC", "HWIO", "NHWC"))
    return y + b[None, None, None, :]


def _ref_bn(y, bn):
    g, bta, m, v = bn
    return (y - m) / jnp.sqrt(v + _BN_EPS) * g + bta


def ref_forward(x_nchw, t_idx, params):
    x = jnp.transpose(x_nchw, (0, 2, 3, 1)).astype(jnp.float32)
    h = _ref_conv(x, params["down"]["w"], params["down"]["b"], 2, 1)
    for rp in params["blocks"]:
        temb = rp["emb_table"][t_idx] @ rp["wt"] + rp["bt"]
        r = h
        y = jax.nn.relu(_ref_bn(_ref_conv(h, rp["w1"], rp["b1"], 1, 0), rp["bn1"]))
        y = jax.nn.relu(_ref_bn(_ref_conv(y, rp["w2"], rp["b2"], 1, 1), rp["bn2"]))
        y = jax.nn.relu(_ref_bn(_ref_conv(y, rp["w3"], rp["b3"], 1, 0), rp["bn3"]))
        h = y + r + temb[:, None, None, :]
    return jnp.transpose(h, (0, 3, 1, 2))


# ----------------------------------------------------------------------------
if __name__ == "__main__":
    INC, OUTC, N_BLOCKS, T_STEPS = 4, 16, 2, 8
    N, H, W = 2, 16, 16

    key = jax.random.PRNGKey(0)
    kx, kt, kp = jax.random.split(key, 3)
    x = jax.random.normal(kx, (N, INC, H, W), jnp.float32)          # NCHW like PyTorch
    t_idx = jax.random.randint(kt, (N,), 0, T_STEPS)
    params = make_params(kp, INC, OUTC, N_BLOCKS, T_STEPS)

    fwd = jax.jit(downblock_forward)
    out = jax.block_until_ready(fwd(x, t_idx, params))
    ref = jax.block_until_ready(ref_forward(x, t_idx, params))

    assert out.shape == (N, OUTC, H // 2, W // 2), out.shape
    assert jnp.allclose(out, ref, atol=1e-4, rtol=1e-4), float(jnp.max(jnp.abs(out - ref)))
    print("KERNEL_OK")
</pallas_src>

<mosaic_0001>
module attributes {stable_mosaic.version = 11 : i64} {
  func.func @kernel(%arg0: memref<128x36xf32, #tpu.memory_space<vmem>>, %arg1: memref<36x16xf32, #tpu.memory_space<vmem>>, %arg2: memref<1x16xf32, #tpu.memory_space<vmem>>, %arg3: memref<16x4xf32, #tpu.memory_space<vmem>>, %arg4: memref<1x4xf32, #tpu.memory_space<vmem>>, %arg5: memref<36x4xf32, #tpu.memory_space<vmem>>, %arg6: memref<1x4xf32, #tpu.memory_space<vmem>>, %arg7: memref<4x16xf32, #tpu.memory_space<vmem>>, %arg8: memref<1x16xf32, #tpu.memory_space<vmem>>, %arg9: memref<128x16xf32, #tpu.memory_space<vmem>>, %arg10: memref<16x4xf32, #tpu.memory_space<vmem>>, %arg11: memref<1x4xf32, #tpu.memory_space<vmem>>, %arg12: memref<36x4xf32, #tpu.memory_space<vmem>>, %arg13: memref<1x4xf32, #tpu.memory_space<vmem>>, %arg14: memref<4x16xf32, #tpu.memory_space<vmem>>, %arg15: memref<1x16xf32, #tpu.memory_space<vmem>>, %arg16: memref<128x16xf32, #tpu.memory_space<vmem>>, %arg17: memref<128x16xf32, #tpu.memory_space<vmem>>, %arg18: memref<2x10x10x4xf32, #tpu.memory_space<vmem>>, %arg19: memref<128x36xf32, #tpu.memory_space<vmem>>) attributes {dimension_semantics = [], scalar_prefetch = 0 : i64, scratch_operands = 2 : i64, tpu.core_type = #tpu.core_type<tc>} {
    %c0 = arith.constant 0 : index
    %c0_0 = arith.constant 0 : index
    %0 = vector.load %arg0[%c0, %c0_0] : memref<128x36xf32, #tpu.memory_space<vmem>>, vector<128x36xf32>
    %c0_1 = arith.constant 0 : index
    %c0_2 = arith.constant 0 : index
    %1 = vector.load %arg1[%c0_1, %c0_2] : memref<36x16xf32, #tpu.memory_space<vmem>>, vector<36x16xf32>
    %cst = arith.constant dense<0.000000e+00> : vector<128x16xf32>
    %2 = tpu.matmul %0, %1, %cst {dimension_numbers = #tpu.dot_dimension_numbers<[1], [0], [0], [1], [0, 0, 1, 1], [], []>} : vector<128x36xf32>, vector<36x16xf32>, vector<128x16xf32> -> vector<128x16xf32>
    %c0_3 = arith.constant 0 : index
    %c0_4 = arith.constant 0 : index
    %3 = vector.load %arg2[%c0_3, %c0_4] : memref<1x16xf32, #tpu.memory_space<vmem>>, vector<1x16xf32>
    %4 = vector.broadcast %3 : vector<1x16xf32> to vector<128x16xf32>
    %5 = arith.addf %2, %4 : vector<128x16xf32>
    %cst_5 = arith.constant 0.000000e+00 : f32
    %6 = vector.broadcast %cst_5 : f32 to vector<2x10x10x4xf32>
    %c0_6 = arith.constant 0 : index
    %c0_7 = arith.constant 0 : index
    %c0_8 = arith.constant 0 : index
    %c0_9 = arith.constant 0 : index
    %7 = vector.load %arg18[%c0_6, %c0_7, %c0_8, %c0_9] : memref<2x10x10x4xf32, #tpu.memory_space<vmem>>, vector<2x10x10x4xf32>
    tpu.vector_store %arg18[%c0_6, %c0_7, %c0_8, %c0_9], %6 {strides = array<i32>} : memref<2x10x10x4xf32, #tpu.memory_space<vmem>>, vector<2x10x10x4xf32>,
    %c0_10 = arith.constant 0 : index
    %c0_11 = arith.constant 0 : index
    %8 = vector.load %arg3[%c0_10, %c0_11] : memref<16x4xf32, #tpu.memory_space<vmem>>, vector<16x4xf32>
    %cst_12 = arith.constant dense<0.000000e+00> : vector<128x4xf32>
    %9 = tpu.matmul %5, %8, %cst_12 {dimension_numbers = #tpu.dot_dimension_numbers<[1], [0], [0], [1], [0, 0, 1, 1], [], []>} : vector<128x16xf32>, vector<16x4xf32>, vector<128x4xf32> -> vector<128x4xf32>
    %c0_13 = arith.constant 0 : index
    %c0_14 = arith.constant 0 : index
    %10 = vector.load %arg4[%c0_13, %c0_14] : memref<1x4xf32, #tpu.memory_space<vmem>>, vector<1x4xf32>
    %11 = vector.broadcast %10 : vector<1x4xf32> to vector<128x4xf32>
    %12 = arith.addf %9, %11 : vector<128x4xf32>
    %cst_15 = arith.constant 0.000000e+00 : f32
    %13 = vector.broadcast %cst_15 : f32 to vector<128x4xf32>
    %14 = arith.maximumf %12, %13 : vector<128x4xf32>
    %15 = vector.shape_cast %14 : vector<128x4xf32> to vector<2x8x8x4xf32>
    %c0_16 = arith.constant 0 : index
    %c1 = arith.constant 1 : index
    %c1_17 = arith.constant 1 : index
    %c0_18 = arith.constant 0 : index
    %16 = vector.load %arg18[%c0_16, %c1, %c1_17, %c0_18] : memref<2x10x10x4xf32, #tpu.memory_space<vmem>>, vector<2x8x8x4xf32>
    tpu.vector_store %arg18[%c0_16, %c1, %c1_17, %c0_18], %15 {strides = array<i32>} : memref<2x10x10x4xf32, #tpu.memory_space<vmem>>, vector<2x8x8x4xf32>,
    %c0_19 = arith.constant 0 : index
    %c0_20 = arith.constant 0 : index
    %c0_21 = arith.constant 0 : index
    %c0_22 = arith.constant 0 : index
    %17 = vector.load %arg18[%c0_19, %c0_20, %c0_21, %c0_22] : memref<2x10x10x4xf32, #tpu.memory_space<vmem>>, vector<2x8x8x4xf32>
    %18 = vector.shape_cast %17 : vector<2x8x8x4xf32> to vector<128x4xf32>
    %c0_23 = arith.constant 0 : index
    %c0_24 = arith.constant 0 : index
    %19 = vector.load %arg19[%c0_23, %c0_24] : memref<128x36xf32, #tpu.memory_space<vmem>>, vector<128x4xf32>
    tpu.vector_store %arg19[%c0_23, %c0_24], %18 {strides = array<i32>} : memref<128x36xf32, #tpu.memory_space<vmem>>, vector<128x4xf32>,
    %c0_25 = arith.constant 0 : index
    %c0_26 = arith.constant 0 : index
    %c1_27 = arith.constant 1 : index
    %c0_28 = arith.constant 0 : index
    %20 = vector.load %arg18[%c0_25, %c0_26, %c1_27, %c0_28] : memref<2x10x10x4xf32, #tpu.memory_space<vmem>>, vector<2x8x8x4xf32>
    %21 = vector.shape_cast %20 : vector<2x8x8x4xf32> to vector<128x4xf32>
    %c0_29 = arith.constant 0 : index
    %c4 = arith.constant 4 : index
    %22 = vector.load %arg19[%c0_29, %c4] : memref<128x36xf32, #tpu.memory_space<vmem>>, vector<128x4xf32>
    tpu.vector_store %arg19[%c0_29, %c4], %21 {strides = array<i32>} : memref<128x36xf32, #tpu.memory_space<vmem>>, vector<128x4xf32>,
    %c0_30 = arith.constant 0 : index
    %c0_31 = arith.constant 0 : index
    %c2 = arith.constant 2 : index
    %c0_32 = arith.constant 0 : index
    %23 = vector.load %arg18[%c0_30, %c0_31, %c2, %c0_32] : memref<2x10x10x4xf32, #tpu.memory_space<vmem>>, vector<2x8x8x4xf32>
    %24 = vector.shape_cast %23 : vector<2x8x8x4xf32> to vector<128x4xf32>
    %c0_33 = arith.constant 0 : index
    %c8 = arith.constant 8 : index
    %25 = vector.load %arg19[%c0_33, %c8] : memref<128x36xf32, #tpu.memory_space<vmem>>, vector<128x4xf32>
    tpu.vector_store %arg19[%c0_33, %c8], %24 {strides = array<i32>} : memref<128x36xf32, #tpu.memory_space<vmem>>, vector<128x4xf32>,
    %c0_34 = arith.constant 0 : index
    %c1_35 = arith.constant 1 : index
    %c0_36 = arith.constant 0 : index
    %c0_37 = arith.constant 0 : index
    %26 = vector.load %arg18[%c0_34, %c1_35, %c0_36, %c0_37] : memref<2x10x10x4xf32, #tpu.memory_space<vmem>>, vector<2x8x8x4xf32>
    %27 = vector.shape_cast %26 : vector<2x8x8x4xf32> to vector<128x4xf32>
    %c0_38 = arith.constant 0 : index
    %c12 = arith.constant 12 : index
    %28 = vector.load %arg19[%c0_38, %c12] : memref<128x36xf32, #tpu.memory_space<vmem>>, vector<128x4xf32>
    tpu.vector_store %arg19[%c0_38, %c12], %27 {strides = array<i32>} : memref<128x36xf32, #tpu.memory_space<vmem>>, vector<128x4xf32>,
    %c0_39 = arith.constant 0 : index
    %c1_40 = arith.constant 1 : index
    %c1_41 = arith.constant 1 : index
    %c0_42 = arith.constant 0 : index
    %29 = vector.load %arg18[%c0_39, %c1_40, %c1_41, %c0_42] : memref<2x10x10x4xf32, #tpu.memory_space<vmem>>, vector<2x8x8x4xf32>
    %30 = vector.shape_cast %29 : vector<2x8x8x4xf32> to vector<128x4xf32>
    %c0_43 = arith.constant 0 : index
    %c16 = arith.constant 16 : index
    %31 = vector.load %arg19[%c0_43, %c16] : memref<128x36xf32, #tpu.memory_space<vmem>>, vector<128x4xf32>
    tpu.vector_store %arg19[%c0_43, %c16], %30 {strides = array<i32>} : memref<128x36xf32, #tpu.memory_space<vmem>>, vector<128x4xf32>,
    %c0_44 = arith.constant 0 : index
    %c1_45 = arith.constant 1 : index
    %c2_46 = arith.constant 2 : index
    %c0_47 = arith.constant 0 : index
    %32 = vector.load %arg18[%c0_44, %c1_45, %c2_46, %c0_47] : memref<2x10x10x4xf32, #tpu.memory_space<vmem>>, vector<2x8x8x4xf32>
    %33 = vector.shape_cast %32 : vector<2x8x8x4xf32> to vector<128x4xf32>
    %c0_48 = arith.constant 0 : index
    %c20 = arith.constant 20 : index
    %34 = vector.load %arg19[%c0_48, %c20] : memref<128x36xf32, #tpu.memory_space<vmem>>, vector<128x4xf32>
    tpu.vector_store %arg19[%c0_48, %c20], %33 {strides = array<i32>} : memref<128x36xf32, #tpu.memory_space<vmem>>, vector<128x4xf32>,
    %c0_49 = arith.constant 0 : index
    %c2_50 = arith.constant 2 : index
    %c0_51 = arith.constant 0 : index
    %c0_52 = arith.constant 0 : index
    %35 = vector.load %arg18[%c0_49, %c2_50, %c0_51, %c0_52] : memref<2x10x10x4xf32, #tpu.memory_space<vmem>>, vector<2x8x8x4xf32>
    %36 = vector.shape_cast %35 : vector<2x8x8x4xf32> to vector<128x4xf32>
    %c0_53 = arith.constant 0 : index
    %c24 = arith.constant 24 : index
    %37 = vector.load %arg19[%c0_53, %c24] : memref<128x36xf32, #tpu.memory_space<vmem>>, vector<128x4xf32>
    tpu.vector_store %arg19[%c0_53, %c24], %36 {strides = array<i32>} : memref<128x36xf32, #tpu.memory_space<vmem>>, vector<128x4xf32>,
    %c0_54 = arith.constant 0 : index
    %c2_55 = arith.constant 2 : index
    %c1_56 = arith.constant 1 : index
    %c0_57 = arith.constant 0 : index
    %38 = vector.load %arg18[%c0_54, %c2_55, %c1_56, %c0_57] : memref<2x10x10x4xf32, #tpu.memory_space<vmem>>, vector<2x8x8x4xf32>
    %39 = vector.shape_cast %38 : vector<2x8x8x4xf32> to vector<128x4xf32>
    %c0_58 = arith.constant 0 : index
    %c28 = arith.constant 28 : index
    %40 = vector.load %arg19[%c0_58, %c28] : memref<128x36xf32, #tpu.memory_space<vmem>>, vector<128x4xf32>
    tpu.vector_store %arg19[%c0_58, %c28], %39 {strides = array<i32>} : memref<128x36xf32, #tpu.memory_space<vmem>>, vector<128x4xf32>,
    %c0_59 = arith.constant 0 : index
    %c2_60 = arith.constant 2 : index
    %c2_61 = arith.constant 2 : index
    %c0_62 = arith.constant 0 : index
    %41 = vector.load %arg18[%c0_59, %c2_60, %c2_61, %c0_62] : memref<2x10x10x4xf32, #tpu.memory_space<vmem>>, vector<2x8x8x4xf32>
    %42 = vector.shape_cast %41 : vector<2x8x8x4xf32> to vector<128x4xf32>
    %c0_63 = arith.constant 0 : index
    %c32 = arith.constant 32 : index
    %43 = vector.load %arg19[%c0_63, %c32] : memref<128x36xf32, #tpu.memory_space<vmem>>, vector<128x4xf32>
    tpu.vector_store %arg19[%c0_63, %c32], %42 {strides = array<i32>} : memref<128x36xf32, #tpu.memory_space<vmem>>, vector<128x4xf32>,
    %c0_64 = arith.constant 0 : index
    %c0_65 = arith.constant 0 : index
    %44 = vector.load %arg19[%c0_64, %c0_65] : memref<128x36xf32, #tpu.memory_space<vmem>>, vector<128x36xf32>
    %c0_66 = arith.constant 0 : index
    %c0_67 = arith.constant 0 : index
    %45 = vector.load %arg5[%c0_66, %c0_67] : memref<36x4xf32, #tpu.memory_space<vmem>>, vector<36x4xf32>
    %cst_68 = arith.constant dense<0.000000e+00> : vector<128x4xf32>
    %46 = tpu.matmul %44, %45, %cst_68 {dimension_numbers = #tpu.dot_dimension_numbers<[1], [0], [0], [1], [0, 0, 1, 1], [], []>} : vector<128x36xf32>, vector<36x4xf32>, vector<128x4xf32> -> vector<128x4xf32>
    %c0_69 = arith.constant 0 : index
    %c0_70 = arith.constant 0 : index
    %47 = vector.load %arg6[%c0_69, %c0_70] : memref<1x4xf32, #tpu.memory_space<vmem>>, vector<1x4xf32>
    %48 = vector.broadcast %47 : vector<1x4xf32> to vector<128x4xf32>
    %49 = arith.addf %46, %48 : vector<128x4xf32>
    %cst_71 = arith.constant 0.000000e+00 : f32
    %50 = vector.broadcast %cst_71 : f32 to vector<128x4xf32>
    %51 = arith.maximumf %49, %50 : vector<128x4xf32>
    %c0_72 = arith.constant 0 : index
    %c0_73 = arith.constant 0 : index
    %52 = vector.load %arg7[%c0_72, %c0_73] : memref<4x16xf32, #tpu.memory_space<vmem>>, vector<4x16xf32>
    %cst_74 = arith.constant dense<0.000000e+00> : vector<128x16xf32>
    %53 = tpu.matmul %51, %52, %cst_74 {dimension_numbers = #tpu.dot_dimension_numbers<[1], [0], [0], [1], [0, 0, 1, 1], [], []>} : vector<128x4xf32>, vector<4x16xf32>, vector<128x16xf32> -> vector<128x16xf32>
    %c0_75 = arith.constant 0 : index
    %c0_76 = arith.constant 0 : index
    %54 = vector.load %arg8[%c0_75, %c0_76] : memref<1x16xf32, #tpu.memory_space<vmem>>, vector<1x16xf32>
    %55 = vector.broadcast %54 : vector<1x16xf32> to vector<128x16xf32>
    %56 = arith.addf %53, %55 : vector<128x16xf32>
    %cst_77 = arith.constant 0.000000e+00 : f32
    %57 = vector.broadcast %cst_77 : f32 to vector<128x16xf32>
    %58 = arith.maximumf %56, %57 : vector<128x16xf32>
    %59 = arith.addf %58, %5 : vector<128x16xf32>
    %c0_78 = arith.constant 0 : index
    %c0_79 = arith.constant 0 : index
    %60 = vector.load %arg9[%c0_78, %c0_79] : memref<128x16xf32, #tpu.memory_space<vmem>>, vector<128x16xf32>
    %61 = arith.addf %59, %60 : vector<128x16xf32>
    %c0_80 = arith.constant 0 : index
    %c0_81 = arith.constant 0 : index
    %62 = vector.load %arg10[%c0_80, %c0_81] : memref<16x4xf32, #tpu.memory_space<vmem>>, vector<16x4xf32>
    %cst_82 = arith.constant dense<0.000000e+00> : vector<128x4xf32>
    %63 = tpu.matmul %61, %62, %cst_82 {dimension_numbers = #tpu.dot_dimension_numbers<[1], [0], [0], [1], [0, 0, 1, 1], [], []>} : vector<128x16xf32>, vector<16x4xf32>, vector<128x4xf32> -> vector<128x4xf32>
    %c0_83 = arith.constant 0 : index
    %c0_84 = arith.constant 0 : index
    %64 = vector.load %arg11[%c0_83, %c0_84] : memref<1x4xf32, #tpu.memory_space<vmem>>, vector<1x4xf32>
    %65 = vector.broadcast %64 : vector<1x4xf32> to vector<128x4xf32>
    %66 = arith.addf %63, %65 : vector<128x4xf32>
    %cst_85 = arith.constant 0.000000e+00 : f32
    %67 = vector.broadcast %cst_85 : f32 to vector<128x4xf32>
    %68 = arith.maximumf %66, %67 : vector<128x4xf32>
    %69 = vector.shape_cast %68 : vector<128x4xf32> to vector<2x8x8x4xf32>
    %c0_86 = arith.constant 0 : index
    %c1_87 = arith.constant 1 : index
    %c1_88 = arith.constant 1 : index
    %c0_89 = arith.constant 0 : index
    %70 = vector.load %arg18[%c0_86, %c1_87, %c1_88, %c0_89] : memref<2x10x10x4xf32, #tpu.memory_space<vmem>>, vector<2x8x8x4xf32>
    tpu.vector_store %arg18[%c0_86, %c1_87, %c1_88, %c0_89], %69 {strides = array<i32>} : memref<2x10x10x4xf32, #tpu.memory_space<vmem>>, vector<2x8x8x4xf32>,
    %c0_90 = arith.constant 0 : index
    %c0_91 = arith.constant 0 : index
    %c0_92 = arith.constant 0 : index
    %c0_93 = arith.constant 0 : index
    %71 = vector.load %arg18[%c0_90, %c0_91, %c0_92, %c0_93] : memref<2x10x10x4xf32, #tpu.memory_space<vmem>>, vector<2x8x8x4xf32>
    %72 = vector.shape_cast %71 : vector<2x8x8x4xf32> to vector<128x4xf32>
    %c0_94 = arith.constant 0 : index
    %c0_95 = arith.constant 0 : index
    %73 = vector.load %arg19[%c0_94, %c0_95] : memref<128x36xf32, #tpu.memory_space<vmem>>, vector<128x4xf32>
    tpu.vector_store %arg19[%c0_94, %c0_95], %72 {strides = array<i32>} : memref<128x36xf32, #tpu.memory_space<vmem>>, vector<128x4xf32>,
    %c0_96 = arith.constant 0 : index
    %c0_97 = arith.constant 0 : index
    %c1_98 = arith.constant 1 : index
    %c0_99 = arith.constant 0 : index
    %74 = vector.load %arg18[%c0_96, %c0_97, %c1_98, %c0_99] : memref<2x10x10x4xf32, #tpu.memory_space<vmem>>, vector<2x8x8x4xf32>
    %75 = vector.shape_cast %74 : vector<2x8x8x4xf32> to vector<128x4xf32>
    %c0_100 = arith.constant 0 : index
    %c4_101 = arith.constant 4 : index
    %76 = vector.load %arg19[%c0_100, %c4_101] : memref<128x36xf32, #tpu.memory_space<vmem>>, vector<128x4xf32>
    tpu.vector_store %arg19[%c0_100, %c4_101], %75 {strides = array<i32>} : memref<128x36xf32, #tpu.memory_space<vmem>>, vector<128x4xf32>,
    %c0_102 = arith.constant 0 : index
    %c0_103 = arith.constant 0 : index
    %c2_104 = arith.constant 2 : index
    %c0_105 = arith.constant 0 : index
    %77 = vector.load %arg18[%c0_102, %c0_103, %c2_104, %c0_105] : memref<2x10x10x4xf32, #tpu.memory_space<vmem>>, vector<2x8x8x4xf32>
    %78 = vector.shape_cast %77 : vector<2x8x8x4xf32> to vector<128x4xf32>
    %c0_106 = arith.constant 0 : index
    %c8_107 = arith.constant 8 : index
    %79 = vector.load %arg19[%c0_106, %c8_107] : memref<128x36xf32, #tpu.memory_space<vmem>>, vector<128x4xf32>
    tpu.vector_store %arg19[%c0_106, %c8_107], %78 {strides = array<i32>} : memref<128x36xf32, #tpu.memory_space<vmem>>, vector<128x4xf32>,
    %c0_108 = arith.constant 0 : index
    %c1_109 = arith.constant 1 : index
    %c0_110 = arith.constant 0 : index
    %c0_111 = arith.constant 0 : index
    %80 = vector.load %arg18[%c0_108, %c1_109, %c0_110, %c0_111] : memref<2x10x10x4xf32, #tpu.memory_space<vmem>>, vector<2x8x8x4xf32>
    %81 = vector.shape_cast %80 : vector<2x8x8x4xf32> to vector<128x4xf32>
    %c0_112 = arith.constant 0 : index
    %c12_113 = arith.constant 12 : index
    %82 = vector.load %arg19[%c0_112, %c12_113] : memref<128x36xf32, #tpu.memory_space<vmem>>, vector<128x4xf32>
    tpu.vector_store %arg19[%c0_112, %c12_113], %81 {strides = array<i32>} : memref<128x36xf32, #tpu.memory_space<vmem>>, vector<128x4xf32>,
    %c0_114 = arith.constant 0 : index
    %c1_115 = arith.constant 1 : index
    %c1_116 = arith.constant 1 : index
    %c0_117 = arith.constant 0 : index
    %83 = vector.load %arg18[%c0_114, %c1_115, %c1_116, %c0_117] : memref<2x10x10x4xf32, #tpu.memory_space<vmem>>, vector<2x8x8x4xf32>
    %84 = vector.shape_cast %83 : vector<2x8x8x4xf32> to vector<128x4xf32>
    %c0_118 = arith.constant 0 : index
    %c16_119 = arith.constant 16 : index
    %85 = vector.load %arg19[%c0_118, %c16_119] : memref<128x36xf32, #tpu.memory_space<vmem>>, vector<128x4xf32>
    tpu.vector_store %arg19[%c0_118, %c16_119], %84 {strides = array<i32>} : memref<128x36xf32, #tpu.memory_space<vmem>>, vector<128x4xf32>,
    %c0_120 = arith.constant 0 : index
    %c1_121 = arith.constant 1 : index
    %c2_122 = arith.constant 2 : index
    %c0_123 = arith.constant 0 : index
    %86 = vector.load %arg18[%c0_120, %c1_121, %c2_122, %c0_123] : memref<2x10x10x4xf32, #tpu.memory_space<vmem>>, vector<2x8x8x4xf32>
    %87 = vector.shape_cast %86 : vector<2x8x8x4xf32> to vector<128x4xf32>
    %c0_124 = arith.constant 0 : index
    %c20_125 = arith.constant 20 : index
    %88 = vector.load %arg19[%c0_124, %c20_125] : memref<128x36xf32, #tpu.memory_space<vmem>>, vector<128x4xf32>
    tpu.vector_store %arg19[%c0_124, %c20_125], %87 {strides = array<i32>} : memref<128x36xf32, #tpu.memory_space<vmem>>, vector<128x4xf32>,
    %c0_126 = arith.constant 0 : index
    %c2_127 = arith.constant 2 : index
    %c0_128 = arith.constant 0 : index
    %c0_129 = arith.constant 0 : index
    %89 = vector.load %arg18[%c0_126, %c2_127, %c0_128, %c0_129] : memref<2x10x10x4xf32, #tpu.memory_space<vmem>>, vector<2x8x8x4xf32>
    %90 = vector.shape_cast %89 : vector<2x8x8x4xf32> to vector<128x4xf32>
    %c0_130 = arith.constant 0 : index
    %c24_131 = arith.constant 24 : index
    %91 = vector.load %arg19[%c0_130, %c24_131] : memref<128x36xf32, #tpu.memory_space<vmem>>, vector<128x4xf32>
    tpu.vector_store %arg19[%c0_130, %c24_131], %90 {strides = array<i32>} : memref<128x36xf32, #tpu.memory_space<vmem>>, vector<128x4xf32>,
    %c0_132 = arith.constant 0 : index
    %c2_133 = arith.constant 2 : index
    %c1_134 = arith.constant 1 : index
    %c0_135 = arith.constant 0 : index
    %92 = vector.load %arg18[%c0_132, %c2_133, %c1_134, %c0_135] : memref<2x10x10x4xf32, #tpu.memory_space<vmem>>, vector<2x8x8x4xf32>
    %93 = vector.shape_cast %92 : vector<2x8x8x4xf32> to vector<128x4xf32>
    %c0_136 = arith.constant 0 : index
    %c28_137 = arith.constant 28 : index
    %94 = vector.load %arg19[%c0_136, %c28_137] : memref<128x36xf32, #tpu.memory_space<vmem>>, vector<128x4xf32>
    tpu.vector_store %arg19[%c0_136, %c28_137], %93 {strides = array<i32>} : memref<128x36xf32, #tpu.memory_space<vmem>>, vector<128x4xf32>,
    %c0_138 = arith.constant 0 : index
    %c2_139 = arith.constant 2 : index
    %c2_140 = arith.constant 2 : index
    %c0_141 = arith.constant 0 : index
    %95 = vector.load %arg18[%c0_138, %c2_139, %c2_140, %c0_141] : memref<2x10x10x4xf32, #tpu.memory_space<vmem>>, vector<2x8x8x4xf32>
    %96 = vector.shape_cast %95 : vector<2x8x8x4xf32> to vector<128x4xf32>
    %c0_142 = arith.constant 0 : index
    %c32_143 = arith.constant 32 : index
    %97 = vector.load %arg19[%c0_142, %c32_143] : memref<128x36xf32, #tpu.memory_space<vmem>>, vector<128x4xf32>
    tpu.vector_store %arg19[%c0_142, %c32_143], %96 {strides = array<i32>} : memref<128x36xf32, #tpu.memory_space<vmem>>, vector<128x4xf32>,
    %c0_144 = arith.constant 0 : index
    %c0_145 = arith.constant 0 : index
    %98 = vector.load %arg19[%c0_144, %c0_145] : memref<128x36xf32, #tpu.memory_space<vmem>>, vector<128x36xf32>
    %c0_146 = arith.constant 0 : index
    %c0_147 = arith.constant 0 : index
    %99 = vector.load %arg12[%c0_146, %c0_147] : memref<36x4xf32, #tpu.memory_space<vmem>>, vector<36x4xf32>
    %cst_148 = arith.constant dense<0.000000e+00> : vector<128x4xf32>
    %100 = tpu.matmul %98, %99, %cst_148 {dimension_numbers = #tpu.dot_dimension_numbers<[1], [0], [0], [1], [0, 0, 1, 1], [], []>} : vector<128x36xf32>, vector<36x4xf32>, vector<128x4xf32> -> vector<128x4xf32>
    %c0_149 = arith.constant 0 : index
    %c0_150 = arith.constant 0 : index
    %101 = vector.load %arg13[%c0_149, %c0_150] : memref<1x4xf32, #tpu.memory_space<vmem>>, vector<1x4xf32>
    %102 = vector.broadcast %101 : vector<1x4xf32> to vector<128x4xf32>
    %103 = arith.addf %100, %102 : vector<128x4xf32>
    %cst_151 = arith.constant 0.000000e+00 : f32
    %104 = vector.broadcast %cst_151 : f32 to vector<128x4xf32>
    %105 = arith.maximumf %103, %104 : vector<128x4xf32>
    %c0_152 = arith.constant 0 : index
    %c0_153 = arith.constant 0 : index
    %106 = vector.load %arg14[%c0_152, %c0_153] : memref<4x16xf32, #tpu.memory_space<vmem>>, vector<4x16xf32>
    %cst_154 = arith.constant dense<0.000000e+00> : vector<128x16xf32>
    %107 = tpu.matmul %105, %106, %cst_154 {dimension_numbers = #tpu.dot_dimension_numbers<[1], [0], [0], [1], [0, 0, 1, 1], [], []>} : vector<128x4xf32>, vector<4x16xf32>, vector<128x16xf32> -> vector<128x16xf32>
    %c0_155 = arith.constant 0 : index
    %c0_156 = arith.constant 0 : index
    %108 = vector.load %arg15[%c0_155, %c0_156] : memref<1x16xf32, #tpu.memory_space<vmem>>, vector<1x16xf32>
    %109 = vector.broadcast %108 : vector<1x16xf32> to vector<128x16xf32>
    %110 = arith.addf %107, %109 : vector<128x16xf32>
    %cst_157 = arith.constant 0.000000e+00 : f32
    %111 = vector.broadcast %cst_157 : f32 to vector<128x16xf32>
    %112 = arith.maximumf %110, %111 : vector<128x16xf32>
    %113 = arith.addf %112, %61 : vector<128x16xf32>
    %c0_158 = arith.constant 0 : index
    %c0_159 = arith.constant 0 : index
    %114 = vector.load %arg16[%c0_158, %c0_159] : memref<128x16xf32, #tpu.memory_space<vmem>>, vector<128x16xf32>
    %115 = arith.addf %113, %114 : vector<128x16xf32>
    %c0_160 = arith.constant 0 : index
    %c0_161 = arith.constant 0 : index
    %116 = vector.load %arg17[%c0_160, %c0_161] : memref<128x16xf32, #tpu.memory_space<vmem>>, vector<128x16xf32>
    tpu.vector_store %arg17[%c0_160, %c0_161], %115 {strides = array<i32>} : memref<128x16xf32, #tpu.memory_space<vmem>>, vector<128x16xf32>,
    return
  }
}

</mosaic_0001>

<llo_original>
// kernel: downblock_forward.1
$region0: #{downblock_forward.1}
  #allocation0 [shape = 'u32[]', space=smem, size = 0x4, offset = 0x4, fixed_abs, tag = 'smem constant byte address 0x4 - core index']
  #allocation1 [shape = 'u32[144,128]{1,0:T(1,128)}', space=vmem, size = 0x12000, scoped, tag = 'internal scratch']
  #allocation2 [shape = 'f32[2,10,10,4]{3,2,1,0:T(8,128)}', space=vmem, size = 0x28000, scoped, tag = 'scratch operand']
  #allocation3 [shape = 'f32[128,36]{1,0:T(8,128)}', space=vmem, size = 0x10000, scoped, tag = 'scratch operand']
  %s0 = inlined_call_operand.vmem [shape: f32[128,36], index: 0, kind: input, shape index: {}]
  %s1 = inlined_call_operand.vmem [shape: f32[36,16], index: 1, kind: input, shape index: {}]
  %s2 = inlined_call_operand.vmem [shape: f32[1,16], index: 2, kind: input, shape index: {}]
  %s3 = inlined_call_operand.vmem [shape: f32[16,4], index: 3, kind: input, shape index: {}]
  %s4 = inlined_call_operand.vmem [shape: f32[1,4], index: 4, kind: input, shape index: {}]
  %s5 = inlined_call_operand.vmem [shape: f32[36,4], index: 5, kind: input, shape index: {}]
  %s6 = inlined_call_operand.vmem [shape: f32[1,4], index: 6, kind: input, shape index: {}]
  %s7 = inlined_call_operand.vmem [shape: f32[4,16], index: 7, kind: input, shape index: {}]
  %s8 = inlined_call_operand.vmem [shape: f32[1,16], index: 8, kind: input, shape index: {}]
  %s9 = inlined_call_operand.vmem [shape: f32[128,16], index: 9, kind: input, shape index: {}]
  %s10 = inlined_call_operand.vmem [shape: f32[16,4], index: 10, kind: input, shape index: {}]
  %s11 = inlined_call_operand.vmem [shape: f32[1,4], index: 11, kind: input, shape index: {}]
  %s12 = inlined_call_operand.vmem [shape: f32[36,4], index: 12, kind: input, shape index: {}]
  %s13 = inlined_call_operand.vmem [shape: f32[1,4], index: 13, kind: input, shape index: {}]
  %s14 = inlined_call_operand.vmem [shape: f32[4,16], index: 14, kind: input, shape index: {}]
  %s15 = inlined_call_operand.vmem [shape: f32[1,16], index: 15, kind: input, shape index: {}]
  %s16 = inlined_call_operand.vmem [shape: f32[128,16], index: 16, kind: input, shape index: {}]
  %s17 = inlined_call_operand.hbm [shape: f32[128,16], index: 17, kind: output, shape index: {}]
  %s18 = sld [smem:[#allocation0]]
  $region78: #{downblock_forward.1} parent=0
    _
  %s20 = ssub.s32 1, %s18
  %s21 = scalar_select 0, %s20, %s18
  $region1: #{downblock_forward.1} parent=0
    #allocation4 [shape = 'u8[65536]{0}', space=vmem, size = 0x10000, scoped, tag = 'output window, operand 0, single buffered']
    #allocation5 [shape = 's32[1]{0}', space=sflag, size = 0x4, scoped, tag = 'scoped memory for downblock_forward.1']
    %22 = vsyncpa [#allocation5], 0
    // Predicated region
    $region2: #{downblock_forward.1} parent=1 // pred_check
      _
    $region3: #{downblock_forward.1} parent=1 // pred_check_branch
      %24 = sbr.rel (0) target = $region5
    $region4: #{downblock_forward.1} parent=1 // pred_region
      _
    $region5: #{downblock_forward.1} parent=1 // pred_fallthru
      _
    // Predicated region
    $region6: #{downblock_forward.1} parent=1 // pred_check
      _
    $region7: #{downblock_forward.1} parent=1 // pred_check_branch
      %26 = sbr.rel (0) target = $region9
    $region8: #{downblock_forward.1} parent=1 // pred_region
      _
    $region9: #{downblock_forward.1} parent=1 // pred_fallthru
      _
    // Predicated region
    $region10: #{downblock_forward.1} parent=1 // pred_check
      _
    $region11: #{downblock_forward.1} parent=1 // pred_check_branch
      %28 = sbr.rel (0) target = $region13
    $region12: #{downblock_forward.1} parent=1 // pred_region
      _
    $region13: #{downblock_forward.1} parent=1 // pred_fallthru
      _
    // Predicated region
    $region14: #{downblock_forward.1} parent=1 // pred_check
      _
    $region15: #{downblock_forward.1} parent=1 // pred_check_branch
      %30 = sbr.rel (0) target = $region17
    $region16: #{downblock_forward.1} parent=1 // pred_region
      _
    $region17: #{downblock_forward.1} parent=1 // pred_fallthru
      _
    // Predicated region
    $region18: #{downblock_forward.1} parent=1 // pred_check
      _
    $region19: #{downblock_forward.1} parent=1 // pred_check_branch
      %32 = sbr.rel (0) target = $region21
    $region20: #{downblock_forward.1} parent=1 // pred_region
      _
    $region21: #{downblock_forward.1} parent=1 // pred_fallthru
      _
    // Predicated region
    $region22: #{downblock_forward.1} parent=1 // pred_check
      _
    $region23: #{downblock_forward.1} parent=1 // pred_check_branch
      %34 = sbr.rel (0) target = $region25
    $region24: #{downblock_forward.1} parent=1 // pred_region
      _
    $region25: #{downblock_forward.1} parent=1 // pred_fallthru
      _
    // Predicated region
    $region26: #{downblock_forward.1} parent=1 // pred_check
      _
    $region27: #{downblock_forward.1} parent=1 // pred_check_branch
      %36 = sbr.rel (0) target = $region29
    $region28: #{downblock_forward.1} parent=1 // pred_region
      _
    $region29: #{downblock_forward.1} parent=1 // pred_fallthru
      _
    // Predicated region
    $region30: #{downblock_forward.1} parent=1 // pred_check
      _
    $region31: #{downblock_forward.1} parent=1 // pred_check_branch
      %38 = sbr.rel (0) target = $region33
    $region32: #{downblock_forward.1} parent=1 // pred_region
      _
    $region33: #{downblock_forward.1} parent=1 // pred_fallthru
      _
    // Predicated region
    $region34: #{downblock_forward.1} parent=1 // pred_check
      _
    $region35: #{downblock_forward.1} parent=1 // pred_check_branch
      %40 = sbr.rel (0) target = $region37
    $region36: #{downblock_forward.1} parent=1 // pred_region
      _
    $region37: #{downblock_forward.1} parent=1 // pred_fallthru
      _
    // Predicated region
    $region38: #{downblock_forward.1} parent=1 // pred_check
      _
    $region39: #{downblock_forward.1} parent=1 // pred_check_branch
      %42 = sbr.rel (0) target = $region41
    $region40: #{downblock_forward.1} parent=1 // pred_region
      _
    $region41: #{downblock_forward.1} parent=1 // pred_fallthru
      _
    // Predicated region
    $region42: #{downblock_forward.1} parent=1 // pred_check
      _
    $region43: #{downblock_forward.1} parent=1 // pred_check_branch
      %44 = sbr.rel (0) target = $region45
    $region44: #{downblock_forward.1} parent=1 // pred_region
      _
    $region45: #{downblock_forward.1} parent=1 // pred_fallthru
      _
    // Predicated region
    $region46: #{downblock_forward.1} parent=1 // pred_check
      _
    $region47: #{downblock_forward.1} parent=1 // pred_check_branch
      %46 = sbr.rel (0) target = $region49
    $region48: #{downblock_forward.1} parent=1 // pred_region
      _
    $region49: #{downblock_forward.1} parent=1 // pred_fallthru
      _
    // Predicated region
    $region50: #{downblock_forward.1} parent=1 // pred_check
      _
    $region51: #{downblock_forward.1} parent=1 // pred_check_branch
      %48 = sbr.rel (0) target = $region53
    $region52: #{downblock_forward.1} parent=1 // pred_region
      _
    $region53: #{downblock_forward.1} parent=1 // pred_fallthru
      _
    // Predicated region
    $region54: #{downblock_forward.1} parent=1 // pred_check
      _
    $region55: #{downblock_forward.1} parent=1 // pred_check_branch
      %50 = sbr.rel (0) target = $region57
    $region56: #{downblock_forward.1} parent=1 // pred_region
      _
    $region57: #{downblock_forward.1} parent=1 // pred_fallthru
      _
    // Predicated region
    $region58: #{downblock_forward.1} parent=1 // pred_check
      _
    $region59: #{downblock_forward.1} parent=1 // pred_check_branch
      %52 = sbr.rel (0) target = $region61
    $region60: #{downblock_forward.1} parent=1 // pred_region
      _
    $region61: #{downblock_forward.1} parent=1 // pred_fallthru
      _
    // Predicated region
    $region62: #{downblock_forward.1} parent=1 // pred_check
      _
    $region63: #{downblock_forward.1} parent=1 // pred_check_branch
      %54 = sbr.rel (0) target = $region65
    $region64: #{downblock_forward.1} parent=1 // pred_region
      _
    $region65: #{downblock_forward.1} parent=1 // pred_fallthru
      _
    // Predicated region
    $region66: #{downblock_forward.1} parent=1 // pred_check
      _
    $region67: #{downblock_forward.1} parent=1 // pred_check_branch
      %56 = sbr.rel (0) target = $region69
    $region68: #{downblock_forward.1} parent=1 // pred_region
      _
    $region69: #{downblock_forward.1} parent=1 // pred_fallthru
      _
    %v57 = vld [vmem:[%s0] sm:$0xff]
    %v58 = vld [vmem:[%s0 + $0x8] sm:$0xff]
    %v59 = vld [vmem:[%s0 + $0x10] sm:$0xff]
    %v60 = vld [vmem:[%s0 + $0x18] sm:$0xff]
    %v61 = vld [vmem:[%s0 + $0x20] sm:$0xff]
    %v62 = vld [vmem:[%s0 + $0x28] sm:$0xff]
    %v63 = vld [vmem:[%s0 + $0x30] sm:$0xff]
    %v64 = vld [vmem:[%s0 + $0x38] sm:$0xff]
    %v65 = vld [vmem:[%s0 + $0x40] sm:$0xff]
    %v66 = vld [vmem:[%s0 + $0x48] sm:$0xff]
    %v67 = vld [vmem:[%s0 + $0x50] sm:$0xff]
    %v68 = vld [vmem:[%s0 + $0x58] sm:$0xff]
    %v69 = vld [vmem:[%s0 + $0x60] sm:$0xff]
    %v70 = vld [vmem:[%s0 + $0x68] sm:$0xff]
    %v71 = vld [vmem:[%s0 + $0x70] sm:$0xff]
    %v72 = vld [vmem:[%s0 + $0x78] sm:$0xff]
    %v73 = vld [vmem:[%s1] sm:$0xff]
    %v74 = vld [vmem:[%s1 + $0x8] sm:$0xff]
    %v75 = vld [vmem:[%s1 + $0x10] sm:$0xff]
    %v76 = vld [vmem:[%s1 + $0x18] sm:$0xff]
    %v77 = vld [vmem:[%s1 + $0x20] sm:$0xf]
    %v78 = vld [vmem:[%s2] sm:$0x1]
    %v80 = vlaneseq
    %v81 = vshrl.u32 %v80, 7
    %v82 = vsub.s32 0, %v81
    %v83 = vrot.slane %v78, %v82
    %vm85 = vcmask 293888
    %v87 = vsel %vm85, %v57, 0
    %v90 = vsel %vm85, %v58, 0
    %v93 = vsel %vm85, %v59, 0
    %v96 = vsel %vm85, %v60, 0
    %v99 = vsel %vm85, %v61, 0
    %v102 = vsel %vm85, %v62, 0
    %v105 = vsel %vm85, %v63, 0
    %v108 = vsel %vm85, %v64, 0
    %v111 = vsel %vm85, %v65, 0
    %v114 = vsel %vm85, %v66, 0
    %v117 = vsel %vm85, %v67, 0
    %v120 = vsel %vm85, %v68, 0
    %v123 = vsel %vm85, %v69, 0
    %v126 = vsel %vm85, %v70, 0
    %v129 = vsel %vm85, %v71, 0
    %v132 = vsel %vm85, %v72, 0
    %vm134 = vcmask 1043456
    %v136 = vsel %vm134, %v77, 0
    %138 = vmatprep.subr.mxu0 0.0
    %139 = vmatpush1.msra.mxu0 %v73
    %140 = vmatprep.subr.mxu0 0.0
    %141 = vmatpush1.msra.mxu0 %v74
    %142 = vmatprep.subr.mxu0 0.0
    %143 = vmatpush1.msra.mxu0 %v75
    %144 = vmatprep.subr.mxu0 0.0
    %145 = vmatpush1.msra.mxu0 %v76
    %146 = vmatprep.subr.mxu0 0.0
    %147 = vmatpush1.msra.mxu0 %v136
    %148 = vmatprep.subr.mxu0 0.0
    %149 = vmatpush1.msra.mxu0 0.0
    %150 = vmatprep.subr.mxu0 0.0
    %151 = vmatpush1.msra.mxu0 0.0
    %152 = vmatprep.subr.mxu0 0.0
    %153 = vmatpush1.msra.mxu0 0.0
    %154 = vmatprep.subr.mxu0 0.0
    %155 = vmatpush1.msra.mxu0 0.0
    %156 = vmatprep.subr.mxu0 0.0
    %157 = vmatpush1.msra.mxu0 0.0
    %158 = vmatprep.subr.mxu0 0.0
    %159 = vmatpush1.msra.mxu0 0.0
    %160 = vmatprep.subr.mxu0 0.0
    %161 = vmatpush1.msra.mxu0 0.0
    %162 = vmatprep.subr.mxu0 0.0
    %163 = vmatpush1.msra.mxu0 0.0
    %164 = vmatprep.subr.mxu0 0.0
    %165 = vmatpush1.msra.mxu0 0.0
    %166 = vmatprep.subr.mxu0 0.0
    %167 = vmatpush1.msra.mxu0 0.0
    %168 = vmatprep.subr.mxu0 0.0
    %169 = vmatpush1.msra.mxu0 0.0
    %170 = vmatprep.subr.mxu0 0.0
    %171 = vmatpush1.msra.mxu0 0.0
    %172 = vmatprep.subr.mxu0 0.0
    %173 = vmatpush1.msra.mxu0 0.0
    %174 = vmatprep.subr.mxu0 0.0
    %175 = vmatpush1.msra.mxu0 0.0
    %176 = vmatprep.subr.mxu0 0.0
    %177 = vmatpush1.msra.mxu0 0.0
    %178 = vmatprep.subr.mxu0 0.0
    %179 = vmatpush1.msra.mxu0 0.0
    %180 = vmatprep.subr.mxu0 0.0
    %181 = vmatpush1.msra.mxu0 0.0
    %182 = vmatprep.subr.mxu0 0.0
    %183 = vmatpush1.msra.mxu0 0.0
    %184 = vmatprep.subr.mxu0 0.0
    %185 = vmatpush1.msra.mxu0 0.0
    %186 = vmatprep.subr.mxu0 0.0
    %187 = vmatpush1.msra.mxu0 0.0
    %188 = vmatprep.subr.mxu0 0.0
    %189 = vmatpush1.msra.mxu0 0.0
    %190 = vmatprep.subr.mxu0 0.0
    %191 = vmatpush1.msra.mxu0 0.0
    %192 = vmatprep.subr.mxu0 0.0
    %193 = vmatpush1.msra.mxu0 0.0
    %194 = vmatprep.subr.mxu0 0.0
    %195 = vmatpush1.msra.mxu0 0.0
    %196 = vmatprep.subr.mxu0 0.0
    %197 = vmatpush1.msra.mxu0 0.0
    %198 = vmatprep.subr.mxu0 0.0
    %199 = vmatpush1.msra.mxu0 0.0
    %200 = vmatprep.subr.mxu0 0.0
    %201 = vmatpush1.msra.mxu0 0.0
    %202 = vmatprep.mubr.f32.mxu0 0.0
    %203 = vmatmul.mubr.f32.gmra.mrb[0].mxu0 %v87
    %v204 = vpop.f32.mrb[0].mxu0
    %v205 = vadd.f32 %v83, %v204
    %v206 = vpop.f32.mrb[0].mxu0
    %207 = vmatprep.mubr.f32.mxu0 0.0
    %208 = vmatmul.mubr.f32.gmra.mrb[0].mxu0 %v90
    %v209 = vpop.f32.mrb[0].mxu0
    %v210 = vadd.f32 %v83, %v209
    %v211 = vpop.f32.mrb[0].mxu0
    %212 = vmatprep.mubr.f32.mxu0 0.0
    %213 = vmatmul.mubr.f32.gmra.mrb[0].mxu0 %v93
    %v214 = vpop.f32.mrb[0].mxu0
    %v215 = vadd.f32 %v83, %v214
    %v216 = vpop.f32.mrb[0].mxu0
    %217 = vmatprep.mubr.f32.mxu0 0.0
    %218 = vmatmul.mubr.f32.gmra.mrb[0].mxu0 %v96
    %v219 = vpop.f32.mrb[0].mxu0
    %v220 = vadd.f32 %v83, %v219
    %v221 = vpop.f32.mrb[0].mxu0
    %222 = vmatprep.mubr.f32.mxu0 0.0
    %223 = vmatmul.mubr.f32.gmra.mrb[0].mxu0 %v99
    %v224 = vpop.f32.mrb[0].mxu0
    %v225 = vadd.f32 %v83, %v224
    %v226 = vpop.f32.mrb[0].mxu0
    %227 = vmatprep.mubr.f32.mxu0 0.0
    %228 = vmatmul.mubr.f32.gmra.mrb[0].mxu0 %v102
    %v229 = vpop.f32.mrb[0].mxu0
    %v230 = vadd.f32 %v83, %v229
    %v231 = vpop.f32.mrb[0].mxu0
    %232 = vmatprep.mubr.f32.mxu0 0.0
    %233 = vmatmul.mubr.f32.gmra.mrb[0].mxu0 %v105
    %v234 = vpop.f32.mrb[0].mxu0
    %v235 = vadd.f32 %v83, %v234
    %v236 = vpop.f32.mrb[0].mxu0
    %237 = vmatprep.mubr.f32.mxu0 0.0
    %238 = vmatmul.mubr.f32.gmra.mrb[0].mxu0 %v108
    %v239 = vpop.f32.mrb[0].mxu0
    %v240 = vadd.f32 %v83, %v239
    %v241 = vpop.f32.mrb[0].mxu0
    %242 = vmatprep.mubr.f32.mxu0 0.0
    %243 = vmatmul.mubr.f32.gmra.mrb[0].mxu0 %v111
    %v244 = vpop.f32.mrb[0].mxu0
    %v245 = vadd.f32 %v83, %v244
    %v246 = vpop.f32.mrb[0].mxu0
    %247 = vmatprep.mubr.f32.mxu0 0.0
    %248 = vmatmul.mubr.f32.gmra.mrb[0].mxu0 %v114
    %v249 = vpop.f32.mrb[0].mxu0
    %v250 = vadd.f32 %v83, %v249
    %v251 = vpop.f32.mrb[0].mxu0
    %252 = vmatprep.mubr.f32.mxu0 0.0
    %253 = vmatmul.mubr.f32.gmra.mrb[0].mxu0 %v117
    %v254 = vpop.f32.mrb[0].mxu0
    %v255 = vadd.f32 %v83, %v254
    %v256 = vpop.f32.mrb[0].mxu0
    %257 = vmatprep.mubr.f32.mxu0 0.0
    %258 = vmatmul.mubr.f32.gmra.mrb[0].mxu0 %v120
    %v259 = vpop.f32.mrb[0].mxu0
    %v260 = vadd.f32 %v83, %v259
    %v261 = vpop.f32.mrb[0].mxu0
    %262 = vmatprep.mubr.f32.mxu0 0.0
    %263 = vmatmul.mubr.f32.gmra.mrb[0].mxu0 %v123
    %v264 = vpop.f32.mrb[0].mxu0
    %v265 = vadd.f32 %v83, %v264
    %v266 = vpop.f32.mrb[0].mxu0
    %267 = vmatprep.mubr.f32.mxu0 0.0
    %268 = vmatmul.mubr.f32.gmra.mrb[0].mxu0 %v126
    %v269 = vpop.f32.mrb[0].mxu0
    %v270 = vadd.f32 %v83, %v269
    %v271 = vpop.f32.mrb[0].mxu0
    %272 = vmatprep.mubr.f32.mxu0 0.0
    %273 = vmatmul.mubr.f32.gmra.mrb[0].mxu0 %v129
    %v274 = vpop.f32.mrb[0].mxu0
    %v275 = vadd.f32 %v83, %v274
    %v276 = vpop.f32.mrb[0].mxu0
    %277 = vmatprep.mubr.f32.mxu0 0.0
    %278 = vmatmul.mubr.f32.gmra.mrb[0].mxu0 %v132
    %v279 = vpop.f32.mrb[0].mxu0
    %v280 = vadd.f32 %v83, %v279
    %v281 = vpop.f32.mrb[0].mxu0
    %282 = vdwg.mxu0
    %vm283 = vcmask 31744
    %284 = vst.msk [vmem:[#allocation2] sm:$0xff] %vm283, 0.0
    %vm285 = vcmask 25600
    %286 = vst.msk [vmem:[#allocation2 + $0x8] sm:$0x3] %vm285, 0.0
    %287 = vst.msk [vmem:[#allocation2 + $0x10] sm:$0xff] %vm283, 0.0
    %288 = vst.msk [vmem:[#allocation2 + $0x18] sm:$0x3] %vm285, 0.0
    %289 = vst.msk [vmem:[#allocation2 + $0x20] sm:$0xff] %vm283, 0.0
    %290 = vst.msk [vmem:[#allocation2 + $0x28] sm:$0x3] %vm285, 0.0
    %291 = vst.msk [vmem:[#allocation2 + $0x30] sm:$0xff] %vm283, 0.0
    %292 = vst.msk [vmem:[#allocation2 + $0x38] sm:$0x3] %vm285, 0.0
    %293 = vst.msk [vmem:[#allocation2 + $0x40] sm:$0xff] %vm283, 0.0
    %294 = vst.msk [vmem:[#allocation2 + $0x48] sm:$0x3] %vm285, 0.0
    %295 = vst.msk [vmem:[#allocation2 + $0x50] sm:$0xff] %vm283, 0.0
    %296 = vst.msk [vmem:[#allocation2 + $0x58] sm:$0x3] %vm285, 0.0
    %297 = vst.msk [vmem:[#allocation2 + $0x60] sm:$0xff] %vm283, 0.0
    %298 = vst.msk [vmem:[#allocation2 + $0x68] sm:$0x3] %vm285, 0.0
    %299 = vst.msk [vmem:[#allocation2 + $0x70] sm:$0xff] %vm283, 0.0
    %300 = vst.msk [vmem:[#allocation2 + $0x78] sm:$0x3] %vm285, 0.0
    %301 = vst.msk [vmem:[#allocation2 + $0x80] sm:$0xff] %vm283, 0.0
    %302 = vst.msk [vmem:[#allocation2 + $0x88] sm:$0x3] %vm285, 0.0
    %303 = vst.msk [vmem:[#allocation2 + $0x90] sm:$0xff] %vm283, 0.0
    %304 = vst.msk [vmem:[#allocation2 + $0x98] sm:$0x3] %vm285, 0.0
    %305 = vst.msk [vmem:[#allocation2 + $0xa0] sm:$0xff] %vm283, 0.0
    %306 = vst.msk [vmem:[#allocation2 + $0xa8] sm:$0x3] %vm285, 0.0
    %307 = vst.msk [vmem:[#allocation2 + $0xb0] sm:$0xff] %vm283, 0.0
    %308 = vst.msk [vmem:[#allocation2 + $0xb8] sm:$0x3] %vm285, 0.0
    %309 = vst.msk [vmem:[#allocation2 + $0xc0] sm:$0xff] %vm283, 0.0
    %310 = vst.msk [vmem:[#allocation2 + $0xc8] sm:$0x3] %vm285, 0.0
    %311 = vst.msk [vmem:[#allocation2 + $0xd0] sm:$0xff] %vm283, 0.0
    %312 = vst.msk [vmem:[#allocation2 + $0xd8] sm:$0x3] %vm285, 0.0
    %313 = vst.msk [vmem:[#allocation2 + $0xe0] sm:$0xff] %vm283, 0.0
    %314 = vst.msk [vmem:[#allocation2 + $0xe8] sm:$0x3] %vm285, 0.0
    %315 = vst.msk [vmem:[#allocation2 + $0xf0] sm:$0xff] %vm283, 0.0
    %316 = vst.msk [vmem:[#allocation2 + $0xf8] sm:$0x3] %vm285, 0.0
    %317 = vst.msk [vmem:[#allocation2 + $0x100] sm:$0xff] %vm283, 0.0
    %318 = vst.msk [vmem:[#allocation2 + $0x108] sm:$0x3] %vm285, 0.0
    %319 = vst.msk [vmem:[#allocation2 + $0x110] sm:$0xff] %vm283, 0.0
    %320 = vst.msk [vmem:[#allocation2 + $0x118] sm:$0x3] %vm285, 0.0
    %321 = vst.msk [vmem:[#allocation2 + $0x120] sm:$0xff] %vm283, 0.0
    %322 = vst.msk [vmem:[#allocation2 + $0x128] sm:$0x3] %vm285, 0.0
    %323 = vst.msk [vmem:[#allocation2 + $0x130] sm:$0xff] %vm283, 0.0
    %324 = vst.msk [vmem:[#allocation2 + $0x138] sm:$0x3] %vm285, 0.0
    %v325 = vld [vmem:[%s3] sm:$0xff]
    %v326 = vld [vmem:[%s3 + $0x8] sm:$0xff]
    %v327 = vld [vmem:[%s4] sm:$0x1]
    %v329 = vlaneseq
    %v330 = vshrl.u32 %v329, 7
    %v331 = vsub.s32 0, %v330
    %v332 = vrot.slane %v327, %v331
    %vm334 = vcmask 130048
    %v336 = vsel %vm334, %v205, 0
    %v339 = vsel %vm334, %v210, 0
    %v342 = vsel %vm334, %v215, 0
    %v345 = vsel %vm334, %v220, 0
    %v348 = vsel %vm334, %v225, 0
    %v351 = vsel %vm334, %v230, 0
    %v354 = vsel %vm334, %v235, 0
    %v357 = vsel %vm334, %v240, 0
    %v360 = vsel %vm334, %v245, 0
    %v363 = vsel %vm334, %v250, 0
    %v366 = vsel %vm334, %v255, 0
    %v369 = vsel %vm334, %v260, 0
    %v372 = vsel %vm334, %v265, 0
    %v375 = vsel %vm334, %v270, 0
    %v378 = vsel %vm334, %v275, 0
    %v381 = vsel %vm334, %v280, 0
    %383 = vmatprep.subr.mxu0 0.0
    %384 = vmatpush1.msra.mxu0 %v325
    %385 = vmatprep.subr.mxu0 0.0
    %386 = vmatpush1.msra.mxu0 %v326
    %387 = vmatprep.subr.mxu0 0.0
    %388 = vmatpush1.msra.mxu0 0.0
    %389 = vmatprep.subr.mxu0 0.0
    %390 = vmatpush1.msra.mxu0 0.0
    %391 = vmatprep.subr.mxu0 0.0
    %392 = vmatpush1.msra.mxu0 0.0
    %393 = vmatprep.subr.mxu0 0.0
    %394 = vmatpush1.msra.mxu0 0.0
    %395 = vmatprep.subr.mxu0 0.0
    %396 = vmatpush1.msra.mxu0 0.0
    %397 = vmatprep.subr.mxu0 0.0
    %398 = vmatpush1.msra.mxu0 0.0
    %399 = vmatprep.subr.mxu0 0.0
    %400 = vmatpush1.msra.mxu0 0.0
    %401 = vmatprep.subr.mxu0 0.0
    %402 = vmatpush1.msra.mxu0 0.0
    %403 = vmatprep.subr.mxu0 0.0
    %404 = vmatpush1.msra.mxu0 0.0
    %405 = vmatprep.subr.mxu0 0.0
    %406 = vmatpush1.msra.mxu0 0.0
    %407 = vmatprep.subr.mxu0 0.0
    %408 = vmatpush1.msra.mxu0 0.0
    %409 = vmatprep.subr.mxu0 0.0
    %410 = vmatpush1.msra.mxu0 0.0
    %411 = vmatprep.subr.mxu0 0.0
    %412 = vmatpush1.msra.mxu0 0.0
    %413 = vmatprep.subr.mxu0 0.0
    %414 = vmatpush1.msra.mxu0 0.0
    %415 = vmatprep.subr.mxu0 0.0
    %416 = vmatpush1.msra.mxu0 0.0
    %417 = vmatprep.subr.mxu0 0.0
    %418 = vmatpush1.msra.mxu0 0.0
    %419 = vmatprep.subr.mxu0 0.0
    %420 = vmatpush1.msra.mxu0 0.0
    %421 = vmatprep.subr.mxu0 0.0
    %422 = vmatpush1.msra.mxu0 0.0
    %423 = vmatprep.subr.mxu0 0.0
    %424 = vmatpush1.msra.mxu0 0.0
    %425 = vmatprep.subr.mxu0 0.0
    %426 = vmatpush1.msra.mxu0 0.0
    %427 = vmatprep.subr.mxu0 0.0
    %428 = vmatpush1.msra.mxu0 0.0
    %429 = vmatprep.subr.mxu0 0.0
    %430 = vmatpush1.msra.mxu0 0.0
    %431 = vmatprep.subr.mxu0 0.0
    %432 = vmatpush1.msra.mxu0 0.0
    %433 = vmatprep.subr.mxu0 0.0
    %434 = vmatpush1.msra.mxu0 0.0
    %435 = vmatprep.subr.mxu0 0.0
    %436 = vmatpush1.msra.mxu0 0.0
    %437 = vmatprep.subr.mxu0 0.0
    %438 = vmatpush1.msra.mxu0 0.0
    %439 = vmatprep.subr.mxu0 0.0
    %440 = vmatpush1.msra.mxu0 0.0
    %441 = vmatprep.subr.mxu0 0.0
    %442 = vmatpush1.msra.mxu0 0.0
    %443 = vmatprep.subr.mxu0 0.0
    %444 = vmatpush1.msra.mxu0 0.0
    %445 = vmatprep.subr.mxu0 0.0
    %446 = vmatpush1.msra.mxu0 0.0
    %447 = vmatprep.mubr.f32.mxu0 0.0
    %448 = vmatmul.mubr.f32.gmra.mrb[0].mxu0 %v336
    %v449 = vpop.f32.mrb[0].mxu0
    %v450 = vadd.f32 %v332, %v449
    %v451 = vpop.f32.mrb[0].mxu0
    %452 = vmatprep.mubr.f32.mxu0 0.0
    %453 = vmatmul.mubr.f32.gmra.mrb[0].mxu0 %v339
    %v454 = vpop.f32.mrb[0].mxu0
    %v455 = vadd.f32 %v332, %v454
    %v456 = vpop.f32.mrb[0].mxu0
    %457 = vmatprep.mubr.f32.mxu0 0.0
    %458 = vmatmul.mubr.f32.gmra.mrb[0].mxu0 %v342
    %v459 = vpop.f32.mrb[0].mxu0
    %v460 = vadd.f32 %v332, %v459
    %v461 = vpop.f32.mrb[0].mxu0
    %462 = vmatprep.mubr.f32.mxu0 0.0
    %463 = vmatmul.mubr.f32.gmra.mrb[0].mxu0 %v345
    %v464 = vpop.f32.mrb[0].mxu0
    %v465 = vadd.f32 %v332, %v464
    %v466 = vpop.f32.mrb[0].mxu0
    %467 = vmatprep.mubr.f32.mxu0 0.0
    %468 = vmatmul.mubr.f32.gmra.mrb[0].mxu0 %v348
    %v469 = vpop.f32.mrb[0].mxu0
    %v470 = vadd.f32 %v332, %v469
    %v471 = vpop.f32.mrb[0].mxu0
    %472 = vmatprep.mubr.f32.mxu0 0.0
    %473 = vmatmul.mubr.f32.gmra.mrb[0].mxu0 %v351
    %v474 = vpop.f32.mrb[0].mxu0
    %v475 = vadd.f32 %v332, %v474
    %v476 = vpop.f32.mrb[0].mxu0
    %477 = vmatprep.mubr.f32.mxu0 0.0
    %478 = vmatmul.mubr.f32.gmra.mrb[0].mxu0 %v354
    %v479 = vpop.f32.mrb[0].mxu0
    %v480 = vadd.f32 %v332, %v479
    %v481 = vpop.f32.mrb[0].mxu0
    %482 = vmatprep.mubr.f32.mxu0 0.0
    %483 = vmatmul.mubr.f32.gmra.mrb[0].mxu0 %v357
    %v484 = vpop.f32.mrb[0].mxu0
    %v485 = vadd.f32 %v332, %v484
    %v486 = vpop.f32.mrb[0].mxu0
    %487 = vmatprep.mubr.f32.mxu0 0.0
    %488 = vmatmul.mubr.f32.gmra.mrb[0].mxu0 %v360
    %v489 = vpop.f32.mrb[0].mxu0
    %v490 = vadd.f32 %v332, %v489
    %v491 = vpop.f32.mrb[0].mxu0
    %492 = vmatprep.mubr.f32.mxu0 0.0
    %493 = vmatmul.mubr.f32.gmra.mrb[0].mxu0 %v363
    %v494 = vpop.f32.mrb[0].mxu0
    %v495 = vadd.f32 %v332, %v494
    %v496 = vpop.f32.mrb[0].mxu0
    %497 = vmatprep.mubr.f32.mxu0 0.0
    %498 = vmatmul.mubr.f32.gmra.mrb[0].mxu0 %v366
    %v499 = vpop.f32.mrb[0].mxu0
    %v500 = vadd.f32 %v332, %v499
    %v501 = vpop.f32.mrb[0].mxu0
    %502 = vmatprep.mubr.f32.mxu0 0.0
    %503 = vmatmul.mubr.f32.gmra.mrb[0].mxu0 %v369
    %v504 = vpop.f32.mrb[0].mxu0
    %v505 = vadd.f32 %v332, %v504
    %v506 = vpop.f32.mrb[0].mxu0
    %507 = vmatprep.mubr.f32.mxu0 0.0
    %508 = vmatmul.mubr.f32.gmra.mrb[0].mxu0 %v372
    %v509 = vpop.f32.mrb[0].mxu0
    %v510 = vadd.f32 %v332, %v509
    %v511 = vpop.f32.mrb[0].mxu0
    %512 = vmatprep.mubr.f32.mxu0 0.0
    %513 = vmatmul.mubr.f32.gmra.mrb[0].mxu0 %v375
    %v514 = vpop.f32.mrb[0].mxu0
    %v515 = vadd.f32 %v332, %v514
    %v516 = vpop.f32.mrb[0].mxu0
    %517 = vmatprep.mubr.f32.mxu0 0.0
    %518 = vmatmul.mubr.f32.gmra.mrb[0].mxu0 %v378
    %v519 = vpop.f32.mrb[0].mxu0
    %v520 = vadd.f32 %v332, %v519
    %v521 = vpop.f32.mrb[0].mxu0
    %522 = vmatprep.mubr.f32.mxu0 0.0
    %523 = vmatmul.mubr.f32.gmra.mrb[0].mxu0 %v381
    %v524 = vpop.f32.mrb[0].mxu0
    %v525 = vadd.f32 %v332, %v524
    %v526 = vpop.f32.mrb[0].mxu0
    %527 = vdwg.mxu0
    %v528 = vmax.f32 %v450, 0.0
    %v529 = vmax.f32 %v455, 0.0
    %v530 = vmax.f32 %v460, 0.0
    %v531 = vmax.f32 %v465, 0.0
    %v532 = vmax.f32 %v470, 0.0
    %v533 = vmax.f32 %v475, 0.0
    %v534 = vmax.f32 %v480, 0.0
    %v535 = vmax.f32 %v485, 0.0
    %v536 = vmax.f32 %v490, 0.0
    %v537 = vmax.f32 %v495, 0.0
    %v538 = vmax.f32 %v500, 0.0
    %v539 = vmax.f32 %v505, 0.0
    %v540 = vmax.f32 %v510, 0.0
    %v541 = vmax.f32 %v515, 0.0
    %v542 = vmax.f32 %v520, 0.0
    %v543 = vmax.f32 %v525, 0.0
    %s544 = scalar_lea.vmem [#allocation2], 16
    %545 = vst.msk [vmem:[%s544 + $0x1] sm:$0xff] %vm283, %v528
    %546 = vst.msk [vmem:[%s544 + $0x11] sm:$0xff] %vm283, %v529
    %547 = vst.msk [vmem:[%s544 + $0x21] sm:$0xff] %vm283, %v530
    %548 = vst.msk [vmem:[%s544 + $0x31] sm:$0xff] %vm283, %v531
    %549 = vst.msk [vmem:[%s544 + $0x41] sm:$0xff] %vm283, %v532
    %550 = vst.msk [vmem:[%s544 + $0x51] sm:$0xff] %vm283, %v533
    %551 = vst.msk [vmem:[%s544 + $0x61] sm:$0xff] %vm283, %v534
    %552 = vst.msk [vmem:[%s544 + $0x71] sm:$0xff] %vm283, %v535
    %553 = vst.msk [vmem:[%s544 + $0xa1] sm:$0xff] %vm283, %v536
    %554 = vst.msk [vmem:[%s544 + $0xb1] sm:$0xff] %vm283, %v537
    %555 = vst.msk [vmem:[%s544 + $0xc1] sm:$0xff] %vm283, %v538
    %556 = vst.msk [vmem:[%s544 + $0xd1] sm:$0xff] %vm283, %v539
    %557 = vst.msk [vmem:[%s544 + $0xe1] sm:$0xff] %vm283, %v540
    %558 = vst.msk [vmem:[%s544 + $0xf1] sm:$0xff] %vm283, %v541
    %559 = vst.msk [vmem:[%s544 + $0x101] sm:$0xff] %vm283, %v542
    %560 = vst.msk [vmem:[%s544 + $0x111] sm:$0xff] %vm283, %v543
    %v561 = vld [vmem:[#allocation2] sm:$0xff]
    %v562 = vld [vmem:[#allocation2 + $0x10] sm:$0xff]
    %v563 = vld [vmem:[#allocation2 + $0x20] sm:$0xff]
    %v564 = vld [vmem:[#allocation2 + $0x30] sm:$0xff]
    %v565 = vld [vmem:[#allocation2 + $0x40] sm:$0xff]
    %v566 = vld [vmem:[#allocation2 + $0x50] sm:$0xff]
    %v567 = vld [vmem:[#allocation2 + $0x60] sm:$0xff]
    %v568 = vld [vmem:[#allocation2 + $0x70] sm:$0xff]
    %v569 = vld [vmem:[#allocation2 + $0xa0] sm:$0xff]
    %v570 = vld [vmem:[#allocation2 + $0xb0] sm:$0xff]
    %v571 = vld [vmem:[#allocation2 + $0xc0] sm:$0xff]
    %v572 = vld [vmem:[#allocation2 + $0xd0] sm:$0xff]
    %v573 = vld [vmem:[#allocation2 + $0xe0] sm:$0xff]
    %v574 = vld [vmem:[#allocation2 + $0xf0] sm:$0xff]
    %v575 = vld [vmem:[#allocation2 + $0x100] sm:$0xff]
    %v576 = vld [vmem:[#allocation2 + $0x110] sm:$0xff]
    %577 = vst.msk [vmem:[#allocation3] sm:$0xff] %vm283, %v561
    %578 = vst.msk [vmem:[#allocation3 + $0x8] sm:$0xff] %vm283, %v562
    %579 = vst.msk [vmem:[#allocation3 + $0x10] sm:$0xff] %vm283, %v563
    %580 = vst.msk [vmem:[#allocation3 + $0x18] sm:$0xff] %vm283, %v564
    %581 = vst.msk [vmem:[#allocation3 + $0x20] sm:$0xff] %vm283, %v565
    %582 = vst.msk [vmem:[#allocation3 + $0x28] sm:$0xff] %vm283, %v566
    %583 = vst.msk [vmem:[#allocation3 + $0x30] sm:$0xff] %vm283, %v567
    %584 = vst.msk [vmem:[#allocation3 + $0x38] sm:$0xff] %vm283, %v568
    %585 = vst.msk [vmem:[#allocation3 + $0x40] sm:$0xff] %vm283, %v569
    %586 = vst.msk [vmem:[#allocation3 + $0x48] sm:$0xff] %vm283, %v570
    %587 = vst.msk [vmem:[#allocation3 + $0x50] sm:$0xff] %vm283, %v571
    %588 = vst.msk [vmem:[#allocation3 + $0x58] sm:$0xff] %vm283, %v572
    %589 = vst.msk [vmem:[#allocation3 + $0x60] sm:$0xff] %vm283, %v573
    %590 = vst.msk [vmem:[#allocation3 + $0x68] sm:$0xff] %vm283, %v574
    %591 = vst.msk [vmem:[#allocation3 + $0x70] sm:$0xff] %vm283, %v575
    %592 = vst.msk [vmem:[#allocation3 + $0x78] sm:$0xff] %vm283, %v576
    %v593 = vld [vmem:[#allocation2 + $0x1] sm:$0xff]
    %v594 = vld [vmem:[#allocation2 + $0x11] sm:$0xff]
    %v595 = vld [vmem:[#allocation2 + $0x21] sm:$0xff]
    %v596 = vld [vmem:[#allocation2 + $0x31] sm:$0xff]
    %v597 = vld [vmem:[#allocation2 + $0x41] sm:$0xff]
    %v598 = vld [vmem:[#allocation2 + $0x51] sm:$0xff]
    %v599 = vld [vmem:[#allocation2 + $0x61] sm:$0xff]
    %v600 = vld [vmem:[#allocation2 + $0x71] sm:$0xff]
    %v601 = vld [vmem:[#allocation2 + $0xa1] sm:$0xff]
    %v602 = vld [vmem:[#allocation2 + $0xb1] sm:$0xff]
    %v603 = vld [vmem:[#allocation2 + $0xc1] sm:$0xff]
    %v604 = vld [vmem:[#allocation2 + $0xd1] sm:$0xff]
    %v605 = vld [vmem:[#allocation2 + $0xe1] sm:$0xff]
    %v606 = vld [vmem:[#allocation2 + $0xf1] sm:$0xff]
    %v607 = vld [vmem:[#allocation2 + $0x101] sm:$0xff]
    %v608 = vld [vmem:[#allocation2 + $0x111] sm:$0xff]
    %625 = vrot.lane.b32.xlu0 %v593, 4
    %v626 = vpop.permute.xlu0 %625
    %627 = vrot.lane.b32.xlu0 %v594, 4
    %v628 = vpop.permute.xlu0 %627
    %629 = vrot.lane.b32.xlu0 %v595, 4
    %v630 = vpop.permute.xlu0 %629
    %631 = vrot.lane.b32.xlu0 %v596, 4
    %v632 = vpop.permute.xlu0 %631
    %633 = vrot.lane.b32.xlu0 %v597, 4
    %v634 = vpop.permute.xlu0 %633
    %635 = vrot.lane.b32.xlu0 %v598, 4
    %v636 = vpop.permute.xlu0 %635
    %637 = vrot.lane.b32.xlu0 %v599, 4
    %v638 = vpop.permute.xlu0 %637
    %639 = vrot.lane.b32.xlu0 %v600, 4
    %v640 = vpop.permute.xlu0 %639
    %641 = vrot.lane.b32.xlu0 %v601, 4
    %v642 = vpop.permute.xlu0 %641
    %643 = vrot.lane.b32.xlu0 %v602, 4
    %v644 = vpop.permute.xlu0 %643
    %645 = vrot.lane.b32.xlu0 %v603, 4
    %v646 = vpop.permute.xlu0 %645
    %647 = vrot.lane.b32.xlu0 %v604, 4
    %v648 = vpop.permute.xlu0 %647
    %649 = vrot.lane.b32.xlu0 %v605, 4
    %v650 = vpop.permute.xlu0 %649
    %651 = vrot.lane.b32.xlu0 %v606, 4
    %v652 = vpop.permute.xlu0 %651
    %653 = vrot.lane.b32.xlu0 %v607, 4
    %v654 = vpop.permute.xlu0 %653
    %655 = vrot.lane.b32.xlu0 %v608, 4
    %v656 = vpop.permute.xlu0 %655
    %vm673 = vcmask 64544
    %674 = vst.msk [vmem:[#allocation3] sm:$0xff] %vm673, %v626
    %675 = vst.msk [vmem:[#allocation3 + $0x8] sm:$0xff] %vm673, %v628
    %676 = vst.msk [vmem:[#allocation3 + $0x10] sm:$0xff] %vm673, %v630
    %677 = vst.msk [vmem:[#allocation3 + $0x18] sm:$0xff] %vm673, %v632
    %678 = vst.msk [vmem:[#allocation3 + $0x20] sm:$0xff] %vm673, %v634
    %679 = vst.msk [vmem:[#allocation3 + $0x28] sm:$0xff] %vm673, %v636
    %680 = vst.msk [vmem:[#allocation3 + $0x30] sm:$0xff] %vm673, %v638
    %681 = vst.msk [vmem:[#allocation3 + $0x38] sm:$0xff] %vm673, %v640
    %682 = vst.msk [vmem:[#allocation3 + $0x40] sm:$0xff] %vm673, %v642
    %683 = vst.msk [vmem:[#allocation3 + $0x48] sm:$0xff] %vm673, %v644
    %684 = vst.msk [vmem:[#allocation3 + $0x50] sm:$0xff] %vm673, %v646
    %685 = vst.msk [vmem:[#allocation3 + $0x58] sm:$0xff] %vm673, %v648
    %686 = vst.msk [vmem:[#allocation3 + $0x60] sm:$0xff] %vm673, %v650
    %687 = vst.msk [vmem:[#allocation3 + $0x68] sm:$0xff] %vm673, %v652
    %688 = vst.msk [vmem:[#allocation3 + $0x70] sm:$0xff] %vm673, %v654
    %689 = vst.msk [vmem:[#allocation3 + $0x78] sm:$0xff] %vm673, %v656
    %v690 = vld [vmem:[#allocation2 + $0x2] sm:$0xff]
    %v691 = vld [vmem:[#allocation2 + $0x12] sm:$0xff]
    %v692 = vld [vmem:[#allocation2 + $0x22] sm:$0xff]
    %v693 = vld [vmem:[#allocation2 + $0x32] sm:$0xff]
    %v694 = vld [vmem:[#allocation2 + $0x42] sm:$0xff]
    %v695 = vld [vmem:[#allocation2 + $0x52] sm:$0xff]
    %v696 = vld [vmem:[#allocation2 + $0x62] sm:$0xff]
    %v697 = vld [vmem:[#allocation2 + $0x72] sm:$0xff]
    %v698 = vld [vmem:[#allocation2 + $0xa2] sm:$0xff]
    %v699 = vld [vmem:[#allocation2 + $0xb2] sm:$0xff]
    %v700 = vld [vmem:[#allocation2 + $0xc2] sm:$0xff]
    %v701 = vld [vmem:[#allocation2 + $0xd2] sm:$0xff]
    %v702 = vld [vmem:[#allocation2 + $0xe2] sm:$0xff]
    %v703 = vld [vmem:[#allocation2 + $0xf2] sm:$0xff]
    %v704 = vld [vmem:[#allocation2 + $0x102] sm:$0xff]
    %v705 = vld [vmem:[#allocation2 + $0x112] sm:$0xff]
    %722 = vrot.lane.b32.xlu0 %v690, 8
    %v723 = vpop.permute.xlu0 %722
    %724 = vrot.lane.b32.xlu0 %v691, 8
    %v725 = vpop.permute.xlu0 %724
    %726 = vrot.lane.b32.xlu0 %v692, 8
    %v727 = vpop.permute.xlu0 %726
    %728 = vrot.lane.b32.xlu0 %v693, 8
    %v729 = vpop.permute.xlu0 %728
    %730 = vrot.lane.b32.xlu0 %v694, 8
    %v731 = vpop.permute.xlu0 %730
    %732 = vrot.lane.b32.xlu0 %v695, 8
    %v733 = vpop.permute.xlu0 %732
    %734 = vrot.lane.b32.xlu0 %v696, 8
    %v735 = vpop.permute.xlu0 %734
    %736 = vrot.lane.b32.xlu0 %v697, 8
    %v737 = vpop.permute.xlu0 %736
    %738 = vrot.lane.b32.xlu0 %v698, 8
    %v739 = vpop.permute.xlu0 %738
    %740 = vrot.lane.b32.xlu0 %v699, 8
    %v741 = vpop.permute.xlu0 %740
    %742 = vrot.lane.b32.xlu0 %v700, 8
    %v743 = vpop.permute.xlu0 %742
    %744 = vrot.lane.b32.xlu0 %v701, 8
    %v745 = vpop.permute.xlu0 %744
    %746 = vrot.lane.b32.xlu0 %v702, 8
    %v747 = vpop.permute.xlu0 %746
    %748 = vrot.lane.b32.xlu0 %v703, 8
    %v749 = vpop.permute.xlu0 %748
    %750 = vrot.lane.b32.xlu0 %v704, 8
    %v751 = vpop.permute.xlu0 %750
    %752 = vrot.lane.b32.xlu0 %v705, 8
    %v753 = vpop.permute.xlu0 %752
    %vm770 = vcmask 97344
    %771 = vst.msk [vmem:[#allocation3] sm:$0xff] %vm770, %v723
    %772 = vst.msk [vmem:[#allocation3 + $0x8] sm:$0xff] %vm770, %v725
    %773 = vst.msk [vmem:[#allocation3 + $0x10] sm:$0xff] %vm770, %v727
    %774 = vst.msk [vmem:[#allocation3 + $0x18] sm:$0xff] %vm770, %v729
    %775 = vst.msk [vmem:[#allocation3 + $0x20] sm:$0xff] %vm770, %v731
    %776 = vst.msk [vmem:[#allocation3 + $0x28] sm:$0xff] %vm770, %v733
    %777 = vst.msk [vmem:[#allocation3 + $0x30] sm:$0xff] %vm770, %v735
    %778 = vst.msk [vmem:[#allocation3 + $0x38] sm:$0xff] %vm770, %v737
    %779 = vst.msk [vmem:[#allocation3 + $0x40] sm:$0xff] %vm770, %v739
    %780 = vst.msk [vmem:[#allocation3 + $0x48] sm:$0xff] %vm770, %v741
    %781 = vst.msk [vmem:[#allocation3 + $0x50] sm:$0xff] %vm770, %v743
    %782 = vst.msk [vmem:[#allocation3 + $0x58] sm:$0xff] %vm770, %v745
    %783 = vst.msk [vmem:[#allocation3 + $0x60] sm:$0xff] %vm770, %v747
    %784 = vst.msk [vmem:[#allocation3 + $0x68] sm:$0xff] %vm770, %v749
    %785 = vst.msk [vmem:[#allocation3 + $0x70] sm:$0xff] %vm770, %v751
    %786 = vst.msk [vmem:[#allocation3 + $0x78] sm:$0xff] %vm770, %v753
    %v787 = vld [vmem:[%s544] sm:$0xff]
    %v788 = vld [vmem:[%s544 + $0x10] sm:$0xff]
    %v789 = vld [vmem:[%s544 + $0x20] sm:$0xff]
    %v790 = vld [vmem:[%s544 + $0x30] sm:$0xff]
    %v791 = vld [vmem:[%s544 + $0x40] sm:$0xff]
    %v792 = vld [vmem:[%s544 + $0x50] sm:$0xff]
    %v793 = vld [vmem:[%s544 + $0x60] sm:$0xff]
    %v794 = vld [vmem:[%s544 + $0x70] sm:$0xff]
    %v795 = vld [vmem:[%s544 + $0xa0] sm:$0xff]
    %v796 = vld [vmem:[%s544 + $0xb0] sm:$0xff]
    %v797 = vld [vmem:[%s544 + $0xc0] sm:$0xff]
    %v798 = vld [vmem:[%s544 + $0xd0] sm:$0xff]
    %v799 = vld [vmem:[%s544 + $0xe0] sm:$0xff]
    %v800 = vld [vmem:[%s544 + $0xf0] sm:$0xff]
    %v801 = vld [vmem:[%s544 + $0x100] sm:$0xff]
    %v802 = vld [vmem:[%s544 + $0x110] sm:$0xff]
    %819 = vrot.lane.b32.xlu0 %v787, 12
    %v820 = vpop.permute.xlu0 %819
    %821 = vrot.lane.b32.xlu0 %v788, 12
    %v822 = vpop.permute.xlu0 %821
    %823 = vrot.lane.b32.xlu0 %v789, 12
    %v824 = vpop.permute.xlu0 %823
    %825 = vrot.lane.b32.xlu0 %v790, 12
    %v826 = vpop.permute.xlu0 %825
    %827 = vrot.lane.b32.xlu0 %v791, 12
    %v828 = vpop.permute.xlu0 %827
    %829 = vrot.lane.b32.xlu0 %v792, 12
    %v830 = vpop.permute.xlu0 %829
    %831 = vrot.lane.b32.xlu0 %v793, 12
    %v832 = vpop.permute.xlu0 %831
    %833 = vrot.lane.b32.xlu0 %v794, 12
    %v834 = vpop.permute.xlu0 %833
    %835 = vrot.lane.b32.xlu0 %v795, 12
    %v836 = vpop.permute.xlu0 %835
    %837 = vrot.lane.b32.xlu0 %v796, 12
    %v838 = vpop.permute.xlu0 %837
    %839 = vrot.lane.b32.xlu0 %v797, 12
    %v840 = vpop.permute.xlu0 %839
    %841 = vrot.lane.b32.xlu0 %v798, 12
    %v842 = vpop.permute.xlu0 %841
    %843 = vrot.lane.b32.xlu0 %v799, 12
    %v844 = vpop.permute.xlu0 %843
    %845 = vrot.lane.b32.xlu0 %v800, 12
    %v846 = vpop.permute.xlu0 %845
    %847 = vrot.lane.b32.xlu0 %v801, 12
    %v848 = vpop.permute.xlu0 %847
    %849 = vrot.lane.b32.xlu0 %v802, 12
    %v850 = vpop.permute.xlu0 %849
    %vm867 = vcmask 130144
    %868 = vst.msk [vmem:[#allocation3] sm:$0xff] %vm867, %v820
    %869 = vst.msk [vmem:[#allocation3 + $0x8] sm:$0xff] %vm867, %v822
    %870 = vst.msk [vmem:[#allocation3 + $0x10] sm:$0xff] %vm867, %v824
    %871 = vst.msk [vmem:[#allocation3 + $0x18] sm:$0xff] %vm867, %v826
    %872 = vst.msk [vmem:[#allocation3 + $0x20] sm:$0xff] %vm867, %v828
    %873 = vst.msk [vmem:[#allocation3 + $0x28] sm:$0xff] %vm867, %v830
    %874 = vst.msk [vmem:[#allocation3 + $0x30] sm:$0xff] %vm867, %v832
    %875 = vst.msk [vmem:[#allocation3 + $0x38] sm:$0xff] %vm867, %v834
    %876 = vst.msk [vmem:[#allocation3 + $0x40] sm:$0xff] %vm867, %v836
    %877 = vst.msk [vmem:[#allocation3 + $0x48] sm:$0xff] %vm867, %v838
    %878 = vst.msk [vmem:[#allocation3 + $0x50] sm:$0xff] %vm867, %v840
    %879 = vst.msk [vmem:[#allocation3 + $0x58] sm:$0xff] %vm867, %v842
    %880 = vst.msk [vmem:[#allocation3 + $0x60] sm:$0xff] %vm867, %v844
    %881 = vst.msk [vmem:[#allocation3 + $0x68] sm:$0xff] %vm867, %v846
    %882 = vst.msk [vmem:[#allocation3 + $0x70] sm:$0xff] %vm867, %v848
    %883 = vst.msk [vmem:[#allocation3 + $0x78] sm:$0xff] %vm867, %v850
    %v884 = vld [vmem:[%s544 + $0x1] sm:$0xff]
    %v885 = vld [vmem:[%s544 + $0x11] sm:$0xff]
    %v886 = vld [vmem:[%s544 + $0x21] sm:$0xff]
    %v887 = vld [vmem:[%s544 + $0x31] sm:$0xff]
    %v888 = vld [vmem:[%s544 + $0x41] sm:$0xff]
    %v889 = vld [vmem:[%s544 + $0x51] sm:$0xff]
    %v890 = vld [vmem:[%s544 + $0x61] sm:$0xff]
    %v891 = vld [vmem:[%s544 + $0x71] sm:$0xff]
    %v892 = vld [vmem:[%s544 + $0xa1] sm:$0xff]
    %v893 = vld [vmem:[%s544 + $0xb1] sm:$0xff]
    %v894 = vld [vmem:[%s544 + $0xc1] sm:$0xff]
    %v895 = vld [vmem:[%s544 + $0xd1] sm:$0xff]
    %v896 = vld [vmem:[%s544 + $0xe1] sm:$0xff]
    %v897 = vld [vmem:[%s544 + $0xf1] sm:$0xff]
    %v898 = vld [vmem:[%s544 + $0x101] sm:$0xff]
    %v899 = vld [vmem:[%s544 + $0x111] sm:$0xff]
    %916 = vrot.lane.b32.xlu0 %v884, 16
    %v917 = vpop.permute.xlu0 %916
    %918 = vrot.lane.b32.xlu0 %v885, 16
    %v919 = vpop.permute.xlu0 %918
    %920 = vrot.lane.b32.xlu0 %v886, 16
    %v921 = vpop.permute.xlu0 %920
    %922 = vrot.lane.b32.xlu0 %v887, 16
    %v923 = vpop.permute.xlu0 %922
    %924 = vrot.lane.b32.xlu0 %v888, 16
    %v925 = vpop.permute.xlu0 %924
    %926 = vrot.lane.b32.xlu0 %v889, 16
    %v927 = vpop.permute.xlu0 %926
    %928 = vrot.lane.b32.xlu0 %v890, 16
    %v929 = vpop.permute.xlu0 %928
    %930 = vrot.lane.b32.xlu0 %v891, 16
    %v931 = vpop.permute.xlu0 %930
    %932 = vrot.lane.b32.xlu0 %v892, 16
    %v933 = vpop.permute.xlu0 %932
    %934 = vrot.lane.b32.xlu0 %v893, 16
    %v935 = vpop.permute.xlu0 %934
    %936 = vrot.lane.b32.xlu0 %v894, 16
    %v937 = vpop.permute.xlu0 %936
    %938 = vrot.lane.b32.xlu0 %v895, 16
    %v939 = vpop.permute.xlu0 %938
    %940 = vrot.lane.b32.xlu0 %v896, 16
    %v941 = vpop.permute.xlu0 %940
    %942 = vrot.lane.b32.xlu0 %v897, 16
    %v943 = vpop.permute.xlu0 %942
    %944 = vrot.lane.b32.xlu0 %v898, 16
    %v945 = vpop.permute.xlu0 %944
    %946 = vrot.lane.b32.xlu0 %v899, 16
    %v947 = vpop.permute.xlu0 %946
    %vm964 = vcmask 162944
    %965 = vst.msk [vmem:[#allocation3] sm:$0xff] %vm964, %v917
    %966 = vst.msk [vmem:[#allocation3 + $0x8] sm:$0xff] %vm964, %v919
    %967 = vst.msk [vmem:[#allocation3 + $0x10] sm:$0xff] %vm964, %v921
    %968 = vst.msk [vmem:[#allocation3 + $0x18] sm:$0xff] %vm964, %v923
    %969 = vst.msk [vmem:[#allocation3 + $0x20] sm:$0xff] %vm964, %v925
    %970 = vst.msk [vmem:[#allocation3 + $0x28] sm:$0xff] %vm964, %v927
    %971 = vst.msk [vmem:[#allocation3 + $0x30] sm:$0xff] %vm964, %v929
    %972 = vst.msk [vmem:[#allocation3 + $0x38] sm:$0xff] %vm964, %v931
    %973 = vst.msk [vmem:[#allocation3 + $0x40] sm:$0xff] %vm964, %v933
    %974 = vst.msk [vmem:[#allocation3 + $0x48] sm:$0xff] %vm964, %v935
    %975 = vst.msk [vmem:[#allocation3 + $0x50] sm:$0xff] %vm964, %v937
    %976 = vst.msk [vmem:[#allocation3 + $0x58] sm:$0xff] %vm964, %v939
    %977 = vst.msk [vmem:[#allocation3 + $0x60] sm:$0xff] %vm964, %v941
    %978 = vst.msk [vmem:[#allocation3 + $0x68] sm:$0xff] %vm964, %v943
    %979 = vst.msk [vmem:[#allocation3 + $0x70] sm:$0xff] %vm964, %v945
    %980 = vst.msk [vmem:[#allocation3 + $0x78] sm:$0xff] %vm964, %v947
    %v981 = vld [vmem:[%s544 + $0x2] sm:$0xff]
    %v982 = vld [vmem:[%s544 + $0x12] sm:$0xff]
    %v983 = vld [vmem:[%s544 + $0x22] sm:$0xff]
    %v984 = vld [vmem:[%s544 + $0x32] sm:$0xff]
    %v985 = vld [vmem:[%s544 + $0x42] sm:$0xff]
    %v986 = vld [vmem:[%s544 + $0x52] sm:$0xff]
    %v987 = vld [vmem:[%s544 + $0x62] sm:$0xff]
    %v988 = vld [vmem:[%s544 + $0x72] sm:$0xff]
    %v989 = vld [vmem:[%s544 + $0xa2] sm:$0xff]
    %v990 = vld [vmem:[%s544 + $0xb2] sm:$0xff]
    %v991 = vld [vmem:[%s544 + $0xc2] sm:$0xff]
    %v992 = vld [vmem:[%s544 + $0xd2] sm:$0xff]
    %v993 = vld [vmem:[%s544 + $0xe2] sm:$0xff]
    %v994 = vld [vmem:[%s544 + $0xf2] sm:$0xff]
    %v995 = vld [vmem:[%s544 + $0x102] sm:$0xff]
    %v996 = vld [vmem:[%s544 + $0x112] sm:$0xff]
    %1013 = vrot.lane.b32.xlu0 %v981, 20
    %v1014 = vpop.permute.xlu0 %1013
    %1015 = vrot.lane.b32.xlu0 %v982, 20
    %v1016 = vpop.permute.xlu0 %1015
    %1017 = vrot.lane.b32.xlu0 %v983, 20
    %v1018 = vpop.permute.xlu0 %1017
    %1019 = vrot.lane.b32.xlu0 %v984, 20
    %v1020 = vpop.permute.xlu0 %1019
    %1021 = vrot.lane.b32.xlu0 %v985, 20
    %v1022 = vpop.permute.xlu0 %1021
    %1023 = vrot.lane.b32.xlu0 %v986, 20
    %v1024 = vpop.permute.xlu0 %1023
    %1025 = vrot.lane.b32.xlu0 %v987, 20
    %v1026 = vpop.permute.xlu0 %1025
    %1027 = vrot.lane.b32.xlu0 %v988, 20
    %v1028 = vpop.permute.xlu0 %1027
    %1029 = vrot.lane.b32.xlu0 %v989, 20
    %v1030 = vpop.permute.xlu0 %1029
    %1031 = vrot.lane.b32.xlu0 %v990, 20
    %v1032 = vpop.permute.xlu0 %1031
    %1033 = vrot.lane.b32.xlu0 %v991, 20
    %v1034 = vpop.permute.xlu0 %1033
    %1035 = vrot.lane.b32.xlu0 %v992, 20
    %v1036 = vpop.permute.xlu0 %1035
    %1037 = vrot.lane.b32.xlu0 %v993, 20
    %v1038 = vpop.permute.xlu0 %1037
    %1039 = vrot.lane.b32.xlu0 %v994, 20
    %v1040 = vpop.permute.xlu0 %1039
    %1041 = vrot.lane.b32.xlu0 %v995, 20
    %v1042 = vpop.permute.xlu0 %1041
    %1043 = vrot.lane.b32.xlu0 %v996, 20
    %v1044 = vpop.permute.xlu0 %1043
    %vm1061 = vcmask 195744
    %1062 = vst.msk [vmem:[#allocation3] sm:$0xff] %vm1061, %v1014
    %1063 = vst.msk [vmem:[#allocation3 + $0x8] sm:$0xff] %vm1061, %v1016
    %1064 = vst.msk [vmem:[#allocation3 + $0x10] sm:$0xff] %vm1061, %v1018
    %1065 = vst.msk [vmem:[#allocation3 + $0x18] sm:$0xff] %vm1061, %v1020
    %1066 = vst.msk [vmem:[#allocation3 + $0x20] sm:$0xff] %vm1061, %v1022
    %1067 = vst.msk [vmem:[#allocation3 + $0x28] sm:$0xff] %vm1061, %v1024
    %1068 = vst.msk [vmem:[#allocation3 + $0x30] sm:$0xff] %vm1061, %v1026
    %1069 = vst.msk [vmem:[#allocation3 + $0x38] sm:$0xff] %vm1061, %v1028
    %1070 = vst.msk [vmem:[#allocation3 + $0x40] sm:$0xff] %vm1061, %v1030
    %1071 = vst.msk [vmem:[#allocation3 + $0x48] sm:$0xff] %vm1061, %v1032
    %1072 = vst.msk [vmem:[#allocation3 + $0x50] sm:$0xff] %vm1061, %v1034
    %1073 = vst.msk [vmem:[#allocation3 + $0x58] sm:$0xff] %vm1061, %v1036
    %1074 = vst.msk [vmem:[#allocation3 + $0x60] sm:$0xff] %vm1061, %v1038
    %1075 = vst.msk [vmem:[#allocation3 + $0x68] sm:$0xff] %vm1061, %v1040
    %1076 = vst.msk [vmem:[#allocation3 + $0x70] sm:$0xff] %vm1061, %v1042
    %1077 = vst.msk [vmem:[#allocation3 + $0x78] sm:$0xff] %vm1061, %v1044
    %s1078 = scalar_lea.vmem [#allocation2], 32
    %v1079 = vld [vmem:[%s1078] sm:$0xff]
    %v1080 = vld [vmem:[%s1078 + $0x10] sm:$0xff]
    %v1081 = vld [vmem:[%s1078 + $0x20] sm:$0xff]
    %v1082 = vld [vmem:[%s1078 + $0x30] sm:$0xff]
    %v1083 = vld [vmem:[%s1078 + $0x40] sm:$0xff]
    %v1084 = vld [vmem:[%s1078 + $0x50] sm:$0xff]
    %v1085 = vld [vmem:[%s1078 + $0x60] sm:$0xff]
    %v1086 = vld [vmem:[%s1078 + $0x70] sm:$0xff]
    %v1087 = vld [vmem:[%s1078 + $0xa0] sm:$0xff]
    %v1088 = vld [vmem:[%s1078 + $0xb0] sm:$0xff]
    %v1089 = vld [vmem:[%s1078 + $0xc0] sm:$0xff]
    %v1090 = vld [vmem:[%s1078 + $0xd0] sm:$0xff]
    %v1091 = vld [vmem:[%s1078 + $0xe0] sm:$0xff]
    %v1092 = vld [vmem:[%s1078 + $0xf0] sm:$0xff]
    %v1093 = vld [vmem:[%s1078 + $0x100] sm:$0xff]
    %v1094 = vld [vmem:[%s1078 + $0x110] sm:$0xff]
    %1111 = vrot.lane.b32.xlu0 %v1079, 24
    %v1112 = vpop.permute.xlu0 %1111
    %1113 = vrot.lane.b32.xlu0 %v1080, 24
    %v1114 = vpop.permute.xlu0 %1113
    %1115 = vrot.lane.b32.xlu0 %v1081, 24
    %v1116 = vpop.permute.xlu0 %1115
    %1117 = vrot.lane.b32.xlu0 %v1082, 24
    %v1118 = vpop.permute.xlu0 %1117
    %1119 = vrot.lane.b32.xlu0 %v1083, 24
    %v1120 = vpop.permute.xlu0 %1119
    %1121 = vrot.lane.b32.xlu0 %v1084, 24
    %v1122 = vpop.permute.xlu0 %1121
    %1123 = vrot.lane.b32.xlu0 %v1085, 24
    %v1124 = vpop.permute.xlu0 %1123
    %1125 = vrot.lane.b32.xlu0 %v1086, 24
    %v1126 = vpop.permute.xlu0 %1125
    %1127 = vrot.lane.b32.xlu0 %v1087, 24
    %v1128 = vpop.permute.xlu0 %1127
    %1129 = vrot.lane.b32.xlu0 %v1088, 24
    %v1130 = vpop.permute.xlu0 %1129
    %1131 = vrot.lane.b32.xlu0 %v1089, 24
    %v1132 = vpop.permute.xlu0 %1131
    %1133 = vrot.lane.b32.xlu0 %v1090, 24
    %v1134 = vpop.permute.xlu0 %1133
    %1135 = vrot.lane.b32.xlu0 %v1091, 24
    %v1136 = vpop.permute.xlu0 %1135
    %1137 = vrot.lane.b32.xlu0 %v1092, 24
    %v1138 = vpop.permute.xlu0 %1137
    %1139 = vrot.lane.b32.xlu0 %v1093, 24
    %v1140 = vpop.permute.xlu0 %1139
    %1141 = vrot.lane.b32.xlu0 %v1094, 24
    %v1142 = vpop.permute.xlu0 %1141
    %vm1159 = vcmask 228544
    %1160 = vst.msk [vmem:[#allocation3] sm:$0xff] %vm1159, %v1112
    %1161 = vst.msk [vmem:[#allocation3 + $0x8] sm:$0xff] %vm1159, %v1114
    %1162 = vst.msk [vmem:[#allocation3 + $0x10] sm:$0xff] %vm1159, %v1116
    %1163 = vst.msk [vmem:[#allocation3 + $0x18] sm:$0xff] %vm1159, %v1118
    %1164 = vst.msk [vmem:[#allocation3 + $0x20] sm:$0xff] %vm1159, %v1120
    %1165 = vst.msk [vmem:[#allocation3 + $0x28] sm:$0xff] %vm1159, %v1122
    %1166 = vst.msk [vmem:[#allocation3 + $0x30] sm:$0xff] %vm1159, %v1124
    %1167 = vst.msk [vmem:[#allocation3 + $0x38] sm:$0xff] %vm1159, %v1126
    %1168 = vst.msk [vmem:[#allocation3 + $0x40] sm:$0xff] %vm1159, %v1128
    %1169 = vst.msk [vmem:[#allocation3 + $0x48] sm:$0xff] %vm1159, %v1130
    %1170 = vst.msk [vmem:[#allocation3 + $0x50] sm:$0xff] %vm1159, %v1132
    %1171 = vst.msk [vmem:[#allocation3 + $0x58] sm:$0xff] %vm1159, %v1134
    %1172 = vst.msk [vmem:[#allocation3 + $0x60] sm:$0xff] %vm1159, %v1136
    %1173 = vst.msk [vmem:[#allocation3 + $0x68] sm:$0xff] %vm1159, %v1138
    %1174 = vst.msk [vmem:[#allocation3 + $0x70] sm:$0xff] %vm1159, %v1140
    %1175 = vst.msk [vmem:[#allocation3 + $0x78] sm:$0xff] %vm1159, %v1142
    %v1176 = vld [vmem:[%s1078 + $0x1] sm:$0xff]
    %v1177 = vld [vmem:[%s1078 + $0x11] sm:$0xff]
    %v1178 = vld [vmem:[%s1078 + $0x21] sm:$0xff]
    %v1179 = vld [vmem:[%s1078 + $0x31] sm:$0xff]
    %v1180 = vld [vmem:[%s1078 + $0x41] sm:$0xff]
    %v1181 = vld [vmem:[%s1078 + $0x51] sm:$0xff]
    %v1182 = vld [vmem:[%s1078 + $0x61] sm:$0xff]
    %v1183 = vld [vmem:[%s1078 + $0x71] sm:$0xff]
    %v1184 = vld [vmem:[%s1078 + $0xa1] sm:$0xff]
    %v1185 = vld [vmem:[%s1078 + $0xb1] sm:$0xff]
    %v1186 = vld [vmem:[%s1078 + $0xc1] sm:$0xff]
    %v1187 = vld [vmem:[%s1078 + $0xd1] sm:$0xff]
    %v1188 = vld [vmem:[%s1078 + $0xe1] sm:$0xff]
    %v1189 = vld [vmem:[%s1078 + $0xf1] sm:$0xff]
    %v1190 = vld [vmem:[%s1078 + $0x101] sm:$0xff]
    %v1191 = vld [vmem:[%s1078 + $0x111] sm:$0xff]
    %1208 = vrot.lane.b32.xlu0 %v1176, 28
    %v1209 = vpop.permute.xlu0 %1208
    %1210 = vrot.lane.b32.xlu0 %v1177, 28
    %v1211 = vpop.permute.xlu0 %1210
    %1212 = vrot.lane.b32.xlu0 %v1178, 28
    %v1213 = vpop.permute.xlu0 %1212
    %1214 = vrot.lane.b32.xlu0 %v1179, 28
    %v1215 = vpop.permute.xlu0 %1214
    %1216 = vrot.lane.b32.xlu0 %v1180, 28
    %v1217 = vpop.permute.xlu0 %1216
    %1218 = vrot.lane.b32.xlu0 %v1181, 28
    %v1219 = vpop.permute.xlu0 %1218
    %1220 = vrot.lane.b32.xlu0 %v1182, 28
    %v1221 = vpop.permute.xlu0 %1220
    %1222 = vrot.lane.b32.xlu0 %v1183, 28
    %v1223 = vpop.permute.xlu0 %1222
    %1224 = vrot.lane.b32.xlu0 %v1184, 28
    %v1225 = vpop.permute.xlu0 %1224
    %1226 = vrot.lane.b32.xlu0 %v1185, 28
    %v1227 = vpop.permute.xlu0 %1226
    %1228 = vrot.lane.b32.xlu0 %v1186, 28
    %v1229 = vpop.permute.xlu0 %1228
    %1230 = vrot.lane.b32.xlu0 %v1187, 28
    %v1231 = vpop.permute.xlu0 %1230
    %1232 = vrot.lane.b32.xlu0 %v1188, 28
    %v1233 = vpop.permute.xlu0 %1232
    %1234 = vrot.lane.b32.xlu0 %v1189, 28
    %v1235 = vpop.permute.xlu0 %1234
    %1236 = vrot.lane.b32.xlu0 %v1190, 28
    %v1237 = vpop.permute.xlu0 %1236
    %1238 = vrot.lane.b32.xlu0 %v1191, 28
    %v1239 = vpop.permute.xlu0 %1238
    %vm1256 = vcmask 261344
    %1257 = vst.msk [vmem:[#allocation3] sm:$0xff] %vm1256, %v1209
    %1258 = vst.msk [vmem:[#allocation3 + $0x8] sm:$0xff] %vm1256, %v1211
    %1259 = vst.msk [vmem:[#allocation3 + $0x10] sm:$0xff] %vm1256, %v1213
    %1260 = vst.msk [vmem:[#allocation3 + $0x18] sm:$0xff] %vm1256, %v1215
    %1261 = vst.msk [vmem:[#allocation3 + $0x20] sm:$0xff] %vm1256, %v1217
    %1262 = vst.msk [vmem:[#allocation3 + $0x28] sm:$0xff] %vm1256, %v1219
    %1263 = vst.msk [vmem:[#allocation3 + $0x30] sm:$0xff] %vm1256, %v1221
    %1264 = vst.msk [vmem:[#allocation3 + $0x38] sm:$0xff] %vm1256, %v1223
    %1265 = vst.msk [vmem:[#allocation3 + $0x40] sm:$0xff] %vm1256, %v1225
    %1266 = vst.msk [vmem:[#allocation3 + $0x48] sm:$0xff] %vm1256, %v1227
    %1267 = vst.msk [vmem:[#allocation3 + $0x50] sm:$0xff] %vm1256, %v1229
    %1268 = vst.msk [vmem:[#allocation3 + $0x58] sm:$0xff] %vm1256, %v1231
    %1269 = vst.msk [vmem:[#allocation3 + $0x60] sm:$0xff] %vm1256, %v1233
    %1270 = vst.msk [vmem:[#allocation3 + $0x68] sm:$0xff] %vm1256, %v1235
    %1271 = vst.msk [vmem:[#allocation3 + $0x70] sm:$0xff] %vm1256, %v1237
    %1272 = vst.msk [vmem:[#allocation3 + $0x78] sm:$0xff] %vm1256, %v1239
    %v1273 = vld [vmem:[%s1078 + $0x2] sm:$0xff]
    %v1274 = vld [vmem:[%s1078 + $0x12] sm:$0xff]
    %v1275 = vld [vmem:[%s1078 + $0x22] sm:$0xff]
    %v1276 = vld [vmem:[%s1078 + $0x32] sm:$0xff]
    %v1277 = vld [vmem:[%s1078 + $0x42] sm:$0xff]
    %v1278 = vld [vmem:[%s1078 + $0x52] sm:$0xff]
    %v1279 = vld [vmem:[%s1078 + $0x62] sm:$0xff]
    %v1280 = vld [vmem:[%s1078 + $0x72] sm:$0xff]
    %v1281 = vld [vmem:[%s1078 + $0xa2] sm:$0xff]
    %v1282 = vld [vmem:[%s1078 + $0xb2] sm:$0xff]
    %v1283 = vld [vmem:[%s1078 + $0xc2] sm:$0xff]
    %v1284 = vld [vmem:[%s1078 + $0xd2] sm:$0xff]
    %v1285 = vld [vmem:[%s1078 + $0xe2] sm:$0xff]
    %v1286 = vld [vmem:[%s1078 + $0xf2] sm:$0xff]
    %v1287 = vld [vmem:[%s1078 + $0x102] sm:$0xff]
    %v1288 = vld [vmem:[%s1078 + $0x112] sm:$0xff]
    %1305 = vrot.lane.b32.xlu0 %v1273, 32
    %v1306 = vpop.permute.xlu0 %1305
    %1307 = vrot.lane.b32.xlu0 %v1274, 32
    %v1308 = vpop.permute.xlu0 %1307
    %1309 = vrot.lane.b32.xlu0 %v1275, 32
    %v1310 = vpop.permute.xlu0 %1309
    %1311 = vrot.lane.b32.xlu0 %v1276, 32
    %v1312 = vpop.permute.xlu0 %1311
    %1313 = vrot.lane.b32.xlu0 %v1277, 32
    %v1314 = vpop.permute.xlu0 %1313
    %1315 = vrot.lane.b32.xlu0 %v1278, 32
    %v1316 = vpop.permute.xlu0 %1315
    %1317 = vrot.lane.b32.xlu0 %v1279, 32
    %v1318 = vpop.permute.xlu0 %1317
    %1319 = vrot.lane.b32.xlu0 %v1280, 32
    %v1320 = vpop.permute.xlu0 %1319
    %1321 = vrot.lane.b32.xlu0 %v1281, 32
    %v1322 = vpop.permute.xlu0 %1321
    %1323 = vrot.lane.b32.xlu0 %v1282, 32
    %v1324 = vpop.permute.xlu0 %1323
    %1325 = vrot.lane.b32.xlu0 %v1283, 32
    %v1326 = vpop.permute.xlu0 %1325
    %1327 = vrot.lane.b32.xlu0 %v1284, 32
    %v1328 = vpop.permute.xlu0 %1327
    %1329 = vrot.lane.b32.xlu0 %v1285, 32
    %v1330 = vpop.permute.xlu0 %1329
    %1331 = vrot.lane.b32.xlu0 %v1286, 32
    %v1332 = vpop.permute.xlu0 %1331
    %1333 = vrot.lane.b32.xlu0 %v1287, 32
    %v1334 = vpop.permute.xlu0 %1333
    %1335 = vrot.lane.b32.xlu0 %v1288, 32
    %v1336 = vpop.permute.xlu0 %1335
    %vm1353 = vcmask 294144
    %1354 = vst.msk [vmem:[#allocation3] sm:$0xff] %vm1353, %v1306
    %1355 = vst.msk [vmem:[#allocation3 + $0x8] sm:$0xff] %vm1353, %v1308
    %1356 = vst.msk [vmem:[#allocation3 + $0x10] sm:$0xff] %vm1353, %v1310
    %1357 = vst.msk [vmem:[#allocation3 + $0x18] sm:$0xff] %vm1353, %v1312
    %1358 = vst.msk [vmem:[#allocation3 + $0x20] sm:$0xff] %vm1353, %v1314
    %1359 = vst.msk [vmem:[#allocation3 + $0x28] sm:$0xff] %vm1353, %v1316
    %1360 = vst.msk [vmem:[#allocation3 + $0x30] sm:$0xff] %vm1353, %v1318
    %1361 = vst.msk [vmem:[#allocation3 + $0x38] sm:$0xff] %vm1353, %v1320
    %1362 = vst.msk [vmem:[#allocation3 + $0x40] sm:$0xff] %vm1353, %v1322
    %1363 = vst.msk [vmem:[#allocation3 + $0x48] sm:$0xff] %vm1353, %v1324
    %1364 = vst.msk [vmem:[#allocation3 + $0x50] sm:$0xff] %vm1353, %v1326
    %1365 = vst.msk [vmem:[#allocation3 + $0x58] sm:$0xff] %vm1353, %v1328
    %1366 = vst.msk [vmem:[#allocation3 + $0x60] sm:$0xff] %vm1353, %v1330
    %1367 = vst.msk [vmem:[#allocation3 + $0x68] sm:$0xff] %vm1353, %v1332
    %1368 = vst.msk [vmem:[#allocation3 + $0x70] sm:$0xff] %vm1353, %v1334
    %1369 = vst.msk [vmem:[#allocation3 + $0x78] sm:$0xff] %vm1353, %v1336
    %v1370 = vld [vmem:[#allocation3] sm:$0xff]
    %v1371 = vld [vmem:[#allocation3 + $0x8] sm:$0xff]
    %v1372 = vld [vmem:[#allocation3 + $0x10] sm:$0xff]
    %v1373 = vld [vmem:[#allocation3 + $0x18] sm:$0xff]
    %v1374 = vld [vmem:[#allocation3 + $0x20] sm:$0xff]
    %v1375 = vld [vmem:[#allocation3 + $0x28] sm:$0xff]
    %v1376 = vld [vmem:[#allocation3 + $0x30] sm:$0xff]
    %v1377 = vld [vmem:[#allocation3 + $0x38] sm:$0xff]
    %v1378 = vld [vmem:[#allocation3 + $0x40] sm:$0xff]
    %v1379 = vld [vmem:[#allocation3 + $0x48] sm:$0xff]
    %v1380 = vld [vmem:[#allocation3 + $0x50] sm:$0xff]
    %v1381 = vld [vmem:[#allocation3 + $0x58] sm:$0xff]
    %v1382 = vld [vmem:[#allocation3 + $0x60] sm:$0xff]
    %v1383 = vld [vmem:[#allocation3 + $0x68] sm:$0xff]
    %v1384 = vld [vmem:[#allocation3 + $0x70] sm:$0xff]
    %v1385 = vld [vmem:[#allocation3 + $0x78] sm:$0xff]
    %v1386 = vld [vmem:[%s5] sm:$0xff]
    %v1387 = vld [vmem:[%s5 + $0x8] sm:$0xff]
    %v1388 = vld [vmem:[%s5 + $0x10] sm:$0xff]
    %v1389 = vld [vmem:[%s5 + $0x18] sm:$0xff]
    %v1390 = vld [vmem:[%s5 + $0x20] sm:$0xf]
    %v1391 = vld [vmem:[%s6] sm:$0x1]
    %v1393 = vlaneseq
    %v1394 = vshrl.u32 %v1393, 7
    %v1395 = vsub.s32 0, %v1394
    %v1396 = vrot.slane %v1391, %v1395
    %v1399 = vsel %vm85, %v1370, 0
    %v1402 = vsel %vm85, %v1371, 0
    %v1405 = vsel %vm85, %v1372, 0
    %v1408 = vsel %vm85, %v1373, 0
    %v1411 = vsel %vm85, %v1374, 0
    %v1414 = vsel %vm85, %v1375, 0
    %v1417 = vsel %vm85, %v1376, 0
    %v1420 = vsel %vm85, %v1377, 0
    %v1423 = vsel %vm85, %v1378, 0
    %v1426 = vsel %vm85, %v1379, 0
    %v1429 = vsel %vm85, %v1380, 0
    %v1432 = vsel %vm85, %v1381, 0
    %v1435 = vsel %vm85, %v1382, 0
    %v1438 = vsel %vm85, %v1383, 0
    %v1441 = vsel %vm85, %v1384, 0
    %v1444 = vsel %vm85, %v1385, 0
    %v1447 = vsel %vm134, %v1390, 0
    %1449 = vmatprep.subr.mxu0 0.0
    %1450 = vmatpush1.msra.mxu0 %v1386
    %1451 = vmatprep.subr.mxu0 0.0
    %1452 = vmatpush1.msra.mxu0 %v1387
    %1453 = vmatprep.subr.mxu0 0.0
    %1454 = vmatpush1.msra.mxu0 %v1388
    %1455 = vmatprep.subr.mxu0 0.0
    %1456 = vmatpush1.msra.mxu0 %v1389
    %1457 = vmatprep.subr.mxu0 0.0
    %1458 = vmatpush1.msra.mxu0 %v1447
    %1459 = vmatprep.subr.mxu0 0.0
    %1460 = vmatpush1.msra.mxu0 0.0
    %1461 = vmatprep.subr.mxu0 0.0
    %1462 = vmatpush1.msra.mxu0 0.0
    %1463 = vmatprep.subr.mxu0 0.0
    %1464 = vmatpush1.msra.mxu0 0.0
    %1465 = vmatprep.subr.mxu0 0.0
    %1466 = vmatpush1.msra.mxu0 0.0
    %1467 = vmatprep.subr.mxu0 0.0
    %1468 = vmatpush1.msra.mxu0 0.0
    %1469 = vmatprep.subr.mxu0 0.0
    %1470 = vmatpush1.msra.mxu0 0.0
    %1471 = vmatprep.subr.mxu0 0.0
    %1472 = vmatpush1.msra.mxu0 0.0
    %1473 = vmatprep.subr.mxu0 0.0
    %1474 = vmatpush1.msra.mxu0 0.0
    %1475 = vmatprep.subr.mxu0 0.0
    %1476 = vmatpush1.msra.mxu0 0.0
    %1477 = vmatprep.subr.mxu0 0.0
    %1478 = vmatpush1.msra.mxu0 0.0
    %1479 = vmatprep.subr.mxu0 0.0
    %1480 = vmatpush1.msra.mxu0 0.0
    %1481 = vmatprep.subr.mxu0 0.0
    %1482 = vmatpush1.msra.mxu0 0.0
    %1483 = vmatprep.subr.mxu0 0.0
    %1484 = vmatpush1.msra.mxu0 0.0
    %1485 = vmatprep.subr.mxu0 0.0
    %1486 = vmatpush1.msra.mxu0 0.0
    %1487 = vmatprep.subr.mxu0 0.0
    %1488 = vmatpush1.msra.mxu0 0.0
    %1489 = vmatprep.subr.mxu0 0.0
    %1490 = vmatpush1.msra.mxu0 0.0
    %1491 = vmatprep.subr.mxu0 0.0
    %1492 = vmatpush1.msra.mxu0 0.0
    %1493 = vmatprep.subr.mxu0 0.0
    %1494 = vmatpush1.msra.mxu0 0.0
    %1495 = vmatprep.subr.mxu0 0.0
    %1496 = vmatpush1.msra.mxu0 0.0
    %1497 = vmatprep.subr.mxu0 0.0
    %1498 = vmatpush1.msra.mxu0 0.0
    %1499 = vmatprep.subr.mxu0 0.0
    %1500 = vmatpush1.msra.mxu0 0.0
    %1501 = vmatprep.subr.mxu0 0.0
    %1502 = vmatpush1.msra.mxu0 0.0
    %1503 = vmatprep.subr.mxu0 0.0
    %1504 = vmatpush1.msra.mxu0 0.0
    %1505 = vmatprep.subr.mxu0 0.0
    %1506 = vmatpush1.msra.mxu0 0.0
    %1507 = vmatprep.subr.mxu0 0.0
    %1508 = vmatpush1.msra.mxu0 0.0
    %1509 = vmatprep.subr.mxu0 0.0
    %1510 = vmatpush1.msra.mxu0 0.0
    %1511 = vmatprep.subr.mxu0 0.0
    %1512 = vmatpush1.msra.mxu0 0.0
    %1513 = vmatprep.mubr.f32.mxu0 0.0
    %1514 = vmatmul.mubr.f32.gmra.mrb[0].mxu0 %v1399
    %v1515 = vpop.f32.mrb[0].mxu0
    %v1516 = vadd.f32 %v1396, %v1515
    %v1517 = vpop.f32.mrb[0].mxu0
    %1518 = vmatprep.mubr.f32.mxu0 0.0
    %1519 = vmatmul.mubr.f32.gmra.mrb[0].mxu0 %v1402
    %v1520 = vpop.f32.mrb[0].mxu0
    %v1521 = vadd.f32 %v1396, %v1520
    %v1522 = vpop.f32.mrb[0].mxu0
    %1523 = vmatprep.mubr.f32.mxu0 0.0
    %1524 = vmatmul.mubr.f32.gmra.mrb[0].mxu0 %v1405
    %v1525 = vpop.f32.mrb[0].mxu0
    %v1526 = vadd.f32 %v1396, %v1525
    %v1527 = vpop.f32.mrb[0].mxu0
    %1528 = vmatprep.mubr.f32.mxu0 0.0
    %1529 = vmatmul.mubr.f32.gmra.mrb[0].mxu0 %v1408
    %v1530 = vpop.f32.mrb[0].mxu0
    %v1531 = vadd.f32 %v1396, %v1530
    %v1532 = vpop.f32.mrb[0].mxu0
    %1533 = vmatprep.mubr.f32.mxu0 0.0
    %1534 = vmatmul.mubr.f32.gmra.mrb[0].mxu0 %v1411
    %v1535 = vpop.f32.mrb[0].mxu0
    %v1536 = vadd.f32 %v1396, %v1535
    %v1537 = vpop.f32.mrb[0].mxu0
    %1538 = vmatprep.mubr.f32.mxu0 0.0
    %1539 = vmatmul.mubr.f32.gmra.mrb[0].mxu0 %v1414
    %v1540 = vpop.f32.mrb[0].mxu0
    %v1541 = vadd.f32 %v1396, %v1540
    %v1542 = vpop.f32.mrb[0].mxu0
    %1543 = vmatprep.mubr.f32.mxu0 0.0
    %1544 = vmatmul.mubr.f32.gmra.mrb[0].mxu0 %v1417
    %v1545 = vpop.f32.mrb[0].mxu0
    %v1546 = vadd.f32 %v1396, %v1545
    %v1547 = vpop.f32.mrb[0].mxu0
    %1548 = vmatprep.mubr.f32.mxu0 0.0
    %1549 = vmatmul.mubr.f32.gmra.mrb[0].mxu0 %v1420
    %v1550 = vpop.f32.mrb[0].mxu0
    %v1551 = vadd.f32 %v1396, %v1550
    %v1552 = vpop.f32.mrb[0].mxu0
    %1553 = vmatprep.mubr.f32.mxu0 0.0
    %1554 = vmatmul.mubr.f32.gmra.mrb[0].mxu0 %v1423
    %v1555 = vpop.f32.mrb[0].mxu0
    %v1556 = vadd.f32 %v1396, %v1555
    %v1557 = vpop.f32.mrb[0].mxu0
    %1558 = vmatprep.mubr.f32.mxu0 0.0
    %1559 = vmatmul.mubr.f32.gmra.mrb[0].mxu0 %v1426
    %v1560 = vpop.f32.mrb[0].mxu0
    %v1561 = vadd.f32 %v1396, %v1560
    %v1562 = vpop.f32.mrb[0].mxu0
    %1563 = vmatprep.mubr.f32.mxu0 0.0
    %1564 = vmatmul.mubr.f32.gmra.mrb[0].mxu0 %v1429
    %v1565 = vpop.f32.mrb[0].mxu0
    %v1566 = vadd.f32 %v1396, %v1565
    %v1567 = vpop.f32.mrb[0].mxu0
    %1568 = vmatprep.mubr.f32.mxu0 0.0
    %1569 = vmatmul.mubr.f32.gmra.mrb[0].mxu0 %v1432
    %v1570 = vpop.f32.mrb[0].mxu0
    %v1571 = vadd.f32 %v1396, %v1570
    %v1572 = vpop.f32.mrb[0].mxu0
    %1573 = vmatprep.mubr.f32.mxu0 0.0
    %1574 = vmatmul.mubr.f32.gmra.mrb[0].mxu0 %v1435
    %v1575 = vpop.f32.mrb[0].mxu0
    %v1576 = vadd.f32 %v1396, %v1575
    %v1577 = vpop.f32.mrb[0].mxu0
    %1578 = vmatprep.mubr.f32.mxu0 0.0
    %1579 = vmatmul.mubr.f32.gmra.mrb[0].mxu0 %v1438
    %v1580 = vpop.f32.mrb[0].mxu0
    %v1581 = vadd.f32 %v1396, %v1580
    %v1582 = vpop.f32.mrb[0].mxu0
    %1583 = vmatprep.mubr.f32.mxu0 0.0
    %1584 = vmatmul.mubr.f32.gmra.mrb[0].mxu0 %v1441
    %v1585 = vpop.f32.mrb[0].mxu0
    %v1586 = vadd.f32 %v1396, %v1585
    %v1587 = vpop.f32.mrb[0].mxu0
    %1588 = vmatprep.mubr.f32.mxu0 0.0
    %1589 = vmatmul.mubr.f32.gmra.mrb[0].mxu0 %v1444
    %v1590 = vpop.f32.mrb[0].mxu0
    %v1591 = vadd.f32 %v1396, %v1590
    %v1592 = vpop.f32.mrb[0].mxu0
    %1593 = vdwg.mxu0
    %v1594 = vmax.f32 %v1516, 0.0
    %v1595 = vmax.f32 %v1521, 0.0
    %v1596 = vmax.f32 %v1526, 0.0
    %v1597 = vmax.f32 %v1531, 0.0
    %v1598 = vmax.f32 %v1536, 0.0
    %v1599 = vmax.f32 %v1541, 0.0
    %v1600 = vmax.f32 %v1546, 0.0
    %v1601 = vmax.f32 %v1551, 0.0
    %v1602 = vmax.f32 %v1556, 0.0
    %v1603 = vmax.f32 %v1561, 0.0
    %v1604 = vmax.f32 %v1566, 0.0
    %v1605 = vmax.f32 %v1571, 0.0
    %v1606 = vmax.f32 %v1576, 0.0
    %v1607 = vmax.f32 %v1581, 0.0
    %v1608 = vmax.f32 %v1586, 0.0
    %v1609 = vmax.f32 %v1591, 0.0
    %v1610 = vld [vmem:[%s7] sm:$0xf]
    %v1611 = vld [vmem:[%s8] sm:$0x1]
    %v1613 = vlaneseq
    %v1614 = vshrl.u32 %v1613, 7
    %v1615 = vsub.s32 0, %v1614
    %v1616 = vrot.slane %v1611, %v1615
    %v1619 = vsel %vm283, %v1594, 0
    %v1622 = vsel %vm283, %v1595, 0
    %v1625 = vsel %vm283, %v1596, 0
    %v1628 = vsel %vm283, %v1597, 0
    %v1631 = vsel %vm283, %v1598, 0
    %v1634 = vsel %vm283, %v1599, 0
    %v1637 = vsel %vm283, %v1600, 0
    %v1640 = vsel %vm283, %v1601, 0
    %v1643 = vsel %vm283, %v1602, 0
    %v1646 = vsel %vm283, %v1603, 0
    %v1649 = vsel %vm283, %v1604, 0
    %v1652 = vsel %vm283, %v1605, 0
    %v1655 = vsel %vm283, %v1606, 0
    %v1658 = vsel %vm283, %v1607, 0
    %v1661 = vsel %vm283, %v1608, 0
    %v1664 = vsel %vm283, %v1609, 0
    %v1667 = vsel %vm134, %v1610, 0
    %1669 = vmatprep.subr.mxu0 0.0
    %1670 = vmatpush1.msra.mxu0 %v1667
    %1671 = vmatprep.subr.mxu0 0.0
    %1672 = vmatpush1.msra.mxu0 0.0
    %1673 = vmatprep.subr.mxu0 0.0
    %1674 = vmatpush1.msra.mxu0 0.0
    %1675 = vmatprep.subr.mxu0 0.0
    %1676 = vmatpush1.msra.mxu0 0.0
    %1677 = vmatprep.subr.mxu0 0.0
    %1678 = vmatpush1.msra.mxu0 0.0
    %1679 = vmatprep.subr.mxu0 0.0
    %1680 = vmatpush1.msra.mxu0 0.0
    %1681 = vmatprep.subr.mxu0 0.0
    %1682 = vmatpush1.msra.mxu0 0.0
    %1683 = vmatprep.subr.mxu0 0.0
    %1684 = vmatpush1.msra.mxu0 0.0
    %1685 = vmatprep.subr.mxu0 0.0
    %1686 = vmatpush1.msra.mxu0 0.0
    %1687 = vmatprep.subr.mxu0 0.0
    %1688 = vmatpush1.msra.mxu0 0.0
    %1689 = vmatprep.subr.mxu0 0.0
    %1690 = vmatpush1.msra.mxu0 0.0
    %1691 = vmatprep.subr.mxu0 0.0
    %1692 = vmatpush1.msra.mxu0 0.0
    %1693 = vmatprep.subr.mxu0 0.0
    %1694 = vmatpush1.msra.mxu0 0.0
    %1695 = vmatprep.subr.mxu0 0.0
    %1696 = vmatpush1.msra.mxu0 0.0
    %1697 = vmatprep.subr.mxu0 0.0
    %1698 = vmatpush1.msra.mxu0 0.0
    %1699 = vmatprep.subr.mxu0 0.0
    %1700 = vmatpush1.msra.mxu0 0.0
    %1701 = vmatprep.subr.mxu0 0.0
    %1702 = vmatpush1.msra.mxu0 0.0
    %1703 = vmatprep.subr.mxu0 0.0
    %1704 = vmatpush1.msra.mxu0 0.0
    %1705 = vmatprep.subr.mxu0 0.0
    %1706 = vmatpush1.msra.mxu0 0.0
    %1707 = vmatprep.subr.mxu0 0.0
    %1708 = vmatpush1.msra.mxu0 0.0
    %1709 = vmatprep.subr.mxu0 0.0
    %1710 = vmatpush1.msra.mxu0 0.0
    %1711 = vmatprep.subr.mxu0 0.0
    %1712 = vmatpush1.msra.mxu0 0.0
    %1713 = vmatprep.subr.mxu0 0.0
    %1714 = vmatpush1.msra.mxu0 0.0
    %1715 = vmatprep.subr.mxu0 0.0
    %1716 = vmatpush1.msra.mxu0 0.0
    %1717 = vmatprep.subr.mxu0 0.0
    %1718 = vmatpush1.msra.mxu0 0.0
    %1719 = vmatprep.subr.mxu0 0.0
    %1720 = vmatpush1.msra.mxu0 0.0
    %1721 = vmatprep.subr.mxu0 0.0
    %1722 = vmatpush1.msra.mxu0 0.0
    %1723 = vmatprep.subr.mxu0 0.0
    %1724 = vmatpush1.msra.mxu0 0.0
    %1725 = vmatprep.subr.mxu0 0.0
    %1726 = vmatpush1.msra.mxu0 0.0
    %1727 = vmatprep.subr.mxu0 0.0
    %1728 = vmatpush1.msra.mxu0 0.0
    %1729 = vmatprep.subr.mxu0 0.0
    %1730 = vmatpush1.msra.mxu0 0.0
    %1731 = vmatprep.subr.mxu0 0.0
    %1732 = vmatpush1.msra.mxu0 0.0
    %1733 = vmatprep.mubr.f32.mxu0 0.0
    %1734 = vmatmul.mubr.f32.gmra.mrb[0].mxu0 %v1619
    %v1735 = vpop.f32.mrb[0].mxu0
    %v1736 = vadd.f32 %v1616, %v1735
    %v1737 = vpop.f32.mrb[0].mxu0
    %1738 = vmatprep.mubr.f32.mxu0 0.0
    %1739 = vmatmul.mubr.f32.gmra.mrb[0].mxu0 %v1622
    %v1740 = vpop.f32.mrb[0].mxu0
    %v1741 = vadd.f32 %v1616, %v1740
    %v1742 = vpop.f32.mrb[0].mxu0
    %1743 = vmatprep.mubr.f32.mxu0 0.0
    %1744 = vmatmul.mubr.f32.gmra.mrb[0].mxu0 %v1625
    %v1745 = vpop.f32.mrb[0].mxu0
    %v1746 = vadd.f32 %v1616, %v1745
    %v1747 = vpop.f32.mrb[0].mxu0
    %1748 = vmatprep.mubr.f32.mxu0 0.0
    %1749 = vmatmul.mubr.f32.gmra.mrb[0].mxu0 %v1628
    %v1750 = vpop.f32.mrb[0].mxu0
    %v1751 = vadd.f32 %v1616, %v1750
    %v1752 = vpop.f32.mrb[0].mxu0
    %1753 = vmatprep.mubr.f32.mxu0 0.0
    %1754 = vmatmul.mubr.f32.gmra.mrb[0].mxu0 %v1631
    %v1755 = vpop.f32.mrb[0].mxu0
    %v1756 = vadd.f32 %v1616, %v1755
    %v1757 = vpop.f32.mrb[0].mxu0
    %1758 = vmatprep.mubr.f32.mxu0 0.0
    %1759 = vmatmul.mubr.f32.gmra.mrb[0].mxu0 %v1634
    %v1760 = vpop.f32.mrb[0].mxu0
    %v1761 = vadd.f32 %v1616, %v1760
    %v1762 = vpop.f32.mrb[0].mxu0
    %1763 = vmatprep.mubr.f32.mxu0 0.0
    %1764 = vmatmul.mubr.f32.gmra.mrb[0].mxu0 %v1637
    %v1765 = vpop.f32.mrb[0].mxu0
    %v1766 = vadd.f32 %v1616, %v1765
    %v1767 = vpop.f32.mrb[0].mxu0
    %1768 = vmatprep.mubr.f32.mxu0 0.0
    %1769 = vmatmul.mubr.f32.gmra.mrb[0].mxu0 %v1640
    %v1770 = vpop.f32.mrb[0].mxu0
    %v1771 = vadd.f32 %v1616, %v1770
    %v1772 = vpop.f32.mrb[0].mxu0
    %1773 = vmatprep.mubr.f32.mxu0 0.0
    %1774 = vmatmul.mubr.f32.gmra.mrb[0].mxu0 %v1643
    %v1775 = vpop.f32.mrb[0].mxu0
    %v1776 = vadd.f32 %v1616, %v1775
    %v1777 = vpop.f32.mrb[0].mxu0
    %1778 = vmatprep.mubr.f32.mxu0 0.0
    %1779 = vmatmul.mubr.f32.gmra.mrb[0].mxu0 %v1646
    %v1780 = vpop.f32.mrb[0].mxu0
    %v1781 = vadd.f32 %v1616, %v1780
    %v1782 = vpop.f32.mrb[0].mxu0
    %1783 = vmatprep.mubr.f32.mxu0 0.0
    %1784 = vmatmul.mubr.f32.gmra.mrb[0].mxu0 %v1649
    %v1785 = vpop.f32.mrb[0].mxu0
    %v1786 = vadd.f32 %v1616, %v1785
    %v1787 = vpop.f32.mrb[0].mxu0
    %1788 = vmatprep.mubr.f32.mxu0 0.0
    %1789 = vmatmul.mubr.f32.gmra.mrb[0].mxu0 %v1652
    %v1790 = vpop.f32.mrb[0].mxu0
    %v1791 = vadd.f32 %v1616, %v1790
    %v1792 = vpop.f32.mrb[0].mxu0
    %1793 = vmatprep.mubr.f32.mxu0 0.0
    %1794 = vmatmul.mubr.f32.gmra.mrb[0].mxu0 %v1655
    %v1795 = vpop.f32.mrb[0].mxu0
    %v1796 = vadd.f32 %v1616, %v1795
    %v1797 = vpop.f32.mrb[0].mxu0
    %1798 = vmatprep.mubr.f32.mxu0 0.0
    %1799 = vmatmul.mubr.f32.gmra.mrb[0].mxu0 %v1658
    %v1800 = vpop.f32.mrb[0].mxu0
    %v1801 = vadd.f32 %v1616, %v1800
    %v1802 = vpop.f32.mrb[0].mxu0
    %1803 = vmatprep.mubr.f32.mxu0 0.0
    %1804 = vmatmul.mubr.f32.gmra.mrb[0].mxu0 %v1661
    %v1805 = vpop.f32.mrb[0].mxu0
    %v1806 = vadd.f32 %v1616, %v1805
    %v1807 = vpop.f32.mrb[0].mxu0
    %1808 = vmatprep.mubr.f32.mxu0 0.0
    %1809 = vmatmul.mubr.f32.gmra.mrb[0].mxu0 %v1664
    %v1810 = vpop.f32.mrb[0].mxu0
    %v1811 = vadd.f32 %v1616, %v1810
    %v1812 = vpop.f32.mrb[0].mxu0
    %1813 = vdwg.mxu0
    %v1814 = vmax.f32 %v1736, 0.0
    %v1815 = vmax.f32 %v1741, 0.0
    %v1816 = vmax.f32 %v1746, 0.0
    %v1817 = vmax.f32 %v1751, 0.0
    %v1818 = vmax.f32 %v1756, 0.0
    %v1819 = vmax.f32 %v1761, 0.0
    %v1820 = vmax.f32 %v1766, 0.0
    %v1821 = vmax.f32 %v1771, 0.0
    %v1822 = vmax.f32 %v1776, 0.0
    %v1823 = vmax.f32 %v1781, 0.0
    %v1824 = vmax.f32 %v1786, 0.0
    %v1825 = vmax.f32 %v1791, 0.0
    %v1826 = vmax.f32 %v1796, 0.0
    %v1827 = vmax.f32 %v1801, 0.0
    %v1828 = vmax.f32 %v1806, 0.0
    %v1829 = vmax.f32 %v1811, 0.0
    %v1830 = vadd.f32 %v1814, %v205
    %v1831 = vadd.f32 %v1815, %v210
    %v1832 = vadd.f32 %v1816, %v215
    %v1833 = vadd.f32 %v1817, %v220
    %v1834 = vadd.f32 %v1818, %v225
    %v1835 = vadd.f32 %v1819, %v230
    %v1836 = vadd.f32 %v1820, %v235
    %v1837 = vadd.f32 %v1821, %v240
    %v1838 = vadd.f32 %v1822, %v245
    %v1839 = vadd.f32 %v1823, %v250
    %v1840 = vadd.f32 %v1824, %v255
    %v1841 = vadd.f32 %v1825, %v260
    %v1842 = vadd.f32 %v1826, %v265
    %v1843 = vadd.f32 %v1827, %v270
    %v1844 = vadd.f32 %v1828, %v275
    %v1845 = vadd.f32 %v1829, %v280
    %v1846 = vld [vmem:[%s9] sm:$0xff]
    %v1847 = vld [vmem:[%s9 + $0x8] sm:$0xff]
    %v1848 = vld [vmem:[%s9 + $0x10] sm:$0xff]
    %v1849 = vld [vmem:[%s9 + $0x18] sm:$0xff]
    %v1850 = vld [vmem:[%s9 + $0x20] sm:$0xff]
    %v1851 = vld [vmem:[%s9 + $0x28] sm:$0xff]
    %v1852 = vld [vmem:[%s9 + $0x30] sm:$0xff]
    %v1853 = vld [vmem:[%s9 + $0x38] sm:$0xff]
    %v1854 = vld [vmem:[%s9 + $0x40] sm:$0xff]
    %v1855 = vld [vmem:[%s9 + $0x48] sm:$0xff]
    %v1856 = vld [vmem:[%s9 + $0x50] sm:$0xff]
    %v1857 = vld [vmem:[%s9 + $0x58] sm:$0xff]
    %v1858 = vld [vmem:[%s9 + $0x60] sm:$0xff]
    %v1859 = vld [vmem:[%s9 + $0x68] sm:$0xff]
    %v1860 = vld [vmem:[%s9 + $0x70] sm:$0xff]
    %v1861 = vld [vmem:[%s9 + $0x78] sm:$0xff]
    %v1862 = vadd.f32 %v1830, %v1846
    %v1863 = vadd.f32 %v1831, %v1847
    %v1864 = vadd.f32 %v1832, %v1848
    %v1865 = vadd.f32 %v1833, %v1849
    %v1866 = vadd.f32 %v1834, %v1850
    %v1867 = vadd.f32 %v1835, %v1851
    %v1868 = vadd.f32 %v1836, %v1852
    %v1869 = vadd.f32 %v1837, %v1853
    %v1870 = vadd.f32 %v1838, %v1854
    %v1871 = vadd.f32 %v1839, %v1855
    %v1872 = vadd.f32 %v1840, %v1856
    %v1873 = vadd.f32 %v1841, %v1857
    %v1874 = vadd.f32 %v1842, %v1858
    %v1875 = vadd.f32 %v1843, %v1859
    %v1876 = vadd.f32 %v1844, %v1860
    %v1877 = vadd.f32 %v1845, %v1861
    %v1878 = vld [vmem:[%s10] sm:$0xff]
    %v1879 = vld [vmem:[%s10 + $0x8] sm:$0xff]
    %v1880 = vld [vmem:[%s11] sm:$0x1]
    %v1882 = vlaneseq
    %v1883 = vshrl.u32 %v1882, 7
    %v1884 = vsub.s32 0, %v1883
    %v1885 = vrot.slane %v1880, %v1884
    %v1888 = vsel %vm334, %v1862, 0
    %v1891 = vsel %vm334, %v1863, 0
    %v1894 = vsel %vm334, %v1864, 0
    %v1897 = vsel %vm334, %v1865, 0
    %v1900 = vsel %vm334, %v1866, 0
    %v1903 = vsel %vm334, %v1867, 0
    %v1906 = vsel %vm334, %v1868, 0
    %v1909 = vsel %vm334, %v1869, 0
    %v1912 = vsel %vm334, %v1870, 0
    %v1915 = vsel %vm334, %v1871, 0
    %v1918 = vsel %vm334, %v1872, 0
    %v1921 = vsel %vm334, %v1873, 0
    %v1924 = vsel %vm334, %v1874, 0
    %v1927 = vsel %vm334, %v1875, 0
    %v1930 = vsel %vm334, %v1876, 0
    %v1933 = vsel %vm334, %v1877, 0
    %1935 = vmatprep.subr.mxu0 0.0
    %1936 = vmatpush1.msra.mxu0 %v1878
    %1937 = vmatprep.subr.mxu0 0.0
    %1938 = vmatpush1.msra.mxu0 %v1879
    %1939 = vmatprep.subr.mxu0 0.0
    %1940 = vmatpush1.msra.mxu0 0.0
    %1941 = vmatprep.subr.mxu0 0.0
    %1942 = vmatpush1.msra.mxu0 0.0
    %1943 = vmatprep.subr.mxu0 0.0
    %1944 = vmatpush1.msra.mxu0 0.0
    %1945 = vmatprep.subr.mxu0 0.0
    %1946 = vmatpush1.msra.mxu0 0.0
    %1947 = vmatprep.subr.mxu0 0.0
    %1948 = vmatpush1.msra.mxu0 0.0
    %1949 = vmatprep.subr.mxu0 0.0
    %1950 = vmatpush1.msra.mxu0 0.0
    %1951 = vmatprep.subr.mxu0 0.0
    %1952 = vmatpush1.msra.mxu0 0.0
    %1953 = vmatprep.subr.mxu0 0.0
    %1954 = vmatpush1.msra.mxu0 0.0
    %1955 = vmatprep.subr.mxu0 0.0
    %1956 = vmatpush1.msra.mxu0 0.0
    %1957 = vmatprep.subr.mxu0 0.0
    %1958 = vmatpush1.msra.mxu0 0.0
    %1959 = vmatprep.subr.mxu0 0.0
    %1960 = vmatpush1.msra.mxu0 0.0
    %1961 = vmatprep.subr.mxu0 0.0
    %1962 = vmatpush1.msra.mxu0 0.0
    %1963 = vmatprep.subr.mxu0 0.0
    %1964 = vmatpush1.msra.mxu0 0.0
    %1965 = vmatprep.subr.mxu0 0.0
    %1966 = vmatpush1.msra.mxu0 0.0
    %1967 = vmatprep.subr.mxu0 0.0
    %1968 = vmatpush1.msra.mxu0 0.0
    %1969 = vmatprep.subr.mxu0 0.0
    %1970 = vmatpush1.msra.mxu0 0.0
    %1971 = vmatprep.subr.mxu0 0.0
    %1972 = vmatpush1.msra.mxu0 0.0
    %1973 = vmatprep.subr.mxu0 0.0
    %1974 = vmatpush1.msra.mxu0 0.0
    %1975 = vmatprep.subr.mxu0 0.0
    %1976 = vmatpush1.msra.mxu0 0.0
    %1977 = vmatprep.subr.mxu0 0.0
    %1978 = vmatpush1.msra.mxu0 0.0
    %1979 = vmatprep.subr.mxu0 0.0
    %1980 = vmatpush1.msra.mxu0 0.0
    %1981 = vmatprep.subr.mxu0 0.0
    %1982 = vmatpush1.msra.mxu0 0.0
    %1983 = vmatprep.subr.mxu0 0.0
    %1984 = vmatpush1.msra.mxu0 0.0
    %1985 = vmatprep.subr.mxu0 0.0
    %1986 = vmatpush1.msra.mxu0 0.0
    %1987 = vmatprep.subr.mxu0 0.0
    %1988 = vmatpush1.msra.mxu0 0.0
    %1989 = vmatprep.subr.mxu0 0.0
    %1990 = vmatpush1.msra.mxu0 0.0
    %1991 = vmatprep.subr.mxu0 0.0
    %1992 = vmatpush1.msra.mxu0 0.0
    %1993 = vmatprep.subr.mxu0 0.0
    %1994 = vmatpush1.msra.mxu0 0.0
    %1995 = vmatprep.subr.mxu0 0.0
    %1996 = vmatpush1.msra.mxu0 0.0
    %1997 = vmatprep.subr.mxu0 0.0
    %1998 = vmatpush1.msra.mxu0 0.0
    %1999 = vmatprep.mubr.f32.mxu0 0.0
    %2000 = vmatmul.mubr.f32.gmra.mrb[0].mxu0 %v1888
    %v2001 = vpop.f32.mrb[0].mxu0
    %v2002 = vadd.f32 %v1885, %v2001
    %v2003 = vpop.f32.mrb[0].mxu0
    %2004 = vmatprep.mubr.f32.mxu0 0.0
    %2005 = vmatmul.mubr.f32.gmra.mrb[0].mxu0 %v1891
    %v2006 = vpop.f32.mrb[0].mxu0
    %v2007 = vadd.f32 %v1885, %v2006
    %v2008 = vpop.f32.mrb[0].mxu0
    %2009 = vmatprep.mubr.f32.mxu0 0.0
    %2010 = vmatmul.mubr.f32.gmra.mrb[0].mxu0 %v1894
    %v2011 = vpop.f32.mrb[0].mxu0
    %v2012 = vadd.f32 %v1885, %v2011
    %v2013 = vpop.f32.mrb[0].mxu0
    %2014 = vmatprep.mubr.f32.mxu0 0.0
    %2015 = vmatmul.mubr.f32.gmra.mrb[0].mxu0 %v1897
    %v2016 = vpop.f32.mrb[0].mxu0
    %v2017 = vadd.f32 %v1885, %v2016
    %v2018 = vpop.f32.mrb[0].mxu0
    %2019 = vmatprep.mubr.f32.mxu0 0.0
    %2020 = vmatmul.mubr.f32.gmra.mrb[0].mxu0 %v1900
    %v2021 = vpop.f32.mrb[0].mxu0
    %v2022 = vadd.f32 %v1885, %v2021
    %v2023 = vpop.f32.mrb[0].mxu0
    %2024 = vmatprep.mubr.f32.mxu0 0.0
    %2025 = vmatmul.mubr.f32.gmra.mrb[0].mxu0 %v1903
    %v2026 = vpop.f32.mrb[0].mxu0
    %v2027 = vadd.f32 %v1885, %v2026
    %v2028 = vpop.f32.mrb[0].mxu0
    %2029 = vmatprep.mubr.f32.mxu0 0.0
    %2030 = vmatmul.mubr.f32.gmra.mrb[0].mxu0 %v1906
    %v2031 = vpop.f32.mrb[0].mxu0
    %v2032 = vadd.f32 %v1885, %v2031
    %v2033 = vpop.f32.mrb[0].mxu0
    %2034 = vmatprep.mubr.f32.mxu0 0.0
    %2035 = vmatmul.mubr.f32.gmra.mrb[0].mxu0 %v1909
    %v2036 = vpop.f32.mrb[0].mxu0
    %v2037 = vadd.f32 %v1885, %v2036
    %v2038 = vpop.f32.mrb[0].mxu0
    %2039 = vmatprep.mubr.f32.mxu0 0.0
    %2040 = vmatmul.mubr.f32.gmra.mrb[0].mxu0 %v1912
    %v2041 = vpop.f32.mrb[0].mxu0
    %v2042 = vadd.f32 %v1885, %v2041
    %v2043 = vpop.f32.mrb[0].mxu0
    %2044 = vmatprep.mubr.f32.mxu0 0.0
    %2045 = vmatmul.mubr.f32.gmra.mrb[0].mxu0 %v1915
    %v2046 = vpop.f32.mrb[0].mxu0
    %v2047 = vadd.f32 %v1885, %v2046
    %v2048 = vpop.f32.mrb[0].mxu0
    %2049 = vmatprep.mubr.f32.mxu0 0.0
    %2050 = vmatmul.mubr.f32.gmra.mrb[0].mxu0 %v1918
    %v2051 = vpop.f32.mrb[0].mxu0
    %v2052 = vadd.f32 %v1885, %v2051
    %v2053 = vpop.f32.mrb[0].mxu0
    %2054 = vmatprep.mubr.f32.mxu0 0.0
    %2055 = vmatmul.mubr.f32.gmra.mrb[0].mxu0 %v1921
    %v2056 = vpop.f32.mrb[0].mxu0
    %v2057 = vadd.f32 %v1885, %v2056
    %v2058 = vpop.f32.mrb[0].mxu0
    %2059 = vmatprep.mubr.f32.mxu0 0.0
    %2060 = vmatmul.mubr.f32.gmra.mrb[0].mxu0 %v1924
    %v2061 = vpop.f32.mrb[0].mxu0
    %v2062 = vadd.f32 %v1885, %v2061
    %v2063 = vpop.f32.mrb[0].mxu0
    %2064 = vmatprep.mubr.f32.mxu0 0.0
    %2065 = vmatmul.mubr.f32.gmra.mrb[0].mxu0 %v1927
    %v2066 = vpop.f32.mrb[0].mxu0
    %v2067 = vadd.f32 %v1885, %v2066
    %v2068 = vpop.f32.mrb[0].mxu0
    %2069 = vmatprep.mubr.f32.mxu0 0.0
    %2070 = vmatmul.mubr.f32.gmra.mrb[0].mxu0 %v1930
    %v2071 = vpop.f32.mrb[0].mxu0
    %v2072 = vadd.f32 %v1885, %v2071
    %v2073 = vpop.f32.mrb[0].mxu0
    %2074 = vmatprep.mubr.f32.mxu0 0.0
    %2075 = vmatmul.mubr.f32.gmra.mrb[0].mxu0 %v1933
    %v2076 = vpop.f32.mrb[0].mxu0
    %v2077 = vadd.f32 %v1885, %v2076
    %v2078 = vpop.f32.mrb[0].mxu0
    %2079 = vdwg.mxu0
    %v2080 = vmax.f32 %v2002, 0.0
    %v2081 = vmax.f32 %v2007, 0.0
    %v2082 = vmax.f32 %v2012, 0.0
    %v2083 = vmax.f32 %v2017, 0.0
    %v2084 = vmax.f32 %v2022, 0.0
    %v2085 = vmax.f32 %v2027, 0.0
    %v2086 = vmax.f32 %v2032, 0.0
    %v2087 = vmax.f32 %v2037, 0.0
    %v2088 = vmax.f32 %v2042, 0.0
    %v2089 = vmax.f32 %v2047, 0.0
    %v2090 = vmax.f32 %v2052, 0.0
    %v2091 = vmax.f32 %v2057, 0.0
    %v2092 = vmax.f32 %v2062, 0.0
    %v2093 = vmax.f32 %v2067, 0.0
    %v2094 = vmax.f32 %v2072, 0.0
    %v2095 = vmax.f32 %v2077, 0.0
    %2096 = vst.msk [vmem:[%s544 + $0x1] sm:$0xff] %vm283, %v2080
    %2097 = vst.msk [vmem:[%s544 + $0x11] sm:$0xff] %vm283, %v2081
    %2098 = vst.msk [vmem:[%s544 + $0x21] sm:$0xff] %vm283, %v2082
    %2099 = vst.msk [vmem:[%s544 + $0x31] sm:$0xff] %vm283, %v2083
    %2100 = vst.msk [vmem:[%s544 + $0x41] sm:$0xff] %vm283, %v2084
    %2101 = vst.msk [vmem:[%s544 + $0x51] sm:$0xff] %vm283, %v2085
    %2102 = vst.msk [vmem:[%s544 + $0x61] sm:$0xff] %vm283, %v2086
    %2103 = vst.msk [vmem:[%s544 + $0x71] sm:$0xff] %vm283, %v2087
    %2104 = vst.msk [vmem:[%s544 + $0xa1] sm:$0xff] %vm283, %v2088
    %2105 = vst.msk [vmem:[%s544 + $0xb1] sm:$0xff] %vm283, %v2089
    %2106 = vst.msk [vmem:[%s544 + $0xc1] sm:$0xff] %vm283, %v2090
    %2107 = vst.msk [vmem:[%s544 + $0xd1] sm:$0xff] %vm283, %v2091
    %2108 = vst.msk [vmem:[%s544 + $0xe1] sm:$0xff] %vm283, %v2092
    %2109 = vst.msk [vmem:[%s544 + $0xf1] sm:$0xff] %vm283, %v2093
    %2110 = vst.msk [vmem:[%s544 + $0x101] sm:$0xff] %vm283, %v2094
    %2111 = vst.msk [vmem:[%s544 + $0x111] sm:$0xff] %vm283, %v2095
    %v2112 = vld [vmem:[#allocation2] sm:$0xff]
    %v2113 = vld [vmem:[#allocation2 + $0x10] sm:$0xff]
    %v2114 = vld [vmem:[#allocation2 + $0x20] sm:$0xff]
    %v2115 = vld [vmem:[#allocation2 + $0x30] sm:$0xff]
    %v2116 = vld [vmem:[#allocation2 + $0x40] sm:$0xff]
    %v2117 = vld [vmem:[#allocation2 + $0x50] sm:$0xff]
    %v2118 = vld [vmem:[#allocation2 + $0x60] sm:$0xff]
    %v2119 = vld [vmem:[#allocation2 + $0x70] sm:$0xff]
    %v2120 = vld [vmem:[#allocation2 + $0xa0] sm:$0xff]
    %v2121 = vld [vmem:[#allocation2 + $0xb0] sm:$0xff]
    %v2122 = vld [vmem:[#allocation2 + $0xc0] sm:$0xff]
    %v2123 = vld [vmem:[#allocation2 + $0xd0] sm:$0xff]
    %v2124 = vld [vmem:[#allocation2 + $0xe0] sm:$0xff]
    %v2125 = vld [vmem:[#allocation2 + $0xf0] sm:$0xff]
    %v2126 = vld [vmem:[#allocation2 + $0x100] sm:$0xff]
    %v2127 = vld [vmem:[#allocation2 + $0x110] sm:$0xff]
    %2128 = vst.msk [vmem:[#allocation3] sm:$0xff] %vm283, %v2112
    %2129 = vst.msk [vmem:[#allocation3 + $0x8] sm:$0xff] %vm283, %v2113
    %2130 = vst.msk [vmem:[#allocation3 + $0x10] sm:$0xff] %vm283, %v2114
    %2131 = vst.msk [vmem:[#allocation3 + $0x18] sm:$0xff] %vm283, %v2115
    %2132 = vst.msk [vmem:[#allocation3 + $0x20] sm:$0xff] %vm283, %v2116
    %2133 = vst.msk [vmem:[#allocation3 + $0x28] sm:$0xff] %vm283, %v2117
    %2134 = vst.msk [vmem:[#allocation3 + $0x30] sm:$0xff] %vm283, %v2118
    %2135 = vst.msk [vmem:[#allocation3 + $0x38] sm:$0xff] %vm283, %v2119
    %2136 = vst.msk [vmem:[#allocation3 + $0x40] sm:$0xff] %vm283, %v2120
    %2137 = vst.msk [vmem:[#allocation3 + $0x48] sm:$0xff] %vm283, %v2121
    %2138 = vst.msk [vmem:[#allocation3 + $0x50] sm:$0xff] %vm283, %v2122
    %2139 = vst.msk [vmem:[#allocation3 + $0x58] sm:$0xff] %vm283, %v2123
    %2140 = vst.msk [vmem:[#allocation3 + $0x60] sm:$0xff] %vm283, %v2124
    %2141 = vst.msk [vmem:[#allocation3 + $0x68] sm:$0xff] %vm283, %v2125
    %2142 = vst.msk [vmem:[#allocation3 + $0x70] sm:$0xff] %vm283, %v2126
    %2143 = vst.msk [vmem:[#allocation3 + $0x78] sm:$0xff] %vm283, %v2127
    %v2144 = vld [vmem:[#allocation2 + $0x1] sm:$0xff]
    %v2145 = vld [vmem:[#allocation2 + $0x11] sm:$0xff]
    %v2146 = vld [vmem:[#allocation2 + $0x21] sm:$0xff]
    %v2147 = vld [vmem:[#allocation2 + $0x31] sm:$0xff]
    %v2148 = vld [vmem:[#allocation2 + $0x41] sm:$0xff]
    %v2149 = vld [vmem:[#allocation2 + $0x51] sm:$0xff]
    %v2150 = vld [vmem:[#allocation2 + $0x61] sm:$0xff]
    %v2151 = vld [vmem:[#allocation2 + $0x71] sm:$0xff]
    %v2152 = vld [vmem:[#allocation2 + $0xa1] sm:$0xff]
    %v2153 = vld [vmem:[#allocation2 + $0xb1] sm:$0xff]
    %v2154 = vld [vmem:[#allocation2 + $0xc1] sm:$0xff]
    %v2155 = vld [vmem:[#allocation2 + $0xd1] sm:$0xff]
    %v2156 = vld [vmem:[#allocation2 + $0xe1] sm:$0xff]
    %v2157 = vld [vmem:[#allocation2 + $0xf1] sm:$0xff]
    %v2158 = vld [vmem:[#allocation2 + $0x101] sm:$0xff]
    %v2159 = vld [vmem:[#allocation2 + $0x111] sm:$0xff]
    %2176 = vrot.lane.b32.xlu0 %v2144, 4
    %v2177 = vpop.permute.xlu0 %2176
    %2178 = vrot.lane.b32.xlu0 %v2145, 4
    %v2179 = vpop.permute.xlu0 %2178
    %2180 = vrot.lane.b32.xlu0 %v2146, 4
    %v2181 = vpop.permute.xlu0 %2180
    %2182 = vrot.lane.b32.xlu0 %v2147, 4
    %v2183 = vpop.permute.xlu0 %2182
    %2184 = vrot.lane.b32.xlu0 %v2148, 4
    %v2185 = vpop.permute.xlu0 %2184
    %2186 = vrot.lane.b32.xlu0 %v2149, 4
    %v2187 = vpop.permute.xlu0 %2186
    %2188 = vrot.lane.b32.xlu0 %v2150, 4
    %v2189 = vpop.permute.xlu0 %2188
    %2190 = vrot.lane.b32.xlu0 %v2151, 4
    %v2191 = vpop.permute.xlu0 %2190
    %2192 = vrot.lane.b32.xlu0 %v2152, 4
    %v2193 = vpop.permute.xlu0 %2192
    %2194 = vrot.lane.b32.xlu0 %v2153, 4
    %v2195 = vpop.permute.xlu0 %2194
    %2196 = vrot.lane.b32.xlu0 %v2154, 4
    %v2197 = vpop.permute.xlu0 %2196
    %2198 = vrot.lane.b32.xlu0 %v2155, 4
    %v2199 = vpop.permute.xlu0 %2198
    %2200 = vrot.lane.b32.xlu0 %v2156, 4
    %v2201 = vpop.permute.xlu0 %2200
    %2202 = vrot.lane.b32.xlu0 %v2157, 4
    %v2203 = vpop.permute.xlu0 %2202
    %2204 = vrot.lane.b32.xlu0 %v2158, 4
    %v2205 = vpop.permute.xlu0 %2204
    %2206 = vrot.lane.b32.xlu0 %v2159, 4
    %v2207 = vpop.permute.xlu0 %2206
    %2224 = vst.msk [vmem:[#allocation3] sm:$0xff] %vm673, %v2177
    %2225 = vst.msk [vmem:[#allocation3 + $0x8] sm:$0xff] %vm673, %v2179
    %2226 = vst.msk [vmem:[#allocation3 + $0x10] sm:$0xff] %vm673, %v2181
    %2227 = vst.msk [vmem:[#allocation3 + $0x18] sm:$0xff] %vm673, %v2183
    %2228 = vst.msk [vmem:[#allocation3 + $0x20] sm:$0xff] %vm673, %v2185
    %2229 = vst.msk [vmem:[#allocation3 + $0x28] sm:$0xff] %vm673, %v2187
    %2230 = vst.msk [vmem:[#allocation3 + $0x30] sm:$0xff] %vm673, %v2189
    %2231 = vst.msk [vmem:[#allocation3 + $0x38] sm:$0xff] %vm673, %v2191
    %2232 = vst.msk [vmem:[#allocation3 + $0x40] sm:$0xff] %vm673, %v2193
    %2233 = vst.msk [vmem:[#allocation3 + $0x48] sm:$0xff] %vm673, %v2195
    %2234 = vst.msk [vmem:[#allocation3 + $0x50] sm:$0xff] %vm673, %v2197
    %2235 = vst.msk [vmem:[#allocation3 + $0x58] sm:$0xff] %vm673, %v2199
    %2236 = vst.msk [vmem:[#allocation3 + $0x60] sm:$0xff] %vm673, %v2201
    %2237 = vst.msk [vmem:[#allocation3 + $0x68] sm:$0xff] %vm673, %v2203
    %2238 = vst.msk [vmem:[#allocation3 + $0x70] sm:$0xff] %vm673, %v2205
    %2239 = vst.msk [vmem:[#allocation3 + $0x78] sm:$0xff] %vm673, %v2207
    %v2240 = vld [vmem:[#allocation2 + $0x2] sm:$0xff]
    %v2241 = vld [vmem:[#allocation2 + $0x12] sm:$0xff]
    %v2242 = vld [vmem:[#allocation2 + $0x22] sm:$0xff]
    %v2243 = vld [vmem:[#allocation2 + $0x32] sm:$0xff]
    %v2244 = vld [vmem:[#allocation2 + $0x42] sm:$0xff]
    %v2245 = vld [vmem:[#allocation2 + $0x52] sm:$0xff]
    %v2246 = vld [vmem:[#allocation2 + $0x62] sm:$0xff]
    %v2247 = vld [vmem:[#allocation2 + $0x72] sm:$0xff]
    %v2248 = vld [vmem:[#allocation2 + $0xa2] sm:$0xff]
    %v2249 = vld [vmem:[#allocation2 + $0xb2] sm:$0xff]
    %v2250 = vld [vmem:[#allocation2 + $0xc2] sm:$0xff]
    %v2251 = vld [vmem:[#allocation2 + $0xd2] sm:$0xff]
    %v2252 = vld [vmem:[#allocation2 + $0xe2] sm:$0xff]
    %v2253 = vld [vmem:[#allocation2 + $0xf2] sm:$0xff]
    %v2254 = vld [vmem:[#allocation2 + $0x102] sm:$0xff]
    %v2255 = vld [vmem:[#allocation2 + $0x112] sm:$0xff]
    %2272 = vrot.lane.b32.xlu0 %v2240, 8
    %v2273 = vpop.permute.xlu0 %2272
    %2274 = vrot.lane.b32.xlu0 %v2241, 8
    %v2275 = vpop.permute.xlu0 %2274
    %2276 = vrot.lane.b32.xlu0 %v2242, 8
    %v2277 = vpop.permute.xlu0 %2276
    %2278 = vrot.lane.b32.xlu0 %v2243, 8
    %v2279 = vpop.permute.xlu0 %2278
    %2280 = vrot.lane.b32.xlu0 %v2244, 8
    %v2281 = vpop.permute.xlu0 %2280
    %2282 = vrot.lane.b32.xlu0 %v2245, 8
    %v2283 = vpop.permute.xlu0 %2282
    %2284 = vrot.lane.b32.xlu0 %v2246, 8
    %v2285 = vpop.permute.xlu0 %2284
    %2286 = vrot.lane.b32.xlu0 %v2247, 8
    %v2287 = vpop.permute.xlu0 %2286
    %2288 = vrot.lane.b32.xlu0 %v2248, 8
    %v2289 = vpop.permute.xlu0 %2288
    %2290 = vrot.lane.b32.xlu0 %v2249, 8
    %v2291 = vpop.permute.xlu0 %2290
    %2292 = vrot.lane.b32.xlu0 %v2250, 8
    %v2293 = vpop.permute.xlu0 %2292
    %2294 = vrot.lane.b32.xlu0 %v2251, 8
    %v2295 = vpop.permute.xlu0 %2294
    %2296 = vrot.lane.b32.xlu0 %v2252, 8
    %v2297 = vpop.permute.xlu0 %2296
    %2298 = vrot.lane.b32.xlu0 %v2253, 8
    %v2299 = vpop.permute.xlu0 %2298
    %2300 = vrot.lane.b32.xlu0 %v2254, 8
    %v2301 = vpop.permute.xlu0 %2300
    %2302 = vrot.lane.b32.xlu0 %v2255, 8
    %v2303 = vpop.permute.xlu0 %2302
    %2320 = vst.msk [vmem:[#allocation3] sm:$0xff] %vm770, %v2273
    %2321 = vst.msk [vmem:[#allocation3 + $0x8] sm:$0xff] %vm770, %v2275
    %2322 = vst.msk [vmem:[#allocation3 + $0x10] sm:$0xff] %vm770, %v2277
    %2323 = vst.msk [vmem:[#allocation3 + $0x18] sm:$0xff] %vm770, %v2279
    %2324 = vst.msk [vmem:[#allocation3 + $0x20] sm:$0xff] %vm770, %v2281
    %2325 = vst.msk [vmem:[#allocation3 + $0x28] sm:$0xff] %vm770, %v2283
    %2326 = vst.msk [vmem:[#allocation3 + $0x30] sm:$0xff] %vm770, %v2285
    %2327 = vst.msk [vmem:[#allocation3 + $0x38] sm:$0xff] %vm770, %v2287
    %2328 = vst.msk [vmem:[#allocation3 + $0x40] sm:$0xff] %vm770, %v2289
    %2329 = vst.msk [vmem:[#allocation3 + $0x48] sm:$0xff] %vm770, %v2291
    %2330 = vst.msk [vmem:[#allocation3 + $0x50] sm:$0xff] %vm770, %v2293
    %2331 = vst.msk [vmem:[#allocation3 + $0x58] sm:$0xff] %vm770, %v2295
    %2332 = vst.msk [vmem:[#allocation3 + $0x60] sm:$0xff] %vm770, %v2297
    %2333 = vst.msk [vmem:[#allocation3 + $0x68] sm:$0xff] %vm770, %v2299
    %2334 = vst.msk [vmem:[#allocation3 + $0x70] sm:$0xff] %vm770, %v2301
    %2335 = vst.msk [vmem:[#allocation3 + $0x78] sm:$0xff] %vm770, %v2303
    %v2336 = vld [vmem:[%s544] sm:$0xff]
    %v2337 = vld [vmem:[%s544 + $0x10] sm:$0xff]
    %v2338 = vld [vmem:[%s544 + $0x20] sm:$0xff]
    %v2339 = vld [vmem:[%s544 + $0x30] sm:$0xff]
    %v2340 = vld [vmem:[%s544 + $0x40] sm:$0xff]
    %v2341 = vld [vmem:[%s544 + $0x50] sm:$0xff]
    %v2342 = vld [vmem:[%s544 + $0x60] sm:$0xff]
    %v2343 = vld [vmem:[%s544 + $0x70] sm:$0xff]
    %v2344 = vld [vmem:[%s544 + $0xa0] sm:$0xff]
    %v2345 = vld [vmem:[%s544 + $0xb0] sm:$0xff]
    %v2346 = vld [vmem:[%s544 + $0xc0] sm:$0xff]
    %v2347 = vld [vmem:[%s544 + $0xd0] sm:$0xff]
    %v2348 = vld [vmem:[%s544 + $0xe0] sm:$0xff]
    %v2349 = vld [vmem:[%s544 + $0xf0] sm:$0xff]
    %v2350 = vld [vmem:[%s544 + $0x100] sm:$0xff]
    %v2351 = vld [vmem:[%s544 + $0x110] sm:$0xff]
    %2368 = vrot.lane.b32.xlu0 %v2336, 12
    %v2369 = vpop.permute.xlu0 %2368
    %2370 = vrot.lane.b32.xlu0 %v2337, 12
    %v2371 = vpop.permute.xlu0 %2370
    %2372 = vrot.lane.b32.xlu0 %v2338, 12
    %v2373 = vpop.permute.xlu0 %2372
    %2374 = vrot.lane.b32.xlu0 %v2339, 12
    %v2375 = vpop.permute.xlu0 %2374
    %2376 = vrot.lane.b32.xlu0 %v2340, 12
    %v2377 = vpop.permute.xlu0 %2376
    %2378 = vrot.lane.b32.xlu0 %v2341, 12
    %v2379 = vpop.permute.xlu0 %2378
    %2380 = vrot.lane.b32.xlu0 %v2342, 12
    %v2381 = vpop.permute.xlu0 %2380
    %2382 = vrot.lane.b32.xlu0 %v2343, 12
    %v2383 = vpop.permute.xlu0 %2382
    %2384 = vrot.lane.b32.xlu0 %v2344, 12
    %v2385 = vpop.permute.xlu0 %2384
    %2386 = vrot.lane.b32.xlu0 %v2345, 12
    %v2387 = vpop.permute.xlu0 %2386
    %2388 = vrot.lane.b32.xlu0 %v2346, 12
    %v2389 = vpop.permute.xlu0 %2388
    %2390 = vrot.lane.b32.xlu0 %v2347, 12
    %v2391 = vpop.permute.xlu0 %2390
    %2392 = vrot.lane.b32.xlu0 %v2348, 12
    %v2393 = vpop.permute.xlu0 %2392
    %2394 = vrot.lane.b32.xlu0 %v2349, 12
    %v2395 = vpop.permute.xlu0 %2394
    %2396 = vrot.lane.b32.xlu0 %v2350, 12
    %v2397 = vpop.permute.xlu0 %2396
    %2398 = vrot.lane.b32.xlu0 %v2351, 12
    %v2399 = vpop.permute.xlu0 %2398
    %2416 = vst.msk [vmem:[#allocation3] sm:$0xff] %vm867, %v2369
    %2417 = vst.msk [vmem:[#allocation3 + $0x8] sm:$0xff] %vm867, %v2371
    %2418 = vst.msk [vmem:[#allocation3 + $0x10] sm:$0xff] %vm867, %v2373
    %2419 = vst.msk [vmem:[#allocation3 + $0x18] sm:$0xff] %vm867, %v2375
    %2420 = vst.msk [vmem:[#allocation3 + $0x20] sm:$0xff] %vm867, %v2377
    %2421 = vst.msk [vmem:[#allocation3 + $0x28] sm:$0xff] %vm867, %v2379
    %2422 = vst.msk [vmem:[#allocation3 + $0x30] sm:$0xff] %vm867, %v2381
    %2423 = vst.msk [vmem:[#allocation3 + $0x38] sm:$0xff] %vm867, %v2383
    %2424 = vst.msk [vmem:[#allocation3 + $0x40] sm:$0xff] %vm867, %v2385
    %2425 = vst.msk [vmem:[#allocation3 + $0x48] sm:$0xff] %vm867, %v2387
    %2426 = vst.msk [vmem:[#allocation3 + $0x50] sm:$0xff] %vm867, %v2389
    %2427 = vst.msk [vmem:[#allocation3 + $0x58] sm:$0xff] %vm867, %v2391
    %2428 = vst.msk [vmem:[#allocation3 + $0x60] sm:$0xff] %vm867, %v2393
    %2429 = vst.msk [vmem:[#allocation3 + $0x68] sm:$0xff] %vm867, %v2395
    %2430 = vst.msk [vmem:[#allocation3 + $0x70] sm:$0xff] %vm867, %v2397
    %2431 = vst.msk [vmem:[#allocation3 + $0x78] sm:$0xff] %vm867, %v2399
    %v2432 = vld [vmem:[%s544 + $0x1] sm:$0xff]
    %v2433 = vld [vmem:[%s544 + $0x11] sm:$0xff]
    %v2434 = vld [vmem:[%s544 + $0x21] sm:$0xff]
    %v2435 = vld [vmem:[%s544 + $0x31] sm:$0xff]
    %v2436 = vld [vmem:[%s544 + $0x41] sm:$0xff]
    %v2437 = vld [vmem:[%s544 + $0x51] sm:$0xff]
    %v2438 = vld [vmem:[%s544 + $0x61] sm:$0xff]
    %v2439 = vld [vmem:[%s544 + $0x71] sm:$0xff]
    %v2440 = vld [vmem:[%s544 + $0xa1] sm:$0xff]
    %v2441 = vld [vmem:[%s544 + $0xb1] sm:$0xff]
    %v2442 = vld [vmem:[%s544 + $0xc1] sm:$0xff]
    %v2443 = vld [vmem:[%s544 + $0xd1] sm:$0xff]
    %v2444 = vld [vmem:[%s544 + $0xe1] sm:$0xff]
    %v2445 = vld [vmem:[%s544 + $0xf1] sm:$0xff]
    %v2446 = vld [vmem:[%s544 + $0x101] sm:$0xff]
    %v2447 = vld [vmem:[%s544 + $0x111] sm:$0xff]
    %2464 = vrot.lane.b32.xlu0 %v2432, 16
    %v2465 = vpop.permute.xlu0 %2464
    %2466 = vrot.lane.b32.xlu0 %v2433, 16
    %v2467 = vpop.permute.xlu0 %2466
    %2468 = vrot.lane.b32.xlu0 %v2434, 16
    %v2469 = vpop.permute.xlu0 %2468
    %2470 = vrot.lane.b32.xlu0 %v2435, 16
    %v2471 = vpop.permute.xlu0 %2470
    %2472 = vrot.lane.b32.xlu0 %v2436, 16
    %v2473 = vpop.permute.xlu0 %2472
    %2474 = vrot.lane.b32.xlu0 %v2437, 16
    %v2475 = vpop.permute.xlu0 %2474
    %2476 = vrot.lane.b32.xlu0 %v2438, 16
    %v2477 = vpop.permute.xlu0 %2476
    %2478 = vrot.lane.b32.xlu0 %v2439, 16
    %v2479 = vpop.permute.xlu0 %2478
    %2480 = vrot.lane.b32.xlu0 %v2440, 16
    %v2481 = vpop.permute.xlu0 %2480
    %2482 = vrot.lane.b32.xlu0 %v2441, 16
    %v2483 = vpop.permute.xlu0 %2482
    %2484 = vrot.lane.b32.xlu0 %v2442, 16
    %v2485 = vpop.permute.xlu0 %2484
    %2486 = vrot.lane.b32.xlu0 %v2443, 16
    %v2487 = vpop.permute.xlu0 %2486
    %2488 = vrot.lane.b32.xlu0 %v2444, 16
    %v2489 = vpop.permute.xlu0 %2488
    %2490 = vrot.lane.b32.xlu0 %v2445, 16
    %v2491 = vpop.permute.xlu0 %2490
    %2492 = vrot.lane.b32.xlu0 %v2446, 16
    %v2493 = vpop.permute.xlu0 %2492
    %2494 = vrot.lane.b32.xlu0 %v2447, 16
    %v2495 = vpop.permute.xlu0 %2494
    %2512 = vst.msk [vmem:[#allocation3] sm:$0xff] %vm964, %v2465
    %2513 = vst.msk [vmem:[#allocation3 + $0x8] sm:$0xff] %vm964, %v2467
    %2514 = vst.msk [vmem:[#allocation3 + $0x10] sm:$0xff] %vm964, %v2469
    %2515 = vst.msk [vmem:[#allocation3 + $0x18] sm:$0xff] %vm964, %v2471
    %2516 = vst.msk [vmem:[#allocation3 + $0x20] sm:$0xff] %vm964, %v2473
    %2517 = vst.msk [vmem:[#allocation3 + $0x28] sm:$0xff] %vm964, %v2475
    %2518 = vst.msk [vmem:[#allocation3 + $0x30] sm:$0xff] %vm964, %v2477
    %2519 = vst.msk [vmem:[#allocation3 + $0x38] sm:$0xff] %vm964, %v2479
    %2520 = vst.msk [vmem:[#allocation3 + $0x40] sm:$0xff] %vm964, %v2481
    %2521 = vst.msk [vmem:[#allocation3 + $0x48] sm:$0xff] %vm964, %v2483
    %2522 = vst.msk [vmem:[#allocation3 + $0x50] sm:$0xff] %vm964, %v2485
    %2523 = vst.msk [vmem:[#allocation3 + $0x58] sm:$0xff] %vm964, %v2487
    %2524 = vst.msk [vmem:[#allocation3 + $0x60] sm:$0xff] %vm964, %v2489
    %2525 = vst.msk [vmem:[#allocation3 + $0x68] sm:$0xff] %vm964, %v2491
    %2526 = vst.msk [vmem:[#allocation3 + $0x70] sm:$0xff] %vm964, %v2493
    %2527 = vst.msk [vmem:[#allocation3 + $0x78] sm:$0xff] %vm964, %v2495
    %v2528 = vld [vmem:[%s544 + $0x2] sm:$0xff]
    %v2529 = vld [vmem:[%s544 + $0x12] sm:$0xff]
    %v2530 = vld [vmem:[%s544 + $0x22] sm:$0xff]
    %v2531 = vld [vmem:[%s544 + $0x32] sm:$0xff]
    %v2532 = vld [vmem:[%s544 + $0x42] sm:$0xff]
    %v2533 = vld [vmem:[%s544 + $0x52] sm:$0xff]
    %v2534 = vld [vmem:[%s544 + $0x62] sm:$0xff]
    %v2535 = vld [vmem:[%s544 + $0x72] sm:$0xff]
    %v2536 = vld [vmem:[%s544 + $0xa2] sm:$0xff]
    %v2537 = vld [vmem:[%s544 + $0xb2] sm:$0xff]
    %v2538 = vld [vmem:[%s544 + $0xc2] sm:$0xff]
    %v2539 = vld [vmem:[%s544 + $0xd2] sm:$0xff]
    %v2540 = vld [vmem:[%s544 + $0xe2] sm:$0xff]
    %v2541 = vld [vmem:[%s544 + $0xf2] sm:$0xff]
    %v2542 = vld [vmem:[%s544 + $0x102] sm:$0xff]
    %v2543 = vld [vmem:[%s544 + $0x112] sm:$0xff]
    %2560 = vrot.lane.b32.xlu0 %v2528, 20
    %v2561 = vpop.permute.xlu0 %2560
    %2562 = vrot.lane.b32.xlu0 %v2529, 20
    %v2563 = vpop.permute.xlu0 %2562
    %2564 = vrot.lane.b32.xlu0 %v2530, 20
    %v2565 = vpop.permute.xlu0 %2564
    %2566 = vrot.lane.b32.xlu0 %v2531, 20
    %v2567 = vpop.permute.xlu0 %2566
    %2568 = vrot.lane.b32.xlu0 %v2532, 20
    %v2569 = vpop.permute.xlu0 %2568
    %2570 = vrot.lane.b32.xlu0 %v2533, 20
    %v2571 = vpop.permute.xlu0 %2570
    %2572 = vrot.lane.b32.xlu0 %v2534, 20
    %v2573 = vpop.permute.xlu0 %2572
    %2574 = vrot.lane.b32.xlu0 %v2535, 20
    %v2575 = vpop.permute.xlu0 %2574
    %2576 = vrot.lane.b32.xlu0 %v2536, 20
    %v2577 = vpop.permute.xlu0 %2576
    %2578 = vrot.lane.b32.xlu0 %v2537, 20
    %v2579 = vpop.permute.xlu0 %2578
    %2580 = vrot.lane.b32.xlu0 %v2538, 20
    %v2581 = vpop.permute.xlu0 %2580
    %2582 = vrot.lane.b32.xlu0 %v2539, 20
    %v2583 = vpop.permute.xlu0 %2582
    %2584 = vrot.lane.b32.xlu0 %v2540, 20
    %v2585 = vpop.permute.xlu0 %2584
    %2586 = vrot.lane.b32.xlu0 %v2541, 20
    %v2587 = vpop.permute.xlu0 %2586
    %2588 = vrot.lane.b32.xlu0 %v2542, 20
    %v2589 = vpop.permute.xlu0 %2588
    %2590 = vrot.lane.b32.xlu0 %v2543, 20
    %v2591 = vpop.permute.xlu0 %2590
    %2608 = vst.msk [vmem:[#allocation3] sm:$0xff] %vm1061, %v2561
    %2609 = vst.msk [vmem:[#allocation3 + $0x8] sm:$0xff] %vm1061, %v2563
    %2610 = vst.msk [vmem:[#allocation3 + $0x10] sm:$0xff] %vm1061, %v2565
    %2611 = vst.msk [vmem:[#allocation3 + $0x18] sm:$0xff] %vm1061, %v2567
    %2612 = vst.msk [vmem:[#allocation3 + $0x20] sm:$0xff] %vm1061, %v2569
    %2613 = vst.msk [vmem:[#allocation3 + $0x28] sm:$0xff] %vm1061, %v2571
    %2614 = vst.msk [vmem:[#allocation3 + $0x30] sm:$0xff] %vm1061, %v2573
    %2615 = vst.msk [vmem:[#allocation3 + $0x38] sm:$0xff] %vm1061, %v2575
    %2616 = vst.msk [vmem:[#allocation3 + $0x40] sm:$0xff] %vm1061, %v2577
    %2617 = vst.msk [vmem:[#allocation3 + $0x48] sm:$0xff] %vm1061, %v2579
    %2618 = vst.msk [vmem:[#allocation3 + $0x50] sm:$0xff] %vm1061, %v2581
    %2619 = vst.msk [vmem:[#allocation3 + $0x58] sm:$0xff] %vm1061, %v2583
    %2620 = vst.msk [vmem:[#allocation3 + $0x60] sm:$0xff] %vm1061, %v2585
    %2621 = vst.msk [vmem:[#allocation3 + $0x68] sm:$0xff] %vm1061, %v2587
    %2622 = vst.msk [vmem:[#allocation3 + $0x70] sm:$0xff] %vm1061, %v2589
    %2623 = vst.msk [vmem:[#allocation3 + $0x78] sm:$0xff] %vm1061, %v2591
    %v2624 = vld [vmem:[%s1078] sm:$0xff]
    %v2625 = vld [vmem:[%s1078 + $0x10] sm:$0xff]
    %v2626 = vld [vmem:[%s1078 + $0x20] sm:$0xff]
    %v2627 = vld [vmem:[%s1078 + $0x30] sm:$0xff]
    %v2628 = vld [vmem:[%s1078 + $0x40] sm:$0xff]
    %v2629 = vld [vmem:[%s1078 + $0x50] sm:$0xff]
    %v2630 = vld [vmem:[%s1078 + $0x60] sm:$0xff]
    %v2631 = vld [vmem:[%s1078 + $0x70] sm:$0xff]
    %v2632 = vld [vmem:[%s1078 + $0xa0] sm:$0xff]
    %v2633 = vld [vmem:[%s1078 + $0xb0] sm:$0xff]
    %v2634 = vld [vmem:[%s1078 + $0xc0] sm:$0xff]
    %v2635 = vld [vmem:[%s1078 + $0xd0] sm:$0xff]
    %v2636 = vld [vmem:[%s1078 + $0xe0] sm:$0xff]
    %v2637 = vld [vmem:[%s1078 + $0xf0] sm:$0xff]
    %v2638 = vld [vmem:[%s1078 + $0x100] sm:$0xff]
    %v2639 = vld [vmem:[%s1078 + $0x110] sm:$0xff]
    %2656 = vrot.lane.b32.xlu0 %v2624, 24
    %v2657 = vpop.permute.xlu0 %2656
    %2658 = vrot.lane.b32.xlu0 %v2625, 24
    %v2659 = vpop.permute.xlu0 %2658
    %2660 = vrot.lane.b32.xlu0 %v2626, 24
    %v2661 = vpop.permute.xlu0 %2660
    %2662 = vrot.lane.b32.xlu0 %v2627, 24
    %v2663 = vpop.permute.xlu0 %2662
    %2664 = vrot.lane.b32.xlu0 %v2628, 24
    %v2665 = vpop.permute.xlu0 %2664
    %2666 = vrot.lane.b32.xlu0 %v2629, 24
    %v2667 = vpop.permute.xlu0 %2666
    %2668 = vrot.lane.b32.xlu0 %v2630, 24
    %v2669 = vpop.permute.xlu0 %2668
    %2670 = vrot.lane.b32.xlu0 %v2631, 24
    %v2671 = vpop.permute.xlu0 %2670
    %2672 = vrot.lane.b32.xlu0 %v2632, 24
    %v2673 = vpop.permute.xlu0 %2672
    %2674 = vrot.lane.b32.xlu0 %v2633, 24
    %v2675 = vpop.permute.xlu0 %2674
    %2676 = vrot.lane.b32.xlu0 %v2634, 24
    %v2677 = vpop.permute.xlu0 %2676
    %2678 = vrot.lane.b32.xlu0 %v2635, 24
    %v2679 = vpop.permute.xlu0 %2678
    %2680 = vrot.lane.b32.xlu0 %v2636, 24
    %v2681 = vpop.permute.xlu0 %2680
    %2682 = vrot.lane.b32.xlu0 %v2637, 24
    %v2683 = vpop.permute.xlu0 %2682
    %2684 = vrot.lane.b32.xlu0 %v2638, 24
    %v2685 = vpop.permute.xlu0 %2684
    %2686 = vrot.lane.b32.xlu0 %v2639, 24
    %v2687 = vpop.permute.xlu0 %2686
    %2704 = vst.msk [vmem:[#allocation3] sm:$0xff] %vm1159, %v2657
    %2705 = vst.msk [vmem:[#allocation3 + $0x8] sm:$0xff] %vm1159, %v2659
    %2706 = vst.msk [vmem:[#allocation3 + $0x10] sm:$0xff] %vm1159, %v2661
    %2707 = vst.msk [vmem:[#allocation3 + $0x18] sm:$0xff] %vm1159, %v2663
    %2708 = vst.msk [vmem:[#allocation3 + $0x20] sm:$0xff] %vm1159, %v2665
    %2709 = vst.msk [vmem:[#allocation3 + $0x28] sm:$0xff] %vm1159, %v2667
    %2710 = vst.msk [vmem:[#allocation3 + $0x30] sm:$0xff] %vm1159, %v2669
    %2711 = vst.msk [vmem:[#allocation3 + $0x38] sm:$0xff] %vm1159, %v2671
    %2712 = vst.msk [vmem:[#allocation3 + $0x40] sm:$0xff] %vm1159, %v2673
    %2713 = vst.msk [vmem:[#allocation3 + $0x48] sm:$0xff] %vm1159, %v2675
    %2714 = vst.msk [vmem:[#allocation3 + $0x50] sm:$0xff] %vm1159, %v2677
    %2715 = vst.msk [vmem:[#allocation3 + $0x58] sm:$0xff] %vm1159, %v2679
    %2716 = vst.msk [vmem:[#allocation3 + $0x60] sm:$0xff] %vm1159, %v2681
    %2717 = vst.msk [vmem:[#allocation3 + $0x68] sm:$0xff] %vm1159, %v2683
    %2718 = vst.msk [vmem:[#allocation3 + $0x70] sm:$0xff] %vm1159, %v2685
    %2719 = vst.msk [vmem:[#allocation3 + $0x78] sm:$0xff] %vm1159, %v2687
    %v2720 = vld [vmem:[%s1078 + $0x1] sm:$0xff]
    %v2721 = vld [vmem:[%s1078 + $0x11] sm:$0xff]
    %v2722 = vld [vmem:[%s1078 + $0x21] sm:$0xff]
    %v2723 = vld [vmem:[%s1078 + $0x31] sm:$0xff]
    %v2724 = vld [vmem:[%s1078 + $0x41] sm:$0xff]
    %v2725 = vld [vmem:[%s1078 + $0x51] sm:$0xff]
    %v2726 = vld [vmem:[%s1078 + $0x61] sm:$0xff]
    %v2727 = vld [vmem:[%s1078 + $0x71] sm:$0xff]
    %v2728 = vld [vmem:[%s1078 + $0xa1] sm:$0xff]
    %v2729 = vld [vmem:[%s1078 + $0xb1] sm:$0xff]
    %v2730 = vld [vmem:[%s1078 + $0xc1] sm:$0xff]
    %v2731 = vld [vmem:[%s1078 + $0xd1] sm:$0xff]
    %v2732 = vld [vmem:[%s1078 + $0xe1] sm:$0xff]
    %v2733 = vld [vmem:[%s1078 + $0xf1] sm:$0xff]
    %v2734 = vld [vmem:[%s1078 + $0x101] sm:$0xff]
    %v2735 = vld [vmem:[%s1078 + $0x111] sm:$0xff]
    %2752 = vrot.lane.b32.xlu0 %v2720, 28
    %v2753 = vpop.permute.xlu0 %2752
    %2754 = vrot.lane.b32.xlu0 %v2721, 28
    %v2755 = vpop.permute.xlu0 %2754
    %2756 = vrot.lane.b32.xlu0 %v2722, 28
    %v2757 = vpop.permute.xlu0 %2756
    %2758 = vrot.lane.b32.xlu0 %v2723, 28
    %v2759 = vpop.permute.xlu0 %2758
    %2760 = vrot.lane.b32.xlu0 %v2724, 28
    %v2761 = vpop.permute.xlu0 %2760
    %2762 = vrot.lane.b32.xlu0 %v2725, 28
    %v2763 = vpop.permute.xlu0 %2762
    %2764 = vrot.lane.b32.xlu0 %v2726, 28
    %v2765 = vpop.permute.xlu0 %2764
    %2766 = vrot.lane.b32.xlu0 %v2727, 28
    %v2767 = vpop.permute.xlu0 %2766
    %2768 = vrot.lane.b32.xlu0 %v2728, 28
    %v2769 = vpop.permute.xlu0 %2768
    %2770 = vrot.lane.b32.xlu0 %v2729, 28
    %v2771 = vpop.permute.xlu0 %2770
    %2772 = vrot.lane.b32.xlu0 %v2730, 28
    %v2773 = vpop.permute.xlu0 %2772
    %2774 = vrot.lane.b32.xlu0 %v2731, 28
    %v2775 = vpop.permute.xlu0 %2774
    %2776 = vrot.lane.b32.xlu0 %v2732, 28
    %v2777 = vpop.permute.xlu0 %2776
    %2778 = vrot.lane.b32.xlu0 %v2733, 28
    %v2779 = vpop.permute.xlu0 %2778
    %2780 = vrot.lane.b32.xlu0 %v2734, 28
    %v2781 = vpop.permute.xlu0 %2780
    %2782 = vrot.lane.b32.xlu0 %v2735, 28
    %v2783 = vpop.permute.xlu0 %2782
    %2800 = vst.msk [vmem:[#allocation3] sm:$0xff] %vm1256, %v2753
    %2801 = vst.msk [vmem:[#allocation3 + $0x8] sm:$0xff] %vm1256, %v2755
    %2802 = vst.msk [vmem:[#allocation3 + $0x10] sm:$0xff] %vm1256, %v2757
    %2803 = vst.msk [vmem:[#allocation3 + $0x18] sm:$0xff] %vm1256, %v2759
    %2804 = vst.msk [vmem:[#allocation3 + $0x20] sm:$0xff] %vm1256, %v2761
    %2805 = vst.msk [vmem:[#allocation3 + $0x28] sm:$0xff] %vm1256, %v2763
    %2806 = vst.msk [vmem:[#allocation3 + $0x30] sm:$0xff] %vm1256, %v2765
    %2807 = vst.msk [vmem:[#allocation3 + $0x38] sm:$0xff] %vm1256, %v2767
    %2808 = vst.msk [vmem:[#allocation3 + $0x40] sm:$0xff] %vm1256, %v2769
    %2809 = vst.msk [vmem:[#allocation3 + $0x48] sm:$0xff] %vm1256, %v2771
    %2810 = vst.msk [vmem:[#allocation3 + $0x50] sm:$0xff] %vm1256, %v2773
    %2811 = vst.msk [vmem:[#allocation3 + $0x58] sm:$0xff] %vm1256, %v2775
    %2812 = vst.msk [vmem:[#allocation3 + $0x60] sm:$0xff] %vm1256, %v2777
    %2813 = vst.msk [vmem:[#allocation3 + $0x68] sm:$0xff] %vm1256, %v2779
    %2814 = vst.msk [vmem:[#allocation3 + $0x70] sm:$0xff] %vm1256, %v2781
    %2815 = vst.msk [vmem:[#allocation3 + $0x78] sm:$0xff] %vm1256, %v2783
    %v2816 = vld [vmem:[%s1078 + $0x2] sm:$0xff]
    %v2817 = vld [vmem:[%s1078 + $0x12] sm:$0xff]
    %v2818 = vld [vmem:[%s1078 + $0x22] sm:$0xff]
    %v2819 = vld [vmem:[%s1078 + $0x32] sm:$0xff]
    %v2820 = vld [vmem:[%s1078 + $0x42] sm:$0xff]
    %v2821 = vld [vmem:[%s1078 + $0x52] sm:$0xff]
    %v2822 = vld [vmem:[%s1078 + $0x62] sm:$0xff]
    %v2823 = vld [vmem:[%s1078 + $0x72] sm:$0xff]
    %v2824 = vld [vmem:[%s1078 + $0xa2] sm:$0xff]
    %v2825 = vld [vmem:[%s1078 + $0xb2] sm:$0xff]
    %v2826 = vld [vmem:[%s1078 + $0xc2] sm:$0xff]
    %v2827 = vld [vmem:[%s1078 + $0xd2] sm:$0xff]
    %v2828 = vld [vmem:[%s1078 + $0xe2] sm:$0xff]
    %v2829 = vld [vmem:[%s1078 + $0xf2] sm:$0xff]
    %v2830 = vld [vmem:[%s1078 + $0x102] sm:$0xff]
    %v2831 = vld [vmem:[%s1078 + $0x112] sm:$0xff]
    %2848 = vrot.lane.b32.xlu0 %v2816, 32
    %v2849 = vpop.permute.xlu0 %2848
    %2850 = vrot.lane.b32.xlu0 %v2817, 32
    %v2851 = vpop.permute.xlu0 %2850
    %2852 = vrot.lane.b32.xlu0 %v2818, 32
    %v2853 = vpop.permute.xlu0 %2852
    %2854 = vrot.lane.b32.xlu0 %v2819, 32
    %v2855 = vpop.permute.xlu0 %2854
    %2856 = vrot.lane.b32.xlu0 %v2820, 32
    %v2857 = vpop.permute.xlu0 %2856
    %2858 = vrot.lane.b32.xlu0 %v2821, 32
    %v2859 = vpop.permute.xlu0 %2858
    %2860 = vrot.lane.b32.xlu0 %v2822, 32
    %v2861 = vpop.permute.xlu0 %2860
    %2862 = vrot.lane.b32.xlu0 %v2823, 32
    %v2863 = vpop.permute.xlu0 %2862
    %2864 = vrot.lane.b32.xlu0 %v2824, 32
    %v2865 = vpop.permute.xlu0 %2864
    %2866 = vrot.lane.b32.xlu0 %v2825, 32
    %v2867 = vpop.permute.xlu0 %2866
    %2868 = vrot.lane.b32.xlu0 %v2826, 32
    %v2869 = vpop.permute.xlu0 %2868
    %2870 = vrot.lane.b32.xlu0 %v2827, 32
    %v2871 = vpop.permute.xlu0 %2870
    %2872 = vrot.lane.b32.xlu0 %v2828, 32
    %v2873 = vpop.permute.xlu0 %2872
    %2874 = vrot.lane.b32.xlu0 %v2829, 32
    %v2875 = vpop.permute.xlu0 %2874
    %2876 = vrot.lane.b32.xlu0 %v2830, 32
    %v2877 = vpop.permute.xlu0 %2876
    %2878 = vrot.lane.b32.xlu0 %v2831, 32
    %v2879 = vpop.permute.xlu0 %2878
    %2896 = vst.msk [vmem:[#allocation3] sm:$0xff] %vm1353, %v2849
    %2897 = vst.msk [vmem:[#allocation3 + $0x8] sm:$0xff] %vm1353, %v2851
    %2898 = vst.msk [vmem:[#allocation3 + $0x10] sm:$0xff] %vm1353, %v2853
    %2899 = vst.msk [vmem:[#allocation3 + $0x18] sm:$0xff] %vm1353, %v2855
    %2900 = vst.msk [vmem:[#allocation3 + $0x20] sm:$0xff] %vm1353, %v2857
    %2901 = vst.msk [vmem:[#allocation3 + $0x28] sm:$0xff] %vm1353, %v2859
    %2902 = vst.msk [vmem:[#allocation3 + $0x30] sm:$0xff] %vm1353, %v2861
    %2903 = vst.msk [vmem:[#allocation3 + $0x38] sm:$0xff] %vm1353, %v2863
    %2904 = vst.msk [vmem:[#allocation3 + $0x40] sm:$0xff] %vm1353, %v2865
    %2905 = vst.msk [vmem:[#allocation3 + $0x48] sm:$0xff] %vm1353, %v2867
    %2906 = vst.msk [vmem:[#allocation3 + $0x50] sm:$0xff] %vm1353, %v2869
    %2907 = vst.msk [vmem:[#allocation3 + $0x58] sm:$0xff] %vm1353, %v2871
    %2908 = vst.msk [vmem:[#allocation3 + $0x60] sm:$0xff] %vm1353, %v2873
    %2909 = vst.msk [vmem:[#allocation3 + $0x68] sm:$0xff] %vm1353, %v2875
    %2910 = vst.msk [vmem:[#allocation3 + $0x70] sm:$0xff] %vm1353, %v2877
    %2911 = vst.msk [vmem:[#allocation3 + $0x78] sm:$0xff] %vm1353, %v2879
    %v2912 = vld [vmem:[#allocation3] sm:$0xff]
    %v2913 = vld [vmem:[#allocation3 + $0x8] sm:$0xff]
    %v2914 = vld [vmem:[#allocation3 + $0x10] sm:$0xff]
    %v2915 = vld [vmem:[#allocation3 + $0x18] sm:$0xff]
    %v2916 = vld [vmem:[#allocation3 + $0x20] sm:$0xff]
    %v2917 = vld [vmem:[#allocation3 + $0x28] sm:$0xff]
    %v2918 = vld [vmem:[#allocation3 + $0x30] sm:$0xff]
    %v2919 = vld [vmem:[#allocation3 + $0x38] sm:$0xff]
    %v2920 = vld [vmem:[#allocation3 + $0x40] sm:$0xff]
    %v2921 = vld [vmem:[#allocation3 + $0x48] sm:$0xff]
    %v2922 = vld [vmem:[#allocation3 + $0x50] sm:$0xff]
    %v2923 = vld [vmem:[#allocation3 + $0x58] sm:$0xff]
    %v2924 = vld [vmem:[#allocation3 + $0x60] sm:$0xff]
    %v2925 = vld [vmem:[#allocation3 + $0x68] sm:$0xff]
    %v2926 = vld [vmem:[#allocation3 + $0x70] sm:$0xff]
    %v2927 = vld [vmem:[#allocation3 + $0x78] sm:$0xff]
    %v2928 = vld [vmem:[%s12] sm:$0xff]
    %v2929 = vld [vmem:[%s12 + $0x8] sm:$0xff]
    %v2930 = vld [vmem:[%s12 + $0x10] sm:$0xff]
    %v2931 = vld [vmem:[%s12 + $0x18] sm:$0xff]
    %v2932 = vld [vmem:[%s12 + $0x20] sm:$0xf]
    %v2933 = vld [vmem:[%s13] sm:$0x1]
    %v2935 = vlaneseq
    %v2936 = vshrl.u32 %v2935, 7
    %v2937 = vsub.s32 0, %v2936
    %v2938 = vrot.slane %v2933, %v2937
    %v2941 = vsel %vm85, %v2912, 0
    %v2944 = vsel %vm85, %v2913, 0
    %v2947 = vsel %vm85, %v2914, 0
    %v2950 = vsel %vm85, %v2915, 0
    %v2953 = vsel %vm85, %v2916, 0
    %v2956 = vsel %vm85, %v2917, 0
    %v2959 = vsel %vm85, %v2918, 0
    %v2962 = vsel %vm85, %v2919, 0
    %v2965 = vsel %vm85, %v2920, 0
    %v2968 = vsel %vm85, %v2921, 0
    %v2971 = vsel %vm85, %v2922, 0
    %v2974 = vsel %vm85, %v2923, 0
    %v2977 = vsel %vm85, %v2924, 0
    %v2980 = vsel %vm85, %v2925, 0
    %v2983 = vsel %vm85, %v2926, 0
    %v2986 = vsel %vm85, %v2927, 0
    %v2989 = vsel %vm134, %v2932, 0
    %2991 = vmatprep.subr.mxu0 0.0
    %2992 = vmatpush1.msra.mxu0 %v2928
    %2993 = vmatprep.subr.mxu0 0.0
    %2994 = vmatpush1.msra.mxu0 %v2929
    %2995 = vmatprep.subr.mxu0 0.0
    %2996 = vmatpush1.msra.mxu0 %v2930
    %2997 = vmatprep.subr.mxu0 0.0
    %2998 = vmatpush1.msra.mxu0 %v2931
    %2999 = vmatprep.subr.mxu0 0.0
    %3000 = vmatpush1.msra.mxu0 %v2989
    %3001 = vmatprep.subr.mxu0 0.0
    %3002 = vmatpush1.msra.mxu0 0.0
    %3003 = vmatprep.subr.mxu0 0.0
    %3004 = vmatpush1.msra.mxu0 0.0
    %3005 = vmatprep.subr.mxu0 0.0
    %3006 = vmatpush1.msra.mxu0 0.0
    %3007 = vmatprep.subr.mxu0 0.0
    %3008 = vmatpush1.msra.mxu0 0.0
    %3009 = vmatprep.subr.mxu0 0.0
    %3010 = vmatpush1.msra.mxu0 0.0
    %3011 = vmatprep.subr.mxu0 0.0
    %3012 = vmatpush1.msra.mxu0 0.0
    %3013 = vmatprep.subr.mxu0 0.0
    %3014 = vmatpush1.msra.mxu0 0.0
    %3015 = vmatprep.subr.mxu0 0.0
    %3016 = vmatpush1.msra.mxu0 0.0
    %3017 = vmatprep.subr.mxu0 0.0
    %3018 = vmatpush1.msra.mxu0 0.0
    %3019 = vmatprep.subr.mxu0 0.0
    %3020 = vmatpush1.msra.mxu0 0.0
    %3021 = vmatprep.subr.mxu0 0.0
    %3022 = vmatpush1.msra.mxu0 0.0
    %3023 = vmatprep.subr.mxu0 0.0
    %3024 = vmatpush1.msra.mxu0 0.0
    %3025 = vmatprep.subr.mxu0 0.0
    %3026 = vmatpush1.msra.mxu0 0.0
    %3027 = vmatprep.subr.mxu0 0.0
    %3028 = vmatpush1.msra.mxu0 0.0
    %3029 = vmatprep.subr.mxu0 0.0
    %3030 = vmatpush1.msra.mxu0 0.0
    %3031 = vmatprep.subr.mxu0 0.0
    %3032 = vmatpush1.msra.mxu0 0.0
    %3033 = vmatprep.subr.mxu0 0.0
    %3034 = vmatpush1.msra.mxu0 0.0
    %3035 = vmatprep.subr.mxu0 0.0
    %3036 = vmatpush1.msra.mxu0 0.0
    %3037 = vmatprep.subr.mxu0 0.0
    %3038 = vmatpush1.msra.mxu0 0.0
    %3039 = vmatprep.subr.mxu0 0.0
    %3040 = vmatpush1.msra.mxu0 0.0
    %3041 = vmatprep.subr.mxu0 0.0
    %3042 = vmatpush1.msra.mxu0 0.0
    %3043 = vmatprep.subr.mxu0 0.0
    %3044 = vmatpush1.msra.mxu0 0.0
    %3045 = vmatprep.subr.mxu0 0.0
    %3046 = vmatpush1.msra.mxu0 0.0
    %3047 = vmatprep.subr.mxu0 0.0
    %3048 = vmatpush1.msra.mxu0 0.0
    %3049 = vmatprep.subr.mxu0 0.0
    %3050 = vmatpush1.msra.mxu0 0.0
    %3051 = vmatprep.subr.mxu0 0.0
    %3052 = vmatpush1.msra.mxu0 0.0
    %3053 = vmatprep.subr.mxu0 0.0
    %3054 = vmatpush1.msra.mxu0 0.0
    %3055 = vmatprep.mubr.f32.mxu0 0.0
    %3056 = vmatmul.mubr.f32.gmra.mrb[0].mxu0 %v2941
    %v3057 = vpop.f32.mrb[0].mxu0
    %v3058 = vadd.f32 %v2938, %v3057
    %v3059 = vpop.f32.mrb[0].mxu0
    %3060 = vmatprep.mubr.f32.mxu0 0.0
    %3061 = vmatmul.mubr.f32.gmra.mrb[0].mxu0 %v2944
    %v3062 = vpop.f32.mrb[0].mxu0
    %v3063 = vadd.f32 %v2938, %v3062
    %v3064 = vpop.f32.mrb[0].mxu0
    %3065 = vmatprep.mubr.f32.mxu0 0.0
    %3066 = vmatmul.mubr.f32.gmra.mrb[0].mxu0 %v2947
    %v3067 = vpop.f32.mrb[0].mxu0
    %v3068 = vadd.f32 %v2938, %v3067
    %v3069 = vpop.f32.mrb[0].mxu0
    %3070 = vmatprep.mubr.f32.mxu0 0.0
    %3071 = vmatmul.mubr.f32.gmra.mrb[0].mxu0 %v2950
    %v3072 = vpop.f32.mrb[0].mxu0
    %v3073 = vadd.f32 %v2938, %v3072
    %v3074 = vpop.f32.mrb[0].mxu0
    %3075 = vmatprep.mubr.f32.mxu0 0.0
    %3076 = vmatmul.mubr.f32.gmra.mrb[0].mxu0 %v2953
    %v3077 = vpop.f32.mrb[0].mxu0
    %v3078 = vadd.f32 %v2938, %v3077
    %v3079 = vpop.f32.mrb[0].mxu0
    %3080 = vmatprep.mubr.f32.mxu0 0.0
    %3081 = vmatmul.mubr.f32.gmra.mrb[0].mxu0 %v2956
    %v3082 = vpop.f32.mrb[0].mxu0
    %v3083 = vadd.f32 %v2938, %v3082
    %v3084 = vpop.f32.mrb[0].mxu0
    %3085 = vmatprep.mubr.f32.mxu0 0.0
    %3086 = vmatmul.mubr.f32.gmra.mrb[0].mxu0 %v2959
    %v3087 = vpop.f32.mrb[0].mxu0
    %v3088 = vadd.f32 %v2938, %v3087
    %v3089 = vpop.f32.mrb[0].mxu0
    %3090 = vmatprep.mubr.f32.mxu0 0.0
    %3091 = vmatmul.mubr.f32.gmra.mrb[0].mxu0 %v2962
    %v3092 = vpop.f32.mrb[0].mxu0
    %v3093 = vadd.f32 %v2938, %v3092
    %v3094 = vpop.f32.mrb[0].mxu0
    %3095 = vmatprep.mubr.f32.mxu0 0.0
    %3096 = vmatmul.mubr.f32.gmra.mrb[0].mxu0 %v2965
    %v3097 = vpop.f32.mrb[0].mxu0
    %v3098 = vadd.f32 %v2938, %v3097
    %v3099 = vpop.f32.mrb[0].mxu0
    %3100 = vmatprep.mubr.f32.mxu0 0.0
    %3101 = vmatmul.mubr.f32.gmra.mrb[0].mxu0 %v2968
    %v3102 = vpop.f32.mrb[0].mxu0
    %v3103 = vadd.f32 %v2938, %v3102
    %v3104 = vpop.f32.mrb[0].mxu0
    %3105 = vmatprep.mubr.f32.mxu0 0.0
    %3106 = vmatmul.mubr.f32.gmra.mrb[0].mxu0 %v2971
    %v3107 = vpop.f32.mrb[0].mxu0
    %v3108 = vadd.f32 %v2938, %v3107
    %v3109 = vpop.f32.mrb[0].mxu0
    %3110 = vmatprep.mubr.f32.mxu0 0.0
    %3111 = vmatmul.mubr.f32.gmra.mrb[0].mxu0 %v2974
    %v3112 = vpop.f32.mrb[0].mxu0
    %v3113 = vadd.f32 %v2938, %v3112
    %v3114 = vpop.f32.mrb[0].mxu0
    %3115 = vmatprep.mubr.f32.mxu0 0.0
    %3116 = vmatmul.mubr.f32.gmra.mrb[0].mxu0 %v2977
    %v3117 = vpop.f32.mrb[0].mxu0
    %v3118 = vadd.f32 %v2938, %v3117
    %v3119 = vpop.f32.mrb[0].mxu0
    %3120 = vmatprep.mubr.f32.mxu0 0.0
    %3121 = vmatmul.mubr.f32.gmra.mrb[0].mxu0 %v2980
    %v3122 = vpop.f32.mrb[0].mxu0
    %v3123 = vadd.f32 %v2938, %v3122
    %v3124 = vpop.f32.mrb[0].mxu0
    %3125 = vmatprep.mubr.f32.mxu0 0.0
    %3126 = vmatmul.mubr.f32.gmra.mrb[0].mxu0 %v2983
    %v3127 = vpop.f32.mrb[0].mxu0
    %v3128 = vadd.f32 %v2938, %v3127
    %v3129 = vpop.f32.mrb[0].mxu0
    %3130 = vmatprep.mubr.f32.mxu0 0.0
    %3131 = vmatmul.mubr.f32.gmra.mrb[0].mxu0 %v2986
    %v3132 = vpop.f32.mrb[0].mxu0
    %v3133 = vadd.f32 %v2938, %v3132
    %v3134 = vpop.f32.mrb[0].mxu0
    %3135 = vdwg.mxu0
    %v3136 = vmax.f32 %v3058, 0.0
    %v3137 = vmax.f32 %v3063, 0.0
    %v3138 = vmax.f32 %v3068, 0.0
    %v3139 = vmax.f32 %v3073, 0.0
    %v3140 = vmax.f32 %v3078, 0.0
    %v3141 = vmax.f32 %v3083, 0.0
    %v3142 = vmax.f32 %v3088, 0.0
    %v3143 = vmax.f32 %v3093, 0.0
    %v3144 = vmax.f32 %v3098, 0.0
    %v3145 = vmax.f32 %v3103, 0.0
    %v3146 = vmax.f32 %v3108, 0.0
    %v3147 = vmax.f32 %v3113, 0.0
    %v3148 = vmax.f32 %v3118, 0.0
    %v3149 = vmax.f32 %v3123, 0.0
    %v3150 = vmax.f32 %v3128, 0.0
    %v3151 = vmax.f32 %v3133, 0.0
    %v3152 = vld [vmem:[%s14] sm:$0xf]
    %v3153 = vld [vmem:[%s15] sm:$0x1]
    %v3155 = vlaneseq
    %v3156 = vshrl.u32 %v3155, 7
    %v3157 = vsub.s32 0, %v3156
    %v3158 = vrot.slane %v3153, %v3157
    %v3161 = vsel %vm283, %v3136, 0
    %v3164 = vsel %vm283, %v3137, 0
    %v3167 = vsel %vm283, %v3138, 0
    %v3170 = vsel %vm283, %v3139, 0
    %v3173 = vsel %vm283, %v3140, 0
    %v3176 = vsel %vm283, %v3141, 0
    %v3179 = vsel %vm283, %v3142, 0
    %v3182 = vsel %vm283, %v3143, 0
    %v3185 = vsel %vm283, %v3144, 0
    %v3188 = vsel %vm283, %v3145, 0
    %v3191 = vsel %vm283, %v3146, 0
    %v3194 = vsel %vm283, %v3147, 0
    %v3197 = vsel %vm283, %v3148, 0
    %v3200 = vsel %vm283, %v3149, 0
    %v3203 = vsel %vm283, %v3150, 0
    %v3206 = vsel %vm283, %v3151, 0
    %v3209 = vsel %vm134, %v3152, 0
    %3211 = vmatprep.subr.mxu0 0.0
    %3212 = vmatpush1.msra.mxu0 %v3209
    %3213 = vmatprep.subr.mxu0 0.0
    %3214 = vmatpush1.msra.mxu0 0.0
    %3215 = vmatprep.subr.mxu0 0.0
    %3216 = vmatpush1.msra.mxu0 0.0
    %3217 = vmatprep.subr.mxu0 0.0
    %3218 = vmatpush1.msra.mxu0 0.0
    %3219 = vmatprep.subr.mxu0 0.0
    %3220 = vmatpush1.msra.mxu0 0.0
    %3221 = vmatprep.subr.mxu0 0.0
    %3222 = vmatpush1.msra.mxu0 0.0
    %3223 = vmatprep.subr.mxu0 0.0
    %3224 = vmatpush1.msra.mxu0 0.0
    %3225 = vmatprep.subr.mxu0 0.0
    %3226 = vmatpush1.msra.mxu0 0.0
    %3227 = vmatprep.subr.mxu0 0.0
    %3228 = vmatpush1.msra.mxu0 0.0
    %3229 = vmatprep.subr.mxu0 0.0
    %3230 = vmatpush1.msra.mxu0 0.0
    %3231 = vmatprep.subr.mxu0 0.0
    %3232 = vmatpush1.msra.mxu0 0.0
    %3233 = vmatprep.subr.mxu0 0.0
    %3234 = vmatpush1.msra.mxu0 0.0
    %3235 = vmatprep.subr.mxu0 0.0
    %3236 = vmatpush1.msra.mxu0 0.0
    %3237 = vmatprep.subr.mxu0 0.0
    %3238 = vmatpush1.msra.mxu0 0.0
    %3239 = vmatprep.subr.mxu0 0.0
    %3240 = vmatpush1.msra.mxu0 0.0
    %3241 = vmatprep.subr.mxu0 0.0
    %3242 = vmatpush1.msra.mxu0 0.0
    %3243 = vmatprep.subr.mxu0 0.0
    %3244 = vmatpush1.msra.mxu0 0.0
    %3245 = vmatprep.subr.mxu0 0.0
    %3246 = vmatpush1.msra.mxu0 0.0
    %3247 = vmatprep.subr.mxu0 0.0
    %3248 = vmatpush1.msra.mxu0 0.0
    %3249 = vmatprep.subr.mxu0 0.0
    %3250 = vmatpush1.msra.mxu0 0.0
    %3251 = vmatprep.subr.mxu0 0.0
    %3252 = vmatpush1.msra.mxu0 0.0
    %3253 = vmatprep.subr.mxu0 0.0
    %3254 = vmatpush1.msra.mxu0 0.0
    %3255 = vmatprep.subr.mxu0 0.0
    %3256 = vmatpush1.msra.mxu0 0.0
    %3257 = vmatprep.subr.mxu0 0.0
    %3258 = vmatpush1.msra.mxu0 0.0
    %3259 = vmatprep.subr.mxu0 0.0
    %3260 = vmatpush1.msra.mxu0 0.0
    %3261 = vmatprep.subr.mxu0 0.0
    %3262 = vmatpush1.msra.mxu0 0.0
    %3263 = vmatprep.subr.mxu0 0.0
    %3264 = vmatpush1.msra.mxu0 0.0
    %3265 = vmatprep.subr.mxu0 0.0
    %3266 = vmatpush1.msra.mxu0 0.0
    %3267 = vmatprep.subr.mxu0 0.0
    %3268 = vmatpush1.msra.mxu0 0.0
    %3269 = vmatprep.subr.mxu0 0.0
    %3270 = vmatpush1.msra.mxu0 0.0
    %3271 = vmatprep.subr.mxu0 0.0
    %3272 = vmatpush1.msra.mxu0 0.0
    %3273 = vmatprep.subr.mxu0 0.0
    %3274 = vmatpush1.msra.mxu0 0.0
    %3275 = vmatprep.mubr.f32.mxu0 0.0
    %3276 = vmatmul.mubr.f32.gmra.mrb[0].mxu0 %v3161
    %v3277 = vpop.f32.mrb[0].mxu0
    %v3278 = vadd.f32 %v3158, %v3277
    %v3279 = vpop.f32.mrb[0].mxu0
    %3280 = vmatprep.mubr.f32.mxu0 0.0
    %3281 = vmatmul.mubr.f32.gmra.mrb[0].mxu0 %v3164
    %v3282 = vpop.f32.mrb[0].mxu0
    %v3283 = vadd.f32 %v3158, %v3282
    %v3284 = vpop.f32.mrb[0].mxu0
    %3285 = vmatprep.mubr.f32.mxu0 0.0
    %3286 = vmatmul.mubr.f32.gmra.mrb[0].mxu0 %v3167
    %v3287 = vpop.f32.mrb[0].mxu0
    %v3288 = vadd.f32 %v3158, %v3287
    %v3289 = vpop.f32.mrb[0].mxu0
    %3290 = vmatprep.mubr.f32.mxu0 0.0
    %3291 = vmatmul.mubr.f32.gmra.mrb[0].mxu0 %v3170
    %v3292 = vpop.f32.mrb[0].mxu0
    %v3293 = vadd.f32 %v3158, %v3292
    %v3294 = vpop.f32.mrb[0].mxu0
    %3295 = vmatprep.mubr.f32.mxu0 0.0
    %3296 = vmatmul.mubr.f32.gmra.mrb[0].mxu0 %v3173
    %v3297 = vpop.f32.mrb[0].mxu0
    %v3298 = vadd.f32 %v3158, %v3297
    %v3299 = vpop.f32.mrb[0].mxu0
    %3300 = vmatprep.mubr.f32.mxu0 0.0
    %3301 = vmatmul.mubr.f32.gmra.mrb[0].mxu0 %v3176
    %v3302 = vpop.f32.mrb[0].mxu0
    %v3303 = vadd.f32 %v3158, %v3302
    %v3304 = vpop.f32.mrb[0].mxu0
    %3305 = vmatprep.mubr.f32.mxu0 0.0
    %3306 = vmatmul.mubr.f32.gmra.mrb[0].mxu0 %v3179
    %v3307 = vpop.f32.mrb[0].mxu0
    %v3308 = vadd.f32 %v3158, %v3307
    %v3309 = vpop.f32.mrb[0].mxu0
    %3310 = vmatprep.mubr.f32.mxu0 0.0
    %3311 = vmatmul.mubr.f32.gmra.mrb[0].mxu0 %v3182
    %v3312 = vpop.f32.mrb[0].mxu0
    %v3313 = vadd.f32 %v3158, %v3312
    %v3314 = vpop.f32.mrb[0].mxu0
    %3315 = vmatprep.mubr.f32.mxu0 0.0
    %3316 = vmatmul.mubr.f32.gmra.mrb[0].mxu0 %v3185
    %v3317 = vpop.f32.mrb[0].mxu0
    %v3318 = vadd.f32 %v3158, %v3317
    %v3319 = vpop.f32.mrb[0].mxu0
    %3320 = vmatprep.mubr.f32.mxu0 0.0
    %3321 = vmatmul.mubr.f32.gmra.mrb[0].mxu0 %v3188
    %v3322 = vpop.f32.mrb[0].mxu0
    %v3323 = vadd.f32 %v3158, %v3322
    %v3324 = vpop.f32.mrb[0].mxu0
    %3325 = vmatprep.mubr.f32.mxu0 0.0
    %3326 = vmatmul.mubr.f32.gmra.mrb[0].mxu0 %v3191
    %v3327 = vpop.f32.mrb[0].mxu0
    %v3328 = vadd.f32 %v3158, %v3327
    %v3329 = vpop.f32.mrb[0].mxu0
    %3330 = vmatprep.mubr.f32.mxu0 0.0
    %3331 = vmatmul.mubr.f32.gmra.mrb[0].mxu0 %v3194
    %v3332 = vpop.f32.mrb[0].mxu0
    %v3333 = vadd.f32 %v3158, %v3332
    %v3334 = vpop.f32.mrb[0].mxu0
    %3335 = vmatprep.mubr.f32.mxu0 0.0
    %3336 = vmatmul.mubr.f32.gmra.mrb[0].mxu0 %v3197
    %v3337 = vpop.f32.mrb[0].mxu0
    %v3338 = vadd.f32 %v3158, %v3337
    %v3339 = vpop.f32.mrb[0].mxu0
    %3340 = vmatprep.mubr.f32.mxu0 0.0
    %3341 = vmatmul.mubr.f32.gmra.mrb[0].mxu0 %v3200
    %v3342 = vpop.f32.mrb[0].mxu0
    %v3343 = vadd.f32 %v3158, %v3342
    %v3344 = vpop.f32.mrb[0].mxu0
    %3345 = vmatprep.mubr.f32.mxu0 0.0
    %3346 = vmatmul.mubr.f32.gmra.mrb[0].mxu0 %v3203
    %v3347 = vpop.f32.mrb[0].mxu0
    %v3348 = vadd.f32 %v3158, %v3347
    %v3349 = vpop.f32.mrb[0].mxu0
    %3350 = vmatprep.mubr.f32.mxu0 0.0
    %3351 = vmatmul.mubr.f32.gmra.mrb[0].mxu0 %v3206
    %v3352 = vpop.f32.mrb[0].mxu0
    %v3353 = vadd.f32 %v3158, %v3352
    %v3354 = vpop.f32.mrb[0].mxu0
    %3355 = vdwg.mxu0
    %v3356 = vmax.f32 %v3278, 0.0
    %v3357 = vmax.f32 %v3283, 0.0
    %v3358 = vmax.f32 %v3288, 0.0
    %v3359 = vmax.f32 %v3293, 0.0
    %v3360 = vmax.f32 %v3298, 0.0
    %v3361 = vmax.f32 %v3303, 0.0
    %v3362 = vmax.f32 %v3308, 0.0
    %v3363 = vmax.f32 %v3313, 0.0
    %v3364 = vmax.f32 %v3318, 0.0
    %v3365 = vmax.f32 %v3323, 0.0
    %v3366 = vmax.f32 %v3328, 0.0
    %v3367 = vmax.f32 %v3333, 0.0
    %v3368 = vmax.f32 %v3338, 0.0
    %v3369 = vmax.f32 %v3343, 0.0
    %v3370 = vmax.f32 %v3348, 0.0
    %v3371 = vmax.f32 %v3353, 0.0
    %v3372 = vadd.f32 %v3356, %v1862
    %v3373 = vadd.f32 %v3357, %v1863
    %v3374 = vadd.f32 %v3358, %v1864
    %v3375 = vadd.f32 %v3359, %v1865
    %v3376 = vadd.f32 %v3360, %v1866
    %v3377 = vadd.f32 %v3361, %v1867
    %v3378 = vadd.f32 %v3362, %v1868
    %v3379 = vadd.f32 %v3363, %v1869
    %v3380 = vadd.f32 %v3364, %v1870
    %v3381 = vadd.f32 %v3365, %v1871
    %v3382 = vadd.f32 %v3366, %v1872
    %v3383 = vadd.f32 %v3367, %v1873
    %v3384 = vadd.f32 %v3368, %v1874
    %v3385 = vadd.f32 %v3369, %v1875
    %v3386 = vadd.f32 %v3370, %v1876
    %v3387 = vadd.f32 %v3371, %v1877
    %v3388 = vld [vmem:[%s16] sm:$0xff]
    %v3389 = vld [vmem:[%s16 + $0x8] sm:$0xff]
    %v3390 = vld [vmem:[%s16 + $0x10] sm:$0xff]
    %v3391 = vld [vmem:[%s16 + $0x18] sm:$0xff]
    %v3392 = vld [vmem:[%s16 + $0x20] sm:$0xff]
    %v3393 = vld [vmem:[%s16 + $0x28] sm:$0xff]
    %v3394 = vld [vmem:[%s16 + $0x30] sm:$0xff]
    %v3395 = vld [vmem:[%s16 + $0x38] sm:$0xff]
    %v3396 = vld [vmem:[%s16 + $0x40] sm:$0xff]
    %v3397 = vld [vmem:[%s16 + $0x48] sm:$0xff]
    %v3398 = vld [vmem:[%s16 + $0x50] sm:$0xff]
    %v3399 = vld [vmem:[%s16 + $0x58] sm:$0xff]
    %v3400 = vld [vmem:[%s16 + $0x60] sm:$0xff]
    %v3401 = vld [vmem:[%s16 + $0x68] sm:$0xff]
    %v3402 = vld [vmem:[%s16 + $0x70] sm:$0xff]
    %v3403 = vld [vmem:[%s16 + $0x78] sm:$0xff]
    %v3404 = vadd.f32 %v3372, %v3388
    %v3405 = vadd.f32 %v3373, %v3389
    %v3406 = vadd.f32 %v3374, %v3390
    %v3407 = vadd.f32 %v3375, %v3391
    %v3408 = vadd.f32 %v3376, %v3392
    %v3409 = vadd.f32 %v3377, %v3393
    %v3410 = vadd.f32 %v3378, %v3394
    %v3411 = vadd.f32 %v3379, %v3395
    %v3412 = vadd.f32 %v3380, %v3396
    %v3413 = vadd.f32 %v3381, %v3397
    %v3414 = vadd.f32 %v3382, %v3398
    %v3415 = vadd.f32 %v3383, %v3399
    %v3416 = vadd.f32 %v3384, %v3400
    %v3417 = vadd.f32 %v3385, %v3401
    %v3418 = vadd.f32 %v3386, %v3402
    %v3419 = vadd.f32 %v3387, %v3403
    %3420 = vst.msk [vmem:[#allocation4] sm:$0xff] %vm334, %v3404
    %3421 = vst.msk [vmem:[#allocation4 + $0x8] sm:$0xff] %vm334, %v3405
    %3422 = vst.msk [vmem:[#allocation4 + $0x10] sm:$0xff] %vm334, %v3406
    %3423 = vst.msk [vmem:[#allocation4 + $0x18] sm:$0xff] %vm334, %v3407
    %3424 = vst.msk [vmem:[#allocation4 + $0x20] sm:$0xff] %vm334, %v3408
    %3425 = vst.msk [vmem:[#allocation4 + $0x28] sm:$0xff] %vm334, %v3409
    %3426 = vst.msk [vmem:[#allocation4 + $0x30] sm:$0xff] %vm334, %v3410
    %3427 = vst.msk [vmem:[#allocation4 + $0x38] sm:$0xff] %vm334, %v3411
    %3428 = vst.msk [vmem:[#allocation4 + $0x40] sm:$0xff] %vm334, %v3412
    %3429 = vst.msk [vmem:[#allocation4 + $0x48] sm:$0xff] %vm334, %v3413
    %3430 = vst.msk [vmem:[#allocation4 + $0x50] sm:$0xff] %vm334, %v3414
    %3431 = vst.msk [vmem:[#allocation4 + $0x58] sm:$0xff] %vm334, %v3415
    %3432 = vst.msk [vmem:[#allocation4 + $0x60] sm:$0xff] %vm334, %v3416
    %3433 = vst.msk [vmem:[#allocation4 + $0x68] sm:$0xff] %vm334, %v3417
    %3434 = vst.msk [vmem:[#allocation4 + $0x70] sm:$0xff] %vm334, %v3418
    %3435 = vst.msk [vmem:[#allocation4 + $0x78] sm:$0xff] %vm334, %v3419
    // Predicated region
    $region70: #{downblock_forward.1} parent=1 // pred_check
      _
    $region71: #{downblock_forward.1} parent=1 // pred_check_branch
      %3437 = sbr.rel (0) target = $region73
    $region72: #{downblock_forward.1} parent=1 // pred_region
      %s3439 = ssub.s32 2048, 2048
      %3440 = vsyncadd [#allocation5], %s3439
      %s3441 = sshll.u32 [#allocation4], 4
      %s3442 = int_to_ptr.vmem [resolvable:$true] %s3441
      %3447 = dma.vmem_to_hbm [thread:$0]  %s3442, 2048, %s17, [#allocation5], 128, 128, 8
    $region73: #{downblock_forward.1} parent=1 // pred_fallthru
      _
    // Predicated region
    $region74: #{downblock_forward.1} parent=1 // pred_check
      _
    $region75: #{downblock_forward.1} parent=1 // pred_check_branch
      %3449 = sbr.rel (0) target = $region77
    $region76: #{downblock_forward.1} parent=1 // pred_region
      %3450 = dma.done [#allocation5], 2048
    $region77: #{downblock_forward.1} parent=1 // pred_fallthru
      _
    %3451 = vsyncpa [#allocation5], 1

</llo_original>
